<compile_context>
chip_gen: v7x
topology: tpu7x:2x2x1
jax: 0.10.0
libtpu: 0.0.40
codegen_flags: <defaults>
</compile_context>

<pallas_src>
import jax
import jax.numpy as jnp
from jax.experimental import pallas as pl
from jax.experimental.pallas import tpu as pltpu

EPS = 1e-5  # torch BatchNorm2d default eps
HIGH = jax.lax.Precision.HIGHEST


# -----------------------------------------------------------------------------
# Pallas kernel: one (batch, strip) tile of the residual block, NHWC.
# -----------------------------------------------------------------------------
def _decoder_res_kernel(up_ref, sk_ref, w1_ref, w2_ref, wsu_ref, wss_ref, bo_ref,
                        s1u_ref, t1u_ref, s1s_ref, t1s_ref, s2_ref, t2_ref,
                        out_ref, im1, im2):
    TH = out_ref.shape[1]
    W = out_ref.shape[2]
    Cout = out_ref.shape[3]
    Cup = up_ref.shape[4]
    Csk = sk_ref.shape[4]
    Cin = Cup + Csk
    R1 = TH + 2                      # conv1 rows per strip (1-row recompute halo)
    sdt = im1.dtype                  # storage / matmul dtype (f32 or bf16)

    s_id = pl.program_id(1)
    last = pl.num_programs(1) - 1

    up = up_ref[0, 0]                # (TH+4, W, Cup)  raw strip with 2-row halo
    sk = sk_ref[0, 0]                # (TH+4, W, Csk)

    # --- b1: folded eval-BN + ReLU; channel concat fused (no HBM round trip) --
    a_up = jnp.maximum(up * s1u_ref[0] + t1u_ref[0], 0.0).astype(sdt)
    a_sk = jnp.maximum(sk * s1s_ref[0] + t1s_ref[0], 0.0).astype(sdt)
    a = jnp.concatenate([a_up, a_sk], axis=-1)                    # (TH+4, W, Cin)

    # --- width-3 im2col of BN1(x), built once per strip -----------------------
    # lane blocks: [kx=0 (col x-1) | kx=1 (col x) | kx=2 (col x+1)]
    colw = jax.lax.broadcasted_iota(jnp.int32, (TH + 4, W, 1), 1)
    left = jnp.where(colw >= 1, pltpu.roll(a, 1, 1), 0.0)
    right = jnp.where(colw <= W - 2, pltpu.roll(a, W - 1, 1), 0.0)
    im1[...] = jnp.concatenate([left, a, right], axis=-1)         # (TH+4, W, 3Cin)

    # conv1 zero-padding rows at the image boundary (wrapper halo rows hold
    # zeros of the RAW input, but BN(0) != 0, so overwrite them here).
    @pl.when(s_id == 0)
    def _():
        im1[0:2, :, :] = jnp.zeros((2, W, 3 * Cin), sdt)

    @pl.when(s_id == last)
    def _():
        im1[TH + 2:TH + 4, :, :] = jnp.zeros((2, W, 3 * Cin), sdt)

    # --- c1: 3x3 conv as 3 matmuls (K = 3*Cin), fused b2 = BN + ReLU ----------
    acc1 = jnp.zeros((R1 * W, Cout), jnp.float32)
    for ky in range(3):                             # ky = free row offset
        acc1 = acc1 + jnp.dot(im1[ky:ky + R1, :, :].reshape(R1 * W, 3 * Cin),
                              w1_ref[ky], preferred_element_type=jnp.float32)
    y = jnp.maximum(acc1 * s2_ref[0] + t2_ref[0], 0.0)            # b1 folded in t2
    y = y.reshape(R1, W, Cout).astype(sdt)

    # --- width-3 im2col of BN2(c1) ---------------------------------------------
    colw2 = jax.lax.broadcasted_iota(jnp.int32, (R1, W, 1), 1)
    left2 = jnp.where(colw2 >= 1, pltpu.roll(y, 1, 1), 0.0)
    right2 = jnp.where(colw2 <= W - 2, pltpu.roll(y, W - 1, 1), 0.0)
    im2[...] = jnp.concatenate([left2, y, right2], axis=-1)       # (TH+2, W, 3Cout)

    # conv2 zero-padding rows at the image boundary.
    @pl.when(s_id == 0)
    def _():
        im2[0:1, :, :] = jnp.zeros((1, W, 3 * Cout), sdt)

    @pl.when(s_id == last)
    def _():
        im2[TH + 1:TH + 2, :, :] = jnp.zeros((1, W, 3 * Cout), sdt)

    # --- c2: 3x3 conv + 1x1 shortcut folded into one accumulator --------------
    acc2 = jnp.dot(up[2:TH + 2].reshape(TH * W, Cup), wsu_ref[...],
                   preferred_element_type=jnp.float32)
    acc2 = acc2 + jnp.dot(sk[2:TH + 2].reshape(TH * W, Csk), wss_ref[...],
                          preferred_element_type=jnp.float32)
    for ky in range(3):
        acc2 = acc2 + jnp.dot(im2[ky:ky + TH, :, :].reshape(TH * W, 3 * Cout),
                              w2_ref[ky], preferred_element_type=jnp.float32)
    out = acc2 + bo_ref[0]                                        # bo = b2 + bs
    out_ref[0] = out.reshape(TH, W, Cout).astype(out_ref.dtype)


def residual_block_pallas(up_strips, sk_strips, kernel_params, *, dtype=jnp.float32):
    """up_strips: (N,S,TH+4,W,Cup), sk_strips: (N,S,TH+4,W,Csk) -> (N,S*TH,W,Cout)."""
    (w1r, w2r, wsu, wss, bo, s1u, t1u, s1s, t1s, s2, t2p) = kernel_params
    N, S, THp4, W, Cup = up_strips.shape
    Csk = sk_strips.shape[-1]
    Cin = Cup + Csk
    Cout = w1r.shape[-1]
    TH = THp4 - 4
    Ho = S * TH

    c3 = lambda n, s: (0, 0, 0)
    c2 = lambda n, s: (0, 0)

    return pl.pallas_call(
        _decoder_res_kernel,
        out_shape=jax.ShapeDtypeStruct((N, Ho, W, Cout), jnp.float32),
        grid_spec=pltpu.PrefetchScalarGridSpec(
            num_scalar_prefetch=0,
            grid=(N, S),
            in_specs=[
                pl.BlockSpec((1, 1, TH + 4, W, Cup), lambda n, s: (n, s, 0, 0, 0)),
                pl.BlockSpec((1, 1, TH + 4, W, Csk), lambda n, s: (n, s, 0, 0, 0)),
                pl.BlockSpec((3, 3 * Cin, Cout), c3),      # w1 (per-ky, kx-major K)
                pl.BlockSpec((3, 3 * Cout, Cout), c3),     # w2
                pl.BlockSpec((Cup, Cout), c2),             # 1x1 shortcut (up part)
                pl.BlockSpec((Csk, Cout), c2),             # 1x1 shortcut (skip part)
                pl.BlockSpec((1, Cout), c2),               # bo = b2 + bs
                pl.BlockSpec((1, Cup), c2),                # bn1 scale (up)
                pl.BlockSpec((1, Cup), c2),                # bn1 shift (up)
                pl.BlockSpec((1, Csk), c2),                # bn1 scale (skip)
                pl.BlockSpec((1, Csk), c2),                # bn1 shift (skip)
                pl.BlockSpec((1, Cout), c2),               # bn2 scale
                pl.BlockSpec((1, Cout), c2),               # bn2 shift (b1 folded)
            ],
            out_specs=pl.BlockSpec((1, TH, W, Cout), lambda n, s: (n, s, 0, 0)),
            scratch_shapes=[
                pltpu.VMEM((TH + 4, W, 3 * Cin), dtype),   # im2col of BN1(x)
                pltpu.VMEM((TH + 2, W, 3 * Cout), dtype),  # im2col of BN2(c1(x))
            ],
        ),
        compiler_params=pltpu.CompilerParams(
            dimension_semantics=("parallel", "parallel"),
            vmem_limit_bytes=48 * 1024 * 1024,
        ),
    )(up_strips.astype(dtype), sk_strips.astype(dtype),
      w1r.astype(dtype), w2r.astype(dtype), wsu.astype(dtype), wss.astype(dtype),
      bo, s1u, t1u, s1s, t1s, s2, t2p)


# -----------------------------------------------------------------------------
# Glue: bilinear 2x upsample (align_corners=True), strip + halo extraction,
# layout transposes.  Halo strips never need a separate HBM pass for the
# upsampled branch (folded into the H interpolation matrix).
# -----------------------------------------------------------------------------
def bilinear_matrix(n_in, n_out):
    if n_in == 1:
        return jnp.ones((n_out, 1), jnp.float32)
    src = jnp.arange(n_out, dtype=jnp.float32) * (n_in - 1) / (n_out - 1)
    i0 = jnp.clip(jnp.floor(src), 0, n_in - 2).astype(jnp.int32)
    frac = src - i0.astype(jnp.float32)
    rows = jnp.arange(n_out)
    m = jnp.zeros((n_out, n_in), jnp.float32)
    m = m.at[rows, i0].add(1.0 - frac)
    m = m.at[rows, i0 + 1].add(frac)
    return m


def _choose_strip(h):
    for th in (32, 16, 8):
        if h % th == 0:
            return th
    return h


def decoder_block_forward(inputs_nchw, skip_nchw, kernel_params, *,
                          dtype=jnp.float32, block_h=None):
    x = jnp.transpose(inputs_nchw, (0, 2, 3, 1)).astype(jnp.float32)   # NHWC
    sk = jnp.transpose(skip_nchw, (0, 2, 3, 1)).astype(jnp.float32)    # NHWC
    N, Hi, Wi, Cup = x.shape
    _, Ho, Wo, Csk = sk.shape
    th = block_h or _choose_strip(Ho)
    S = Ho // th

    # 2x bilinear upsample (align_corners=True): W pass as a matmul, H pass
    # folded with the (strip + 2-row zero halo) extraction.
    Uw = bilinear_matrix(Wi, Wo)
    xw = jnp.einsum('qw,nhwc->nhqc', Uw, x, precision=HIGH)
    Uh = bilinear_matrix(Hi, Ho)
    Uh_pad = jnp.pad(Uh, ((2, 2), (0, 0)))
    ridx = jnp.arange(S)[:, None] * th + jnp.arange(th + 4)[None, :]   # (S, th+4)
    Uh_strips = Uh_pad[ridx]                                           # (S, th+4, Hi)
    up_strips = jnp.einsum('sih,nhqc->nsiqc', Uh_strips, xw, precision=HIGH)

    # Skip branch: zero-pad 2 rows each side and gather the same haloed strips.
    sk_pad = jnp.pad(sk, ((0, 0), (2, 2), (0, 0), (0, 0)))
    sk_strips = jnp.take(sk_pad, ridx.reshape(-1), axis=1)
    sk_strips = sk_strips.reshape(N, S, th + 4, Wo, Csk)

    # Dropout2d (eval mode) = identity.
    out_nhwc = residual_block_pallas(up_strips, sk_strips, kernel_params, dtype=dtype)
    return jnp.transpose(out_nhwc, (0, 3, 1, 2))                       # back to NCHW


# -----------------------------------------------------------------------------
# Deterministic parameter initialization (shapes per decoder_block.__init__)
# -----------------------------------------------------------------------------
def init_params(key, in_c, out_c):
    cin = in_c + out_c
    k = jax.random.split(key, 14)
    g1  = 1.0 + 0.1 * jax.random.normal(k[0], (cin,), jnp.float32)
    be1 = 0.1 * jax.random.normal(k[1], (cin,), jnp.float32)
    m1  = 0.1 * jax.random.normal(k[2], (cin,), jnp.float32)
    v1  = jnp.abs(1.0 + 0.1 * jax.random.normal(k[3], (cin,), jnp.float32))
    w1  = 0.1 * jax.random.normal(k[4], (3, 3, cin, out_c), jnp.float32)   # HWIO
    b1  = 0.05 * jax.random.normal(k[5], (out_c,), jnp.float32)
    g2  = 1.0 + 0.1 * jax.random.normal(k[6], (out_c,), jnp.float32)
    be2 = 0.1 * jax.random.normal(k[7], (out_c,), jnp.float32)
    m2  = 0.1 * jax.random.normal(k[8], (out_c,), jnp.float32)
    v2  = jnp.abs(1.0 + 0.1 * jax.random.normal(k[9], (out_c,), jnp.float32))
    w2  = 0.1 * jax.random.normal(k[10], (3, 3, out_c, out_c), jnp.float32)
    b2  = 0.05 * jax.random.normal(k[11], (out_c,), jnp.float32)
    ws  = 0.1 * jax.random.normal(k[12], (cin, out_c), jnp.float32)        # 1x1 conv
    bs  = 0.05 * jax.random.normal(k[13], (out_c,), jnp.float32)

    # Fold eval-mode BatchNorm into per-channel scale/shift.
    s1 = g1 / jnp.sqrt(v1 + EPS); t1 = be1 - m1 * s1
    s2 = g2 / jnp.sqrt(v2 + EPS); t2 = be2 - m2 * s2

    # Wrapper-side folding: b1 into the BN2 shift, b2 + bs into one bias.
    t2p = b1 * s2 + t2
    bo = b2 + bs

    kernel_params = (
        w1.reshape(3, 3 * cin, out_c),          # per-ky (3*Cin, Cout), kx-major K
        w2.reshape(3, 3 * out_c, out_c),
        ws[:in_c], ws[in_c:], bo.reshape(1, out_c),
        s1[:in_c].reshape(1, in_c), t1[:in_c].reshape(1, in_c),
        s1[in_c:].reshape(1, out_c), t1[in_c:].reshape(1, out_c),
        s2.reshape(1, out_c), t2p.reshape(1, out_c),
    )
    ref_params = (w1, b1, w2, b2, ws, bs, s1, t1, s2, t2)
    return kernel_params, ref_params


# -----------------------------------------------------------------------------
# Pure-JAX reference (for numerical verification on the same device)
# -----------------------------------------------------------------------------
def upsample_nhwc(x_nhwc, h_out, w_out):
    Uh = bilinear_matrix(x_nhwc.shape[1], h_out)
    Uw = bilinear_matrix(x_nhwc.shape[2], w_out)
    up = jnp.einsum('ph,nhwc->npwc', Uh, x_nhwc, precision=HIGH)
    up = jnp.einsum('qw,npwc->npqc', Uw, up, precision=HIGH)
    return up


def reference_forward(inputs_nchw, skip_nchw, ref_params):
    (w1, b1, w2, b2, ws, bs, s1, t1, s2, t2) = ref_params
    x = jnp.transpose(inputs_nchw, (0, 2, 3, 1)).astype(jnp.float32)
    sk = jnp.transpose(skip_nchw, (0, 2, 3, 1)).astype(jnp.float32)
    xc = jnp.concatenate([upsample_nhwc(x, sk.shape[1], sk.shape[2]), sk], axis=-1)
    dn = ('NHWC', 'HWIO', 'NHWC')
    y = jnp.maximum(xc * s1 + t1, 0.0)
    y = jax.lax.conv_general_dilated(y, w1, (1, 1), ((1, 1), (1, 1)),
                                     dimension_numbers=dn, precision=HIGH) + b1
    y = jnp.maximum(y * s2 + t2, 0.0)
    y = jax.lax.conv_general_dilated(y, w2, (1, 1), ((1, 1), (1, 1)),
                                     dimension_numbers=dn, precision=HIGH) + b2
    s = jax.lax.conv_general_dilated(xc, ws.reshape(1, 1, *ws.shape), (1, 1),
                                     ((0, 0), (0, 0)),
                                     dimension_numbers=dn, precision=HIGH) + bs
    return jnp.transpose(y + s, (0, 3, 1, 2))


if __name__ == "__main__":
    key = jax.random.PRNGKey(0)
    in_c, out_c = 16, 8
    N, Hi, Wi = 2, 12, 12                # `inputs` spatial; `skip` is 2Hi x 2Wi
    kx, ksk, kp = jax.random.split(key, 3)
    inputs = jax.random.normal(kx, (N, in_c, Hi, Wi), jnp.float32)            # NCHW
    skip = jax.random.normal(ksk, (N, out_c, 2 * Hi, 2 * Wi), jnp.float32)    # NCHW

    kernel_params, ref_params = init_params(kp, in_c, out_c)

    out = decoder_block_forward(inputs, skip, kernel_params)   # 3 strips of 8 rows
    out = jax.block_until_ready(out)
    assert out.shape == (N, out_c, 2 * Hi, 2 * Wi), out.shape

    ref = reference_forward(inputs, skip, ref_params)
    max_err = float(jnp.max(jnp.abs(out - ref)))
    assert jnp.allclose(out, ref, atol=2e-3, rtol=2e-3), f"max_err={max_err}"

    print("KERNEL_OK")
</pallas_src>

<mosaic_0001>
module attributes {stable_mosaic.version = 11 : i64} {
  func.func @_decoder_res_kernel(%arg0: i32, %arg1: i32, %arg2: memref<1x1x12x24x16xf32, #tpu.memory_space<vmem>>, %arg3: memref<1x1x12x24x8xf32, #tpu.memory_space<vmem>>, %arg4: memref<3x72x8xf32, #tpu.memory_space<vmem>>, %arg5: memref<3x24x8xf32, #tpu.memory_space<vmem>>, %arg6: memref<16x8xf32, #tpu.memory_space<vmem>>, %arg7: memref<8x8xf32, #tpu.memory_space<vmem>>, %arg8: memref<1x8xf32, #tpu.memory_space<vmem>>, %arg9: memref<1x16xf32, #tpu.memory_space<vmem>>, %arg10: memref<1x16xf32, #tpu.memory_space<vmem>>, %arg11: memref<1x8xf32, #tpu.memory_space<vmem>>, %arg12: memref<1x8xf32, #tpu.memory_space<vmem>>, %arg13: memref<1x8xf32, #tpu.memory_space<vmem>>, %arg14: memref<1x8xf32, #tpu.memory_space<vmem>>, %arg15: memref<1x8x24x8xf32, #tpu.memory_space<vmem>>, %arg16: memref<12x24x72xf32, #tpu.memory_space<vmem>>, %arg17: memref<10x24x24xf32, #tpu.memory_space<vmem>>) attributes {dimension_semantics = [#tpu.dimension_semantics<parallel>, #tpu.dimension_semantics<parallel>], iteration_bounds = array<i64: 2, 3>, scalar_prefetch = 0 : i64, scratch_operands = 2 : i64, tpu.core_type = #tpu.core_type<tc>, window_params = [{transform_indices = @transform_0, window_bounds = array<i64: 1, 1, 12, 24, 16>}, {transform_indices = @transform_1, window_bounds = array<i64: 1, 1, 12, 24, 8>}, {pipeline_mode = #tpu.pipeline_mode<synchronous>, transform_indices = @transform_2, window_bounds = array<i64: 3, 72, 8>}, {pipeline_mode = #tpu.pipeline_mode<synchronous>, transform_indices = @transform_3, window_bounds = array<i64: 3, 24, 8>}, {pipeline_mode = #tpu.pipeline_mode<synchronous>, transform_indices = @transform_4, window_bounds = array<i64: 16, 8>}, {pipeline_mode = #tpu.pipeline_mode<synchronous>, transform_indices = @transform_5, window_bounds = array<i64: 8, 8>}, {pipeline_mode = #tpu.pipeline_mode<synchronous>, transform_indices = @transform_6, window_bounds = array<i64: 1, 8>}, {pipeline_mode = #tpu.pipeline_mode<synchronous>, transform_indices = @transform_7, window_bounds = array<i64: 1, 16>}, {pipeline_mode = #tpu.pipeline_mode<synchronous>, transform_indices = @transform_8, window_bounds = array<i64: 1, 16>}, {pipeline_mode = #tpu.pipeline_mode<synchronous>, transform_indices = @transform_9, window_bounds = array<i64: 1, 8>}, {pipeline_mode = #tpu.pipeline_mode<synchronous>, transform_indices = @transform_10, window_bounds = array<i64: 1, 8>}, {pipeline_mode = #tpu.pipeline_mode<synchronous>, transform_indices = @transform_11, window_bounds = array<i64: 1, 8>}, {pipeline_mode = #tpu.pipeline_mode<synchronous>, transform_indices = @transform_12, window_bounds = array<i64: 1, 8>}, {transform_indices = @transform_13, window_bounds = array<i64: 1, 8, 24, 8>}]} {
    %c0 = arith.constant 0 : index
    %c0_0 = arith.constant 0 : index
    %c0_1 = arith.constant 0 : index
    %c0_2 = arith.constant 0 : index
    %c0_3 = arith.constant 0 : index
    %0 = vector.load %arg2[%c0, %c0_0, %c0_1, %c0_2, %c0_3] : memref<1x1x12x24x16xf32, #tpu.memory_space<vmem>>, vector<1x1x12x24x16xf32>
    %1 = vector.shape_cast %0 : vector<1x1x12x24x16xf32> to vector<12x24x16xf32>
    %c0_4 = arith.constant 0 : index
    %c0_5 = arith.constant 0 : index
    %c0_6 = arith.constant 0 : index
    %c0_7 = arith.constant 0 : index
    %c0_8 = arith.constant 0 : index
    %2 = vector.load %arg3[%c0_4, %c0_5, %c0_6, %c0_7, %c0_8] : memref<1x1x12x24x8xf32, #tpu.memory_space<vmem>>, vector<1x1x12x24x8xf32>
    %3 = vector.shape_cast %2 : vector<1x1x12x24x8xf32> to vector<12x24x8xf32>
    %c0_9 = arith.constant 0 : index
    %c0_10 = arith.constant 0 : index
    %4 = vector.load %arg9[%c0_9, %c0_10] : memref<1x16xf32, #tpu.memory_space<vmem>>, vector<1x16xf32>
    %5 = vector.shape_cast %4 : vector<1x16xf32> to vector<16xf32>
    %6 = vector.shape_cast %5 : vector<16xf32> to vector<1x1x16xf32>
    %7 = vector.broadcast %6 : vector<1x1x16xf32> to vector<12x24x16xf32>
    %8 = arith.mulf %1, %7 : vector<12x24x16xf32>
    %c0_11 = arith.constant 0 : index
    %c0_12 = arith.constant 0 : index
    %9 = vector.load %arg10[%c0_11, %c0_12] : memref<1x16xf32, #tpu.memory_space<vmem>>, vector<1x16xf32>
    %10 = vector.shape_cast %9 : vector<1x16xf32> to vector<16xf32>
    %11 = vector.shape_cast %10 : vector<16xf32> to vector<1x1x16xf32>
    %12 = vector.broadcast %11 : vector<1x1x16xf32> to vector<12x24x16xf32>
    %13 = arith.addf %8, %12 : vector<12x24x16xf32>
    %cst = arith.constant 0.000000e+00 : f32
    %14 = vector.broadcast %cst : f32 to vector<12x24x16xf32>
    %15 = arith.maximumf %13, %14 : vector<12x24x16xf32>
    %c0_13 = arith.constant 0 : index
    %c0_14 = arith.constant 0 : index
    %16 = vector.load %arg11[%c0_13, %c0_14] : memref<1x8xf32, #tpu.memory_space<vmem>>, vector<1x8xf32>
    %17 = vector.shape_cast %16 : vector<1x8xf32> to vector<8xf32>
    %18 = vector.shape_cast %17 : vector<8xf32> to vector<1x1x8xf32>
    %19 = vector.broadcast %18 : vector<1x1x8xf32> to vector<12x24x8xf32>
    %20 = arith.mulf %3, %19 : vector<12x24x8xf32>
    %c0_15 = arith.constant 0 : index
    %c0_16 = arith.constant 0 : index
    %21 = vector.load %arg12[%c0_15, %c0_16] : memref<1x8xf32, #tpu.memory_space<vmem>>, vector<1x8xf32>
    %22 = vector.shape_cast %21 : vector<1x8xf32> to vector<8xf32>
    %23 = vector.shape_cast %22 : vector<8xf32> to vector<1x1x8xf32>
    %24 = vector.broadcast %23 : vector<1x1x8xf32> to vector<12x24x8xf32>
    %25 = arith.addf %20, %24 : vector<12x24x8xf32>
    %cst_17 = arith.constant 0.000000e+00 : f32
    %26 = vector.broadcast %cst_17 : f32 to vector<12x24x8xf32>
    %27 = arith.maximumf %25, %26 : vector<12x24x8xf32>
    %28 = tpu.concatenate %15, %27 in 2 : vector<12x24x16xf32>, vector<12x24x8xf32> -> vector<12x24x24xf32>
    %29 = tpu.iota {dimensions = array<i32: 1>} : vector<12x24x1xi32>
    %c1_i32 = arith.constant 1 : i32
    %30 = vector.broadcast %c1_i32 : i32 to vector<12x24x1xi32>
    %31 = arith.cmpi sge, %29, %30 : vector<12x24x1xi32>
    %c1_i32_18 = arith.constant 1 : i32
    %32 = tpu.dynamic_rotate %28 by %c1_i32_18 dim 1 : vector<12x24x24xf32>, i32 -> vector<12x24x24xf32>
    %cst_19 = arith.constant 0.000000e+00 : f32
    %33 = vector.shape_cast %31 : vector<12x24x1xi1> to vector<12x24x1xi1>
    %34 = vector.broadcast %33 : vector<12x24x1xi1> to vector<12x24x24xi1>
    %35 = vector.broadcast %cst_19 : f32 to vector<12x24x24xf32>
    %36 = arith.select %34, %32, %35 : vector<12x24x24xi1>, vector<12x24x24xf32>
    %c22_i32 = arith.constant 22 : i32
    %37 = vector.broadcast %c22_i32 : i32 to vector<12x24x1xi32>
    %38 = arith.cmpi sle, %29, %37 : vector<12x24x1xi32>
    %c23_i32 = arith.constant 23 : i32
    %39 = tpu.dynamic_rotate %28 by %c23_i32 dim 1 : vector<12x24x24xf32>, i32 -> vector<12x24x24xf32>
    %cst_20 = arith.constant 0.000000e+00 : f32
    %40 = vector.shape_cast %38 : vector<12x24x1xi1> to vector<12x24x1xi1>
    %41 = vector.broadcast %40 : vector<12x24x1xi1> to vector<12x24x24xi1>
    %42 = vector.broadcast %cst_20 : f32 to vector<12x24x24xf32>
    %43 = arith.select %41, %39, %42 : vector<12x24x24xi1>, vector<12x24x24xf32>
    %44 = tpu.concatenate %36, %28, %43 in 2 : vector<12x24x24xf32>, vector<12x24x24xf32>, vector<12x24x24xf32> -> vector<12x24x72xf32>
    %c0_21 = arith.constant 0 : index
    %c0_22 = arith.constant 0 : index
    %c0_23 = arith.constant 0 : index
    %45 = vector.load %arg16[%c0_21, %c0_22, %c0_23] : memref<12x24x72xf32, #tpu.memory_space<vmem>>, vector<12x24x72xf32>
    tpu.vector_store %arg16[%c0_21, %c0_22, %c0_23], %44 {strides = array<i32>} : memref<12x24x72xf32, #tpu.memory_space<vmem>>, vector<12x24x72xf32>,
    %c0_i32 = arith.constant 0 : i32
    %46 = arith.cmpi eq, %arg1, %c0_i32 : i32
    %47 = arith.extui %46 : i1 to i32
    %c0_i32_24 = arith.constant 0 : i32
    %48 = arith.cmpi ne, %47, %c0_i32_24 : i32
    scf.if %48 {
      %cst_97 = arith.constant 0.000000e+00 : f32
      %143 = vector.broadcast %cst_97 : f32 to vector<2x24x72xf32>
      %c0_98 = arith.constant 0 : index
      %c0_99 = arith.constant 0 : index
      %c0_100 = arith.constant 0 : index
      %144 = vector.load %arg16[%c0_98, %c0_99, %c0_100] : memref<12x24x72xf32, #tpu.memory_space<vmem>>, vector<2x24x72xf32>
      tpu.vector_store %arg16[%c0_98, %c0_99, %c0_100], %143 {strides = array<i32>} : memref<12x24x72xf32, #tpu.memory_space<vmem>>, vector<2x24x72xf32>,
    } else {
    }
    %c2_i32 = arith.constant 2 : i32
    %49 = arith.cmpi eq, %arg1, %c2_i32 : i32
    %50 = arith.extui %49 : i1 to i32
    %c0_i32_25 = arith.constant 0 : i32
    %51 = arith.cmpi ne, %50, %c0_i32_25 : i32
    scf.if %51 {
      %cst_97 = arith.constant 0.000000e+00 : f32
      %143 = vector.broadcast %cst_97 : f32 to vector<2x24x72xf32>
      %c10 = arith.constant 10 : index
      %c0_98 = arith.constant 0 : index
      %c0_99 = arith.constant 0 : index
      %144 = vector.load %arg16[%c10, %c0_98, %c0_99] : memref<12x24x72xf32, #tpu.memory_space<vmem>>, vector<2x24x72xf32>
      tpu.vector_store %arg16[%c10, %c0_98, %c0_99], %143 {strides = array<i32>} : memref<12x24x72xf32, #tpu.memory_space<vmem>>, vector<2x24x72xf32>,
    } else {
    }
    %cst_26 = arith.constant 0.000000e+00 : f32
    %52 = vector.broadcast %cst_26 : f32 to vector<240x8xf32>
    %c0_27 = arith.constant 0 : index
    %c0_28 = arith.constant 0 : index
    %c0_29 = arith.constant 0 : index
    %53 = vector.load %arg16[%c0_27, %c0_28, %c0_29] : memref<12x24x72xf32, #tpu.memory_space<vmem>>, vector<10x24x72xf32>
    %54 = vector.shape_cast %53 : vector<10x24x72xf32> to vector<240x72xf32>
    %c0_30 = arith.constant 0 : index
    %c0_31 = arith.constant 0 : index
    %c0_32 = arith.constant 0 : index
    %55 = vector.load %arg4[%c0_30, %c0_31, %c0_32] : memref<3x72x8xf32, #tpu.memory_space<vmem>>, vector<1x72x8xf32>
    %56 = vector.shape_cast %55 : vector<1x72x8xf32> to vector<72x8xf32>
    %cst_33 = arith.constant dense<0.000000e+00> : vector<240x8xf32>
    %57 = tpu.matmul %54, %56, %cst_33 {dimension_numbers = #tpu.dot_dimension_numbers<[1], [0], [0], [1], [0, 0, 1, 1], [], []>} : vector<240x72xf32>, vector<72x8xf32>, vector<240x8xf32> -> vector<240x8xf32>
    %58 = arith.addf %52, %57 : vector<240x8xf32>
    %c1 = arith.constant 1 : index
    %c0_34 = arith.constant 0 : index
    %c0_35 = arith.constant 0 : index
    %59 = vector.load %arg16[%c1, %c0_34, %c0_35] : memref<12x24x72xf32, #tpu.memory_space<vmem>>, vector<10x24x72xf32>
    %60 = vector.shape_cast %59 : vector<10x24x72xf32> to vector<240x72xf32>
    %c1_36 = arith.constant 1 : index
    %c0_37 = arith.constant 0 : index
    %c0_38 = arith.constant 0 : index
    %61 = vector.load %arg4[%c1_36, %c0_37, %c0_38] : memref<3x72x8xf32, #tpu.memory_space<vmem>>, vector<1x72x8xf32>
    %62 = vector.shape_cast %61 : vector<1x72x8xf32> to vector<72x8xf32>
    %cst_39 = arith.constant dense<0.000000e+00> : vector<240x8xf32>
    %63 = tpu.matmul %60, %62, %cst_39 {dimension_numbers = #tpu.dot_dimension_numbers<[1], [0], [0], [1], [0, 0, 1, 1], [], []>} : vector<240x72xf32>, vector<72x8xf32>, vector<240x8xf32> -> vector<240x8xf32>
    %64 = arith.addf %58, %63 : vector<240x8xf32>
    %c2 = arith.constant 2 : index
    %c0_40 = arith.constant 0 : index
    %c0_41 = arith.constant 0 : index
    %65 = vector.load %arg16[%c2, %c0_40, %c0_41] : memref<12x24x72xf32, #tpu.memory_space<vmem>>, vector<10x24x72xf32>
    %66 = vector.shape_cast %65 : vector<10x24x72xf32> to vector<240x72xf32>
    %c2_42 = arith.constant 2 : index
    %c0_43 = arith.constant 0 : index
    %c0_44 = arith.constant 0 : index
    %67 = vector.load %arg4[%c2_42, %c0_43, %c0_44] : memref<3x72x8xf32, #tpu.memory_space<vmem>>, vector<1x72x8xf32>
    %68 = vector.shape_cast %67 : vector<1x72x8xf32> to vector<72x8xf32>
    %cst_45 = arith.constant dense<0.000000e+00> : vector<240x8xf32>
    %69 = tpu.matmul %66, %68, %cst_45 {dimension_numbers = #tpu.dot_dimension_numbers<[1], [0], [0], [1], [0, 0, 1, 1], [], []>} : vector<240x72xf32>, vector<72x8xf32>, vector<240x8xf32> -> vector<240x8xf32>
    %70 = arith.addf %64, %69 : vector<240x8xf32>
    %c0_46 = arith.constant 0 : index
    %c0_47 = arith.constant 0 : index
    %71 = vector.load %arg13[%c0_46, %c0_47] : memref<1x8xf32, #tpu.memory_space<vmem>>, vector<1x8xf32>
    %72 = vector.shape_cast %71 : vector<1x8xf32> to vector<8xf32>
    %73 = vector.shape_cast %72 : vector<8xf32> to vector<1x8xf32>
    %74 = vector.broadcast %73 : vector<1x8xf32> to vector<240x8xf32>
    %75 = arith.mulf %70, %74 : vector<240x8xf32>
    %c0_48 = arith.constant 0 : index
    %c0_49 = arith.constant 0 : index
    %76 = vector.load %arg14[%c0_48, %c0_49] : memref<1x8xf32, #tpu.memory_space<vmem>>, vector<1x8xf32>
    %77 = vector.shape_cast %76 : vector<1x8xf32> to vector<8xf32>
    %78 = vector.shape_cast %77 : vector<8xf32> to vector<1x8xf32>
    %79 = vector.broadcast %78 : vector<1x8xf32> to vector<240x8xf32>
    %80 = arith.addf %75, %79 : vector<240x8xf32>
    %cst_50 = arith.constant 0.000000e+00 : f32
    %81 = vector.broadcast %cst_50 : f32 to vector<240x8xf32>
    %82 = arith.maximumf %80, %81 : vector<240x8xf32>
    %83 = vector.shape_cast %82 : vector<240x8xf32> to vector<10x24x8xf32>
    %84 = tpu.iota {dimensions = array<i32: 1>} : vector<10x24x1xi32>
    %c1_i32_51 = arith.constant 1 : i32
    %85 = vector.broadcast %c1_i32_51 : i32 to vector<10x24x1xi32>
    %86 = arith.cmpi sge, %84, %85 : vector<10x24x1xi32>
    %c1_i32_52 = arith.constant 1 : i32
    %87 = tpu.dynamic_rotate %83 by %c1_i32_52 dim 1 : vector<10x24x8xf32>, i32 -> vector<10x24x8xf32>
    %cst_53 = arith.constant 0.000000e+00 : f32
    %88 = vector.shape_cast %86 : vector<10x24x1xi1> to vector<10x24x1xi1>
    %89 = vector.broadcast %88 : vector<10x24x1xi1> to vector<10x24x8xi1>
    %90 = vector.broadcast %cst_53 : f32 to vector<10x24x8xf32>
    %91 = arith.select %89, %87, %90 : vector<10x24x8xi1>, vector<10x24x8xf32>
    %c22_i32_54 = arith.constant 22 : i32
    %92 = vector.broadcast %c22_i32_54 : i32 to vector<10x24x1xi32>
    %93 = arith.cmpi sle, %84, %92 : vector<10x24x1xi32>
    %c23_i32_55 = arith.constant 23 : i32
    %94 = tpu.dynamic_rotate %83 by %c23_i32_55 dim 1 : vector<10x24x8xf32>, i32 -> vector<10x24x8xf32>
    %cst_56 = arith.constant 0.000000e+00 : f32
    %95 = vector.shape_cast %93 : vector<10x24x1xi1> to vector<10x24x1xi1>
    %96 = vector.broadcast %95 : vector<10x24x1xi1> to vector<10x24x8xi1>
    %97 = vector.broadcast %cst_56 : f32 to vector<10x24x8xf32>
    %98 = arith.select %96, %94, %97 : vector<10x24x8xi1>, vector<10x24x8xf32>
    %99 = tpu.concatenate %91, %83, %98 in 2 : vector<10x24x8xf32>, vector<10x24x8xf32>, vector<10x24x8xf32> -> vector<10x24x24xf32>
    %c0_57 = arith.constant 0 : index
    %c0_58 = arith.constant 0 : index
    %c0_59 = arith.constant 0 : index
    %100 = vector.load %arg17[%c0_57, %c0_58, %c0_59] : memref<10x24x24xf32, #tpu.memory_space<vmem>>, vector<10x24x24xf32>
    tpu.vector_store %arg17[%c0_57, %c0_58, %c0_59], %99 {strides = array<i32>} : memref<10x24x24xf32, #tpu.memory_space<vmem>>, vector<10x24x24xf32>,
    %c0_i32_60 = arith.constant 0 : i32
    %101 = arith.cmpi eq, %arg1, %c0_i32_60 : i32
    %102 = arith.extui %101 : i1 to i32
    %c0_i32_61 = arith.constant 0 : i32
    %103 = arith.cmpi ne, %102, %c0_i32_61 : i32
    scf.if %103 {
      %cst_97 = arith.constant 0.000000e+00 : f32
      %143 = vector.broadcast %cst_97 : f32 to vector<1x24x24xf32>
      %c0_98 = arith.constant 0 : index
      %c0_99 = arith.constant 0 : index
      %c0_100 = arith.constant 0 : index
      %144 = vector.load %arg17[%c0_98, %c0_99, %c0_100] : memref<10x24x24xf32, #tpu.memory_space<vmem>>, vector<1x24x24xf32>
      tpu.vector_store %arg17[%c0_98, %c0_99, %c0_100], %143 {strides = array<i32>} : memref<10x24x24xf32, #tpu.memory_space<vmem>>, vector<1x24x24xf32>,
    } else {
    }
    %c2_i32_62 = arith.constant 2 : i32
    %104 = arith.cmpi eq, %arg1, %c2_i32_62 : i32
    %105 = arith.extui %104 : i1 to i32
    %c0_i32_63 = arith.constant 0 : i32
    %106 = arith.cmpi ne, %105, %c0_i32_63 : i32
    scf.if %106 {
      %cst_97 = arith.constant 0.000000e+00 : f32
      %143 = vector.broadcast %cst_97 : f32 to vector<1x24x24xf32>
      %c9 = arith.constant 9 : index
      %c0_98 = arith.constant 0 : index
      %c0_99 = arith.constant 0 : index
      %144 = vector.load %arg17[%c9, %c0_98, %c0_99] : memref<10x24x24xf32, #tpu.memory_space<vmem>>, vector<1x24x24xf32>
      tpu.vector_store %arg17[%c9, %c0_98, %c0_99], %143 {strides = array<i32>} : memref<10x24x24xf32, #tpu.memory_space<vmem>>, vector<1x24x24xf32>,
    } else {
    }
    %107 = vector.extract_strided_slice %1 {offsets = [2, 0, 0], sizes = [8, 24, 16], strides = [1, 1, 1]} : vector<12x24x16xf32> to vector<8x24x16xf32>
    %108 = vector.shape_cast %107 : vector<8x24x16xf32> to vector<192x16xf32>
    %c0_64 = arith.constant 0 : index
    %c0_65 = arith.constant 0 : index
    %109 = vector.load %arg6[%c0_64, %c0_65] : memref<16x8xf32, #tpu.memory_space<vmem>>, vector<16x8xf32>
    %cst_66 = arith.constant dense<0.000000e+00> : vector<192x8xf32>
    %110 = tpu.matmul %108, %109, %cst_66 {dimension_numbers = #tpu.dot_dimension_numbers<[1], [0], [0], [1], [0, 0, 1, 1], [], []>} : vector<192x16xf32>, vector<16x8xf32>, vector<192x8xf32> -> vector<192x8xf32>
    %111 = vector.extract_strided_slice %3 {offsets = [2, 0, 0], sizes = [8, 24, 8], strides = [1, 1, 1]} : vector<12x24x8xf32> to vector<8x24x8xf32>
    %112 = vector.shape_cast %111 : vector<8x24x8xf32> to vector<192x8xf32>
    %c0_67 = arith.constant 0 : index
    %c0_68 = arith.constant 0 : index
    %113 = vector.load %arg7[%c0_67, %c0_68] : memref<8x8xf32, #tpu.memory_space<vmem>>, vector<8x8xf32>
    %cst_69 = arith.constant dense<0.000000e+00> : vector<192x8xf32>
    %114 = tpu.matmul %112, %113, %cst_69 {dimension_numbers = #tpu.dot_dimension_numbers<[1], [0], [0], [1], [0, 0, 1, 1], [], []>} : vector<192x8xf32>, vector<8x8xf32>, vector<192x8xf32> -> vector<192x8xf32>
    %115 = arith.addf %110, %114 : vector<192x8xf32>
    %c0_70 = arith.constant 0 : index
    %c0_71 = arith.constant 0 : index
    %c0_72 = arith.constant 0 : index
    %116 = vector.load %arg17[%c0_70, %c0_71, %c0_72] : memref<10x24x24xf32, #tpu.memory_space<vmem>>, vector<8x24x24xf32>
    %117 = vector.shape_cast %116 : vector<8x24x24xf32> to vector<192x24xf32>
    %c0_73 = arith.constant 0 : index
    %c0_74 = arith.constant 0 : index
    %c0_75 = arith.constant 0 : index
    %118 = vector.load %arg5[%c0_73, %c0_74, %c0_75] : memref<3x24x8xf32, #tpu.memory_space<vmem>>, vector<1x24x8xf32>
    %119 = vector.shape_cast %118 : vector<1x24x8xf32> to vector<24x8xf32>
    %cst_76 = arith.constant dense<0.000000e+00> : vector<192x8xf32>
    %120 = tpu.matmul %117, %119, %cst_76 {dimension_numbers = #tpu.dot_dimension_numbers<[1], [0], [0], [1], [0, 0, 1, 1], [], []>} : vector<192x24xf32>, vector<24x8xf32>, vector<192x8xf32> -> vector<192x8xf32>
    %121 = arith.addf %115, %120 : vector<192x8xf32>
    %c1_77 = arith.constant 1 : index
    %c0_78 = arith.constant 0 : index
    %c0_79 = arith.constant 0 : index
    %122 = vector.load %arg17[%c1_77, %c0_78, %c0_79] : memref<10x24x24xf32, #tpu.memory_space<vmem>>, vector<8x24x24xf32>
    %123 = vector.shape_cast %122 : vector<8x24x24xf32> to vector<192x24xf32>
    %c1_80 = arith.constant 1 : index
    %c0_81 = arith.constant 0 : index
    %c0_82 = arith.constant 0 : index
    %124 = vector.load %arg5[%c1_80, %c0_81, %c0_82] : memref<3x24x8xf32, #tpu.memory_space<vmem>>, vector<1x24x8xf32>
    %125 = vector.shape_cast %124 : vector<1x24x8xf32> to vector<24x8xf32>
    %cst_83 = arith.constant dense<0.000000e+00> : vector<192x8xf32>
    %126 = tpu.matmul %123, %125, %cst_83 {dimension_numbers = #tpu.dot_dimension_numbers<[1], [0], [0], [1], [0, 0, 1, 1], [], []>} : vector<192x24xf32>, vector<24x8xf32>, vector<192x8xf32> -> vector<192x8xf32>
    %127 = arith.addf %121, %126 : vector<192x8xf32>
    %c2_84 = arith.constant 2 : index
    %c0_85 = arith.constant 0 : index
    %c0_86 = arith.constant 0 : index
    %128 = vector.load %arg17[%c2_84, %c0_85, %c0_86] : memref<10x24x24xf32, #tpu.memory_space<vmem>>, vector<8x24x24xf32>
    %129 = vector.shape_cast %128 : vector<8x24x24xf32> to vector<192x24xf32>
    %c2_87 = arith.constant 2 : index
    %c0_88 = arith.constant 0 : index
    %c0_89 = arith.constant 0 : index
    %130 = vector.load %arg5[%c2_87, %c0_88, %c0_89] : memref<3x24x8xf32, #tpu.memory_space<vmem>>, vector<1x24x8xf32>
    %131 = vector.shape_cast %130 : vector<1x24x8xf32> to vector<24x8xf32>
    %cst_90 = arith.constant dense<0.000000e+00> : vector<192x8xf32>
    %132 = tpu.matmul %129, %131, %cst_90 {dimension_numbers = #tpu.dot_dimension_numbers<[1], [0], [0], [1], [0, 0, 1, 1], [], []>} : vector<192x24xf32>, vector<24x8xf32>, vector<192x8xf32> -> vector<192x8xf32>
    %133 = arith.addf %127, %132 : vector<192x8xf32>
    %c0_91 = arith.constant 0 : index
    %c0_92 = arith.constant 0 : index
    %134 = vector.load %arg8[%c0_91, %c0_92] : memref<1x8xf32, #tpu.memory_space<vmem>>, vector<1x8xf32>
    %135 = vector.shape_cast %134 : vector<1x8xf32> to vector<8xf32>
    %136 = vector.shape_cast %135 : vector<8xf32> to vector<1x8xf32>
    %137 = vector.broadcast %136 : vector<1x8xf32> to vector<192x8xf32>
    %138 = arith.addf %133, %137 : vector<192x8xf32>
    %139 = vector.shape_cast %138 : vector<192x8xf32> to vector<8x24x8xf32>
    %c0_93 = arith.constant 0 : index
    %c0_94 = arith.constant 0 : index
    %c0_95 = arith.constant 0 : index
    %c0_96 = arith.constant 0 : index
    %140 = vector.load %arg15[%c0_93, %c0_94, %c0_95, %c0_96] : memref<1x8x24x8xf32, #tpu.memory_space<vmem>>, vector<1x8x24x8xf32>
    %141 = vector.shape_cast %140 : vector<1x8x24x8xf32> to vector<8x24x8xf32>
    %142 = vector.shape_cast %139 : vector<8x24x8xf32> to vector<1x8x24x8xf32>
    tpu.vector_store %arg15[%c0_93, %c0_94, %c0_95, %c0_96], %142 {strides = array<i32>} : memref<1x8x24x8xf32, #tpu.memory_space<vmem>>, vector<1x8x24x8xf32>,
    return
  }
  func.func @transform_0(%arg0: i32, %arg1: i32) -> (i32, i32, i32, i32, i32) {
    %c0_i32 = arith.constant 0 : i32
    %c0_i32_0 = arith.constant 0 : i32
    %c0_i32_1 = arith.constant 0 : i32
    %c0_i32_2 = arith.constant 0 : i32
    return %arg0, %arg1, %c0_i32, %c0_i32_0, %c0_i32_1 : i32, i32, i32, i32, i32
  }
  func.func @transform_1(%arg0: i32, %arg1: i32) -> (i32, i32, i32, i32, i32) {
    %c0_i32 = arith.constant 0 : i32
    %c0_i32_0 = arith.constant 0 : i32
    %c0_i32_1 = arith.constant 0 : i32
    %c0_i32_2 = arith.constant 0 : i32
    return %arg0, %arg1, %c0_i32, %c0_i32_0, %c0_i32_1 : i32, i32, i32, i32, i32
  }
  func.func @transform_2(%arg0: i32, %arg1: i32) -> (i32, i32, i32) {
    %c0_i32 = arith.constant 0 : i32
    %c0_i32_0 = arith.constant 0 : i32
    %c0_i32_1 = arith.constant 0 : i32
    %c0_i32_2 = arith.constant 0 : i32
    return %c0_i32, %c0_i32_0, %c0_i32_1 : i32, i32, i32
  }
  func.func @transform_3(%arg0: i32, %arg1: i32) -> (i32, i32, i32) {
    %c0_i32 = arith.constant 0 : i32
    %c0_i32_0 = arith.constant 0 : i32
    %c0_i32_1 = arith.constant 0 : i32
    %c0_i32_2 = arith.constant 0 : i32
    return %c0_i32, %c0_i32_0, %c0_i32_1 : i32, i32, i32
  }
  func.func @transform_4(%arg0: i32, %arg1: i32) -> (i32, i32) {
    %c0_i32 = arith.constant 0 : i32
    %c0_i32_0 = arith.constant 0 : i32
    %c0_i32_1 = arith.constant 0 : i32
    return %c0_i32, %c0_i32_0 : i32, i32
  }
  func.func @transform_5(%arg0: i32, %arg1: i32) -> (i32, i32) {
    %c0_i32 = arith.constant 0 : i32
    %c0_i32_0 = arith.constant 0 : i32
    %c0_i32_1 = arith.constant 0 : i32
    return %c0_i32, %c0_i32_0 : i32, i32
  }
  func.func @transform_6(%arg0: i32, %arg1: i32) -> (i32, i32) {
    %c0_i32 = arith.constant 0 : i32
    %c0_i32_0 = arith.constant 0 : i32
    %c0_i32_1 = arith.constant 0 : i32
    return %c0_i32, %c0_i32_0 : i32, i32
  }
  func.func @transform_7(%arg0: i32, %arg1: i32) -> (i32, i32) {
    %c0_i32 = arith.constant 0 : i32
    %c0_i32_0 = arith.constant 0 : i32
    %c0_i32_1 = arith.constant 0 : i32
    return %c0_i32, %c0_i32_0 : i32, i32
  }
  func.func @transform_8(%arg0: i32, %arg1: i32) -> (i32, i32) {
    %c0_i32 = arith.constant 0 : i32
    %c0_i32_0 = arith.constant 0 : i32
    %c0_i32_1 = arith.constant 0 : i32
    return %c0_i32, %c0_i32_0 : i32, i32
  }
  func.func @transform_9(%arg0: i32, %arg1: i32) -> (i32, i32) {
    %c0_i32 = arith.constant 0 : i32
    %c0_i32_0 = arith.constant 0 : i32
    %c0_i32_1 = arith.constant 0 : i32
    return %c0_i32, %c0_i32_0 : i32, i32
  }
  func.func @transform_10(%arg0: i32, %arg1: i32) -> (i32, i32) {
    %c0_i32 = arith.constant 0 : i32
    %c0_i32_0 = arith.constant 0 : i32
    %c0_i32_1 = arith.constant 0 : i32
    return %c0_i32, %c0_i32_0 : i32, i32
  }
  func.func @transform_11(%arg0: i32, %arg1: i32) -> (i32, i32) {
    %c0_i32 = arith.constant 0 : i32
    %c0_i32_0 = arith.constant 0 : i32
    %c0_i32_1 = arith.constant 0 : i32
    return %c0_i32, %c0_i32_0 : i32, i32
  }
  func.func @transform_12(%arg0: i32, %arg1: i32) -> (i32, i32) {
    %c0_i32 = arith.constant 0 : i32
    %c0_i32_0 = arith.constant 0 : i32
    %c0_i32_1 = arith.constant 0 : i32
    return %c0_i32, %c0_i32_0 : i32, i32
  }
  func.func @transform_13(%arg0: i32, %arg1: i32) -> (i32, i32, i32, i32) {
    %c0_i32 = arith.constant 0 : i32
    %c0_i32_0 = arith.constant 0 : i32
    %c0_i32_1 = arith.constant 0 : i32
    return %arg0, %arg1, %c0_i32, %c0_i32_0 : i32, i32, i32, i32
  }
}

</mosaic_0001>

<llo_original>
// kernel: tpu_custom_call.1
$region0: #{tpu_custom_call.1}
  #allocation0 [shape = 'u32[]', space=smem, size = 0x4, offset = 0x4, fixed_abs, tag = 'smem constant byte address 0x4 - core index']
  #allocation1 [shape = 'u32[144,128]{1,0:T(1,128)}', space=vmem, size = 0x12000, scoped, tag = 'internal scratch']
  #allocation2 [shape = 'f32[12,24,72]{2,1,0:T(8,128)}', space=vmem, size = 0x24000, scoped, tag = 'scratch operand']
  #allocation3 [shape = 'f32[10,24,24]{2,1,0:T(8,128)}', space=vmem, size = 0x1e000, scoped, tag = 'scratch operand']
  %s0 = inlined_call_operand.vmem [shape: f32[2,3,12,24,16], index: 0, kind: input, shape index: {}]
  %s1 = inlined_call_operand.vmem [shape: f32[2,3,12,24,8], index: 1, kind: input, shape index: {}]
  %s2 = inlined_call_operand.vmem [shape: f32[3,72,8], index: 2, kind: input, shape index: {}]
  %s3 = inlined_call_operand.vmem [shape: f32[3,24,8], index: 3, kind: input, shape index: {}]
  %s4 = inlined_call_operand.vmem [shape: f32[16,8], index: 4, kind: input, shape index: {}]
  %s5 = inlined_call_operand.vmem [shape: f32[8,8], index: 5, kind: input, shape index: {}]
  %s6 = inlined_call_operand.vmem [shape: f32[1,8], index: 6, kind: input, shape index: {}]
  %s7 = inlined_call_operand.vmem [shape: f32[1,16], index: 7, kind: input, shape index: {}]
  %s8 = inlined_call_operand.vmem [shape: f32[1,16], index: 8, kind: input, shape index: {}]
  %s9 = inlined_call_operand.vmem [shape: f32[1,8], index: 9, kind: input, shape index: {}]
  %s10 = inlined_call_operand.vmem [shape: f32[1,8], index: 10, kind: input, shape index: {}]
  %s11 = inlined_call_operand.vmem [shape: f32[1,8], index: 11, kind: input, shape index: {}]
  %s12 = inlined_call_operand.vmem [shape: f32[1,8], index: 12, kind: input, shape index: {}]
  %s13 = inlined_call_operand.vmem [shape: f32[2,24,24,8], index: 13, kind: output, shape index: {}]
  %s14 = sld [smem:[#allocation0]]
  $region101: #{tpu_custom_call.1} parent=0
    _
  %s16 = ssub.s32 1, %s14
  %s17 = scalar_select 0, %s16, %s14
  loop: start=0, step=1, limit=8
  $region2: #{tpu_custom_call.1} parent=0 // loop_pre_header
    _
  $region3: #{tpu_custom_call.1} parent=0 // loop_header
    %s19 = sphi 0, %s23
    %p20 = scmp.ge.s32.totalorder %s19, 8
    %s26 = sphi 0, %s38
    %s27 = sphi 0, %s34
    %s28 = sphi 0, %s26
    %s29 = sphi 0, %s27
    %s30 = sphi 0, %s28
    %s31 = sphi 0, %s29
    %s43 = sphi 0, %s45
    %s46 = sphi 0, %s43
    %s47 = sphi 0, %s46
    %s63 = sphi 0, %s47
    %s71 = sphi 0, %s73
    %s74 = sphi 0, %s71
    %s75 = sphi 0, %s74
    %s91 = sphi 0, %s75
    %s95 = sphi 0, %s95
    %s97 = sphi 0, %s95
    %s98 = sphi 0, %s97
    %s112 = sphi 0, %s98
    %s116 = sphi 0, %s116
    %s118 = sphi 0, %s116
    %s119 = sphi 0, %s118
    %s133 = sphi 0, %s119
    %s137 = sphi 0, %s137
    %s139 = sphi 0, %s137
    %s140 = sphi 0, %s139
    %s154 = sphi 0, %s140
    %s158 = sphi 0, %s158
    %s160 = sphi 0, %s158
    %s161 = sphi 0, %s160
    %s175 = sphi 0, %s161
    %s179 = sphi 0, %s179
    %s181 = sphi 0, %s179
    %s182 = sphi 0, %s181
    %s196 = sphi 0, %s182
    %s200 = sphi 0, %s200
    %s202 = sphi 0, %s200
    %s203 = sphi 0, %s202
    %s217 = sphi 0, %s203
    %s221 = sphi 0, %s221
    %s223 = sphi 0, %s221
    %s224 = sphi 0, %s223
    %s238 = sphi 0, %s224
    %s242 = sphi 0, %s242
    %s244 = sphi 0, %s242
    %s245 = sphi 0, %s244
    %s259 = sphi 0, %s245
    %s263 = sphi 0, %s263
    %s265 = sphi 0, %s263
    %s266 = sphi 0, %s265
    %s280 = sphi 0, %s266
    %s284 = sphi 0, %s284
    %s286 = sphi 0, %s284
    %s287 = sphi 0, %s286
    %s301 = sphi 0, %s287
    %s305 = sphi 0, %s305
    %s307 = sphi 0, %s305
    %s308 = sphi 0, %s307
    %s322 = sphi 0, %s308
    %s330 = sphi 0, %s332
    %s333 = sphi 0, %s330
    %s334 = sphi 0, %s333
    %s350 = sphi 0, %s334
  $region4: #{tpu_custom_call.1} parent=0 // loop_header_branch
    %22 = sbr.rel (%p20) target = $region8
  $region5: #{tpu_custom_call.1} parent=0 // loop_body
    %s24 = ssub.s32 %s19, 1
    %s25 = ssub.s32 %s19, 2
    %s32 = sadd.s32 1, %s27
    %p33 = scmp.ge.s32.totalorder %s32, 3
    %s34 = scalar_select %p33, 0, %s32
    %s35 = sadd.s32 1, %s26
    %s36 = scalar_select %p33, %s35, %s26
    %p37 = scmp.ge.s32.totalorder %s36, 2
    %s38 = scalar_select %p37, 0, %s36
    %s39 = ssub.s32 %s26, %s38
    %s40 = ssub.s32 %s27, %s34
    %s41 = sor.u32 %s39, %s40
    %p42 = scmp.eq.s32.totalorder %s41, 0
    %s44 = sadd.s32 %s43, 1
    %s45 = scalar_select %p42, %s43, %s44
    %p48 = pneg %p42
    %p49 = scmp.eq.s32.totalorder %s19, 5
    %p50 = por %p48, %p49
    %p51 = scmp.ne.s32.totalorder %s43, %s46
    %p52 = scmp.eq.s32.totalorder %s19, 0
    %p53 = por %p51, %p52
    %p54 = scmp.ne.s32.totalorder %s43, %s46
    %p55 = scmp.eq.s32.totalorder %s24, 5
    %p56 = por %p54, %p55
    %p57 = scmp.ne.s32.totalorder %s46, %s47
    %p58 = scmp.eq.s32.totalorder %s24, 0
    %p59 = por %p57, %p58
    %p60 = scmp.ne.s32.totalorder %s46, %s47
    %p61 = scmp.eq.s32.totalorder %s25, 5
    %p62 = por %p60, %p61
    %p64 = scmp.ne.s32.totalorder %s47, %s63
    %p65 = scmp.eq.s32.totalorder %s25, 0
    %p66 = por %p64, %p65
    %s67 = ssub.s32 %s26, %s38
    %s68 = ssub.s32 %s27, %s34
    %s69 = sor.u32 %s67, %s68
    %p70 = scmp.eq.s32.totalorder %s69, 0
    %s72 = sadd.s32 %s71, 1
    %s73 = scalar_select %p70, %s71, %s72
    %p76 = pneg %p70
    %p77 = scmp.eq.s32.totalorder %s19, 5
    %p78 = por %p76, %p77
    %p79 = scmp.ne.s32.totalorder %s71, %s74
    %p80 = scmp.eq.s32.totalorder %s19, 0
    %p81 = por %p79, %p80
    %p82 = scmp.ne.s32.totalorder %s71, %s74
    %p83 = scmp.eq.s32.totalorder %s24, 5
    %p84 = por %p82, %p83
    %p85 = scmp.ne.s32.totalorder %s74, %s75
    %p86 = scmp.eq.s32.totalorder %s24, 0
    %p87 = por %p85, %p86
    %p88 = scmp.ne.s32.totalorder %s74, %s75
    %p89 = scmp.eq.s32.totalorder %s25, 5
    %p90 = por %p88, %p89
    %p92 = scmp.ne.s32.totalorder %s75, %s91
    %p93 = scmp.eq.s32.totalorder %s25, 0
    %p94 = por %p92, %p93
    %s96 = sadd.s32 %s95, 1
    %p99 = scmp.eq.s32.totalorder %s19, 5
    %p100 = scmp.ne.s32.totalorder %s95, %s97
    %p101 = scmp.eq.s32.totalorder %s19, 0
    %p102 = por %p100, %p101
    %p103 = scmp.ne.s32.totalorder %s95, %s97
    %p104 = scmp.eq.s32.totalorder %s24, 5
    %p105 = por %p103, %p104
    %p106 = scmp.ne.s32.totalorder %s97, %s98
    %p107 = scmp.eq.s32.totalorder %s24, 0
    %p108 = por %p106, %p107
    %p109 = scmp.ne.s32.totalorder %s97, %s98
    %p110 = scmp.eq.s32.totalorder %s25, 5
    %p111 = por %p109, %p110
    %p113 = scmp.ne.s32.totalorder %s98, %s112
    %p114 = scmp.eq.s32.totalorder %s25, 0
    %p115 = por %p113, %p114
    %s117 = sadd.s32 %s116, 1
    %p120 = scmp.eq.s32.totalorder %s19, 5
    %p121 = scmp.ne.s32.totalorder %s116, %s118
    %p122 = scmp.eq.s32.totalorder %s19, 0
    %p123 = por %p121, %p122
    %p124 = scmp.ne.s32.totalorder %s116, %s118
    %p125 = scmp.eq.s32.totalorder %s24, 5
    %p126 = por %p124, %p125
    %p127 = scmp.ne.s32.totalorder %s118, %s119
    %p128 = scmp.eq.s32.totalorder %s24, 0
    %p129 = por %p127, %p128
    %p130 = scmp.ne.s32.totalorder %s118, %s119
    %p131 = scmp.eq.s32.totalorder %s25, 5
    %p132 = por %p130, %p131
    %p134 = scmp.ne.s32.totalorder %s119, %s133
    %p135 = scmp.eq.s32.totalorder %s25, 0
    %p136 = por %p134, %p135
    %s138 = sadd.s32 %s137, 1
    %p141 = scmp.eq.s32.totalorder %s19, 5
    %p142 = scmp.ne.s32.totalorder %s137, %s139
    %p143 = scmp.eq.s32.totalorder %s19, 0
    %p144 = por %p142, %p143
    %p145 = scmp.ne.s32.totalorder %s137, %s139
    %p146 = scmp.eq.s32.totalorder %s24, 5
    %p147 = por %p145, %p146
    %p148 = scmp.ne.s32.totalorder %s139, %s140
    %p149 = scmp.eq.s32.totalorder %s24, 0
    %p150 = por %p148, %p149
    %p151 = scmp.ne.s32.totalorder %s139, %s140
    %p152 = scmp.eq.s32.totalorder %s25, 5
    %p153 = por %p151, %p152
    %p155 = scmp.ne.s32.totalorder %s140, %s154
    %p156 = scmp.eq.s32.totalorder %s25, 0
    %p157 = por %p155, %p156
    %s159 = sadd.s32 %s158, 1
    %p162 = scmp.eq.s32.totalorder %s19, 5
    %p163 = scmp.ne.s32.totalorder %s158, %s160
    %p164 = scmp.eq.s32.totalorder %s19, 0
    %p165 = por %p163, %p164
    %p166 = scmp.ne.s32.totalorder %s158, %s160
    %p167 = scmp.eq.s32.totalorder %s24, 5
    %p168 = por %p166, %p167
    %p169 = scmp.ne.s32.totalorder %s160, %s161
    %p170 = scmp.eq.s32.totalorder %s24, 0
    %p171 = por %p169, %p170
    %p172 = scmp.ne.s32.totalorder %s160, %s161
    %p173 = scmp.eq.s32.totalorder %s25, 5
    %p174 = por %p172, %p173
    %p176 = scmp.ne.s32.totalorder %s161, %s175
    %p177 = scmp.eq.s32.totalorder %s25, 0
    %p178 = por %p176, %p177
    %s180 = sadd.s32 %s179, 1
    %p183 = scmp.eq.s32.totalorder %s19, 5
    %p184 = scmp.ne.s32.totalorder %s179, %s181
    %p185 = scmp.eq.s32.totalorder %s19, 0
    %p186 = por %p184, %p185
    %p187 = scmp.ne.s32.totalorder %s179, %s181
    %p188 = scmp.eq.s32.totalorder %s24, 5
    %p189 = por %p187, %p188
    %p190 = scmp.ne.s32.totalorder %s181, %s182
    %p191 = scmp.eq.s32.totalorder %s24, 0
    %p192 = por %p190, %p191
    %p193 = scmp.ne.s32.totalorder %s181, %s182
    %p194 = scmp.eq.s32.totalorder %s25, 5
    %p195 = por %p193, %p194
    %p197 = scmp.ne.s32.totalorder %s182, %s196
    %p198 = scmp.eq.s32.totalorder %s25, 0
    %p199 = por %p197, %p198
    %s201 = sadd.s32 %s200, 1
    %p204 = scmp.eq.s32.totalorder %s19, 5
    %p205 = scmp.ne.s32.totalorder %s200, %s202
    %p206 = scmp.eq.s32.totalorder %s19, 0
    %p207 = por %p205, %p206
    %p208 = scmp.ne.s32.totalorder %s200, %s202
    %p209 = scmp.eq.s32.totalorder %s24, 5
    %p210 = por %p208, %p209
    %p211 = scmp.ne.s32.totalorder %s202, %s203
    %p212 = scmp.eq.s32.totalorder %s24, 0
    %p213 = por %p211, %p212
    %p214 = scmp.ne.s32.totalorder %s202, %s203
    %p215 = scmp.eq.s32.totalorder %s25, 5
    %p216 = por %p214, %p215
    %p218 = scmp.ne.s32.totalorder %s203, %s217
    %p219 = scmp.eq.s32.totalorder %s25, 0
    %p220 = por %p218, %p219
    %s222 = sadd.s32 %s221, 1
    %p225 = scmp.eq.s32.totalorder %s19, 5
    %p226 = scmp.ne.s32.totalorder %s221, %s223
    %p227 = scmp.eq.s32.totalorder %s19, 0
    %p228 = por %p226, %p227
    %p229 = scmp.ne.s32.totalorder %s221, %s223
    %p230 = scmp.eq.s32.totalorder %s24, 5
    %p231 = por %p229, %p230
    %p232 = scmp.ne.s32.totalorder %s223, %s224
    %p233 = scmp.eq.s32.totalorder %s24, 0
    %p234 = por %p232, %p233
    %p235 = scmp.ne.s32.totalorder %s223, %s224
    %p236 = scmp.eq.s32.totalorder %s25, 5
    %p237 = por %p235, %p236
    %p239 = scmp.ne.s32.totalorder %s224, %s238
    %p240 = scmp.eq.s32.totalorder %s25, 0
    %p241 = por %p239, %p240
    %s243 = sadd.s32 %s242, 1
    %p246 = scmp.eq.s32.totalorder %s19, 5
    %p247 = scmp.ne.s32.totalorder %s242, %s244
    %p248 = scmp.eq.s32.totalorder %s19, 0
    %p249 = por %p247, %p248
    %p250 = scmp.ne.s32.totalorder %s242, %s244
    %p251 = scmp.eq.s32.totalorder %s24, 5
    %p252 = por %p250, %p251
    %p253 = scmp.ne.s32.totalorder %s244, %s245
    %p254 = scmp.eq.s32.totalorder %s24, 0
    %p255 = por %p253, %p254
    %p256 = scmp.ne.s32.totalorder %s244, %s245
    %p257 = scmp.eq.s32.totalorder %s25, 5
    %p258 = por %p256, %p257
    %p260 = scmp.ne.s32.totalorder %s245, %s259
    %p261 = scmp.eq.s32.totalorder %s25, 0
    %p262 = por %p260, %p261
    %s264 = sadd.s32 %s263, 1
    %p267 = scmp.eq.s32.totalorder %s19, 5
    %p268 = scmp.ne.s32.totalorder %s263, %s265
    %p269 = scmp.eq.s32.totalorder %s19, 0
    %p270 = por %p268, %p269
    %p271 = scmp.ne.s32.totalorder %s263, %s265
    %p272 = scmp.eq.s32.totalorder %s24, 5
    %p273 = por %p271, %p272
    %p274 = scmp.ne.s32.totalorder %s265, %s266
    %p275 = scmp.eq.s32.totalorder %s24, 0
    %p276 = por %p274, %p275
    %p277 = scmp.ne.s32.totalorder %s265, %s266
    %p278 = scmp.eq.s32.totalorder %s25, 5
    %p279 = por %p277, %p278
    %p281 = scmp.ne.s32.totalorder %s266, %s280
    %p282 = scmp.eq.s32.totalorder %s25, 0
    %p283 = por %p281, %p282
    %s285 = sadd.s32 %s284, 1
    %p288 = scmp.eq.s32.totalorder %s19, 5
    %p289 = scmp.ne.s32.totalorder %s284, %s286
    %p290 = scmp.eq.s32.totalorder %s19, 0
    %p291 = por %p289, %p290
    %p292 = scmp.ne.s32.totalorder %s284, %s286
    %p293 = scmp.eq.s32.totalorder %s24, 5
    %p294 = por %p292, %p293
    %p295 = scmp.ne.s32.totalorder %s286, %s287
    %p296 = scmp.eq.s32.totalorder %s24, 0
    %p297 = por %p295, %p296
    %p298 = scmp.ne.s32.totalorder %s286, %s287
    %p299 = scmp.eq.s32.totalorder %s25, 5
    %p300 = por %p298, %p299
    %p302 = scmp.ne.s32.totalorder %s287, %s301
    %p303 = scmp.eq.s32.totalorder %s25, 0
    %p304 = por %p302, %p303
    %s306 = sadd.s32 %s305, 1
    %p309 = scmp.eq.s32.totalorder %s19, 5
    %p310 = scmp.ne.s32.totalorder %s305, %s307
    %p311 = scmp.eq.s32.totalorder %s19, 0
    %p312 = por %p310, %p311
    %p313 = scmp.ne.s32.totalorder %s305, %s307
    %p314 = scmp.eq.s32.totalorder %s24, 5
    %p315 = por %p313, %p314
    %p316 = scmp.ne.s32.totalorder %s307, %s308
    %p317 = scmp.eq.s32.totalorder %s24, 0
    %p318 = por %p316, %p317
    %p319 = scmp.ne.s32.totalorder %s307, %s308
    %p320 = scmp.eq.s32.totalorder %s25, 5
    %p321 = por %p319, %p320
    %p323 = scmp.ne.s32.totalorder %s308, %s322
    %p324 = scmp.eq.s32.totalorder %s25, 0
    %p325 = por %p323, %p324
    %s326 = ssub.s32 %s26, %s38
    %s327 = ssub.s32 %s27, %s34
    %s328 = sor.u32 %s326, %s327
    %p329 = scmp.eq.s32.totalorder %s328, 0
    %s331 = sadd.s32 %s330, 1
    %s332 = scalar_select %p329, %s330, %s331
    %p335 = pneg %p329
    %p336 = scmp.eq.s32.totalorder %s19, 5
    %p337 = por %p335, %p336
    %p338 = scmp.ne.s32.totalorder %s330, %s333
    %p339 = scmp.eq.s32.totalorder %s19, 0
    %p340 = por %p338, %p339
    %p341 = scmp.ne.s32.totalorder %s330, %s333
    %p342 = scmp.eq.s32.totalorder %s24, 5
    %p343 = por %p341, %p342
    %p344 = scmp.ne.s32.totalorder %s333, %s334
    %p345 = scmp.eq.s32.totalorder %s24, 0
    %p346 = por %p344, %p345
    %p347 = scmp.ne.s32.totalorder %s333, %s334
    %p348 = scmp.eq.s32.totalorder %s25, 5
    %p349 = por %p347, %p348
    %p351 = scmp.ne.s32.totalorder %s334, %s350
    %p352 = scmp.eq.s32.totalorder %s25, 0
    %p353 = por %p351, %p352
    %p354 = scmp.le.s32.totalorder 1, %s19
    %p355 = scmp.lt.s32.totalorder %s19, 7
    %p356 = pnand %p354, %p355
    %p357 = pneg %p356
    // Predicated region
    $region9: #{tpu_custom_call.1} parent=5 // pred_check
      _
    $region10: #{tpu_custom_call.1} parent=5 // pred_check_branch
      %359 = sbr.rel (%p356) target = $region12
    $region11: #{tpu_custom_call.1} parent=5 // pred_region
      %s360 = ssub.s32 %s19, 1
      // Predicated region
      $region13: #{tpu_custom_call.1} parent=11 // pred_check
        %p361 = pneg %p108
      $region14: #{tpu_custom_call.1} parent=11 // pred_check_branch
        %363 = sbr.rel (%p361) target = $region16
      $region15: #{tpu_custom_call.1} parent=11 // pred_region
        _
      $region16: #{tpu_custom_call.1} parent=11 // pred_fallthru
        _
      // Predicated region
      $region17: #{tpu_custom_call.1} parent=11 // pred_check
        %p364 = pneg %p129
      $region18: #{tpu_custom_call.1} parent=11 // pred_check_branch
        %366 = sbr.rel (%p364) target = $region20
      $region19: #{tpu_custom_call.1} parent=11 // pred_region
        _
      $region20: #{tpu_custom_call.1} parent=11 // pred_fallthru
        _
      // Predicated region
      $region21: #{tpu_custom_call.1} parent=11 // pred_check
        %p367 = pneg %p150
      $region22: #{tpu_custom_call.1} parent=11 // pred_check_branch
        %369 = sbr.rel (%p367) target = $region24
      $region23: #{tpu_custom_call.1} parent=11 // pred_region
        _
      $region24: #{tpu_custom_call.1} parent=11 // pred_fallthru
        _
      // Predicated region
      $region25: #{tpu_custom_call.1} parent=11 // pred_check
        %p370 = pneg %p171
      $region26: #{tpu_custom_call.1} parent=11 // pred_check_branch
        %372 = sbr.rel (%p370) target = $region28
      $region27: #{tpu_custom_call.1} parent=11 // pred_region
        _
      $region28: #{tpu_custom_call.1} parent=11 // pred_fallthru
        _
      // Predicated region
      $region29: #{tpu_custom_call.1} parent=11 // pred_check
        %p373 = pneg %p192
      $region30: #{tpu_custom_call.1} parent=11 // pred_check_branch
        %375 = sbr.rel (%p373) target = $region32
      $region31: #{tpu_custom_call.1} parent=11 // pred_region
        _
      $region32: #{tpu_custom_call.1} parent=11 // pred_fallthru
        _
      // Predicated region
      $region33: #{tpu_custom_call.1} parent=11 // pred_check
        %p376 = pneg %p213
      $region34: #{tpu_custom_call.1} parent=11 // pred_check_branch
        %378 = sbr.rel (%p376) target = $region36
      $region35: #{tpu_custom_call.1} parent=11 // pred_region
        _
      $region36: #{tpu_custom_call.1} parent=11 // pred_fallthru
        _
      // Predicated region
      $region37: #{tpu_custom_call.1} parent=11 // pred_check
        %p379 = pneg %p234
      $region38: #{tpu_custom_call.1} parent=11 // pred_check_branch
        %381 = sbr.rel (%p379) target = $region40
      $region39: #{tpu_custom_call.1} parent=11 // pred_region
        _
      $region40: #{tpu_custom_call.1} parent=11 // pred_fallthru
        _
      // Predicated region
      $region41: #{tpu_custom_call.1} parent=11 // pred_check
        %p382 = pneg %p255
      $region42: #{tpu_custom_call.1} parent=11 // pred_check_branch
        %384 = sbr.rel (%p382) target = $region44
      $region43: #{tpu_custom_call.1} parent=11 // pred_region
        _
      $region44: #{tpu_custom_call.1} parent=11 // pred_fallthru
        _
      // Predicated region
      $region45: #{tpu_custom_call.1} parent=11 // pred_check
        %p385 = pneg %p276
      $region46: #{tpu_custom_call.1} parent=11 // pred_check_branch
        %387 = sbr.rel (%p385) target = $region48
      $region47: #{tpu_custom_call.1} parent=11 // pred_region
        _
      $region48: #{tpu_custom_call.1} parent=11 // pred_fallthru
        _
      // Predicated region
      $region49: #{tpu_custom_call.1} parent=11 // pred_check
        %p388 = pneg %p297
      $region50: #{tpu_custom_call.1} parent=11 // pred_check_branch
        %390 = sbr.rel (%p388) target = $region52
      $region51: #{tpu_custom_call.1} parent=11 // pred_region
        _
      $region52: #{tpu_custom_call.1} parent=11 // pred_fallthru
        _
      // Predicated region
      $region53: #{tpu_custom_call.1} parent=11 // pred_check
        %p391 = pneg %p318
      $region54: #{tpu_custom_call.1} parent=11 // pred_check_branch
        %393 = sbr.rel (%p391) target = $region56
      $region55: #{tpu_custom_call.1} parent=11 // pred_region
        _
      $region56: #{tpu_custom_call.1} parent=11 // pred_fallthru
        _
    $region12: #{tpu_custom_call.1} parent=5 // pred_fallthru
      _
    %p394 = scmp.lt.s32.totalorder %s19, 6
    // Predicated region
    $region57: #{tpu_custom_call.1} parent=5 // pred_check
      %p395 = pneg %p394
    $region58: #{tpu_custom_call.1} parent=5 // pred_check_branch
      %397 = sbr.rel (%p395) target = $region60
    $region59: #{tpu_custom_call.1} parent=5 // pred_region
      // Predicated region
      $region61: #{tpu_custom_call.1} parent=59 // pred_check
        %p398 = pneg %p53
      $region62: #{tpu_custom_call.1} parent=59 // pred_check_branch
        %400 = sbr.rel (%p398) target = $region64
      $region63: #{tpu_custom_call.1} parent=59 // pred_region
        %p401 = scmp.lt.s32.totalorder %s26, 1
        %s402 = scalar_select %p401, %s26, 1
        %p403 = scmp.lt.s32.totalorder %s27, 2
        %s404 = scalar_select %p403, %s27, 2
        %s405 = smul.addr %s404, 36
        %s406 = smul.addr %s402, 108
        %s407 = sadd.s32 %s405, %s406
        %s408 = smul.addr %s407, 8
        %s409 = scalar_lea.vmem %s0, %s408
      $region64: #{tpu_custom_call.1} parent=59 // pred_fallthru
        _
      // Predicated region
      $region65: #{tpu_custom_call.1} parent=59 // pred_check
        %p410 = pneg %p81
      $region66: #{tpu_custom_call.1} parent=59 // pred_check_branch
        %412 = sbr.rel (%p410) target = $region68
      $region67: #{tpu_custom_call.1} parent=59 // pred_region
        %p413 = scmp.lt.s32.totalorder %s26, 1
        %s414 = scalar_select %p413, %s26, 1
        %p415 = scmp.lt.s32.totalorder %s27, 2
        %s416 = scalar_select %p415, %s27, 2
        %s417 = smul.addr %s416, 36
        %s418 = smul.addr %s414, 108
        %s419 = sadd.s32 %s417, %s418
        %s420 = smul.addr %s419, 8
        %s421 = scalar_lea.vmem %s1, %s420
      $region68: #{tpu_custom_call.1} parent=59 // pred_fallthru
        _
    $region60: #{tpu_custom_call.1} parent=5 // pred_fallthru
      _
    %p422 = scmp.le.s32.totalorder 1, %s19
    %p423 = scmp.lt.s32.totalorder %s19, 7
    %p424 = pnand %p422, %p423
    %p425 = pneg %p424
    // Predicated region
    $region69: #{tpu_custom_call.1} parent=5 // pred_check
      _
    $region70: #{tpu_custom_call.1} parent=5 // pred_check_branch
      %427 = sbr.rel (%p424) target = $region72
    $region71: #{tpu_custom_call.1} parent=5 // pred_region
      %s428 = ssub.s32 %s19, 1
      %p429 = scmp.lt.s32.totalorder %s28, 1
      %s430 = scalar_select %p429, %s28, 1
      %p431 = scmp.lt.s32.totalorder %s29, 2
      %s432 = scalar_select %p431, %s29, 2
      %s433 = smul.addr %s432, 36
      %s434 = smul.addr %s430, 108
      %s435 = sadd.s32 %s433, %s434
      %s436 = smul.addr %s435, 8
      %s437 = scalar_lea.vmem %s0, %s436
      %p438 = pneg %p59
      %p439 = pneg %p56
      %p440 = scmp.lt.s32.totalorder %s28, 1
      %s441 = scalar_select %p440, %s28, 1
      %p442 = scmp.lt.s32.totalorder %s29, 2
      %s443 = scalar_select %p442, %s29, 2
      %s444 = smul.addr %s443, 36
      %s445 = smul.addr %s441, 108
      %s446 = sadd.s32 %s444, %s445
      %s447 = smul.addr %s446, 8
      %s448 = scalar_lea.vmem %s1, %s447
      %p449 = pneg %p87
      %p450 = pneg %p84
      %p451 = pneg %p108
      %p452 = pneg %p105
      %p453 = pneg %p129
      %p454 = pneg %p126
      %p455 = pneg %p150
      %p456 = pneg %p147
      %p457 = pneg %p171
      %p458 = pneg %p168
      %p459 = pneg %p192
      %p460 = pneg %p189
      %p461 = pneg %p213
      %p462 = pneg %p210
      %p463 = pneg %p234
      %p464 = pneg %p231
      %p465 = pneg %p255
      %p466 = pneg %p252
      %p467 = pneg %p276
      %p468 = pneg %p273
      %p469 = pneg %p297
      %p470 = pneg %p294
      %p471 = pneg %p318
      %p472 = pneg %p315
      %p473 = pneg %p346
      %p474 = pneg %p343
      %s475 = smul.u32 8, %s29
      %p476 = scmp.lt.s32.totalorder %s28, 1
      %s477 = scalar_select %p476, %s28, 1
      %p478 = scmp.lt.s32.totalorder %s475, 23
      %s479 = scalar_select %p478, %s475, 23
      %s480 = smul.addr %s479, 3
      %s481 = smul.addr %s477, 72
      %s482 = sadd.s32 %s480, %s481
      %s483 = smul.addr %s482, 8
      %s484 = scalar_lea.vmem %s13, %s483
      %p485 = scmp.lt.s32.totalorder %s28, 1
      %s486 = scalar_select %p485, %s28, 1
      %p487 = scmp.lt.s32.totalorder %s29, 2
      %s488 = scalar_select %p487, %s29, 2
      %s489 = smul.addr %s488, 36
      %s490 = smul.addr %s486, 108
      %s491 = sadd.s32 %s489, %s490
      %s492 = smul.addr %s491, 8
      %s493 = scalar_lea.vmem %s0, %s492
      %p494 = scmp.lt.s32.totalorder %s28, 1
      %s495 = scalar_select %p494, %s28, 1
      %p496 = scmp.lt.s32.totalorder %s29, 2
      %s497 = scalar_select %p496, %s29, 2
      %s498 = smul.addr %s497, 36
      %s499 = smul.addr %s495, 108
      %s500 = sadd.s32 %s498, %s499
      %s501 = smul.addr %s500, 8
      %s502 = scalar_lea.vmem %s1, %s501
      %s503 = smul.u32 8, %s29
      %p504 = scmp.lt.s32.totalorder %s28, 1
      %s505 = scalar_select %p504, %s28, 1
      %p506 = scmp.lt.s32.totalorder %s503, 23
      %s507 = scalar_select %p506, %s503, 23
      %s508 = smul.addr %s507, 3
      %s509 = smul.addr %s505, 72
      %s510 = sadd.s32 %s508, %s509
      %s511 = smul.addr %s510, 8
      %s512 = scalar_lea.vmem %s13, %s511
      %s513 = smul.u32 8, %s29
      %v514 = vld [vmem:[%s493] sm:$0xff]
      %v515 = vld [vmem:[%s493 + $0x8] sm:$0xff]
      %v516 = vld [vmem:[%s493 + $0x10] sm:$0xff]
      %v517 = vld [vmem:[%s493 + $0x18] sm:$0xff]
      %v518 = vld [vmem:[%s493 + $0x20] sm:$0xff]
      %v519 = vld [vmem:[%s493 + $0x28] sm:$0xff]
      %v520 = vld [vmem:[%s493 + $0x30] sm:$0xff]
      %v521 = vld [vmem:[%s493 + $0x38] sm:$0xff]
      %v522 = vld [vmem:[%s493 + $0x40] sm:$0xff]
      %v523 = vld [vmem:[%s493 + $0x48] sm:$0xff]
      %v524 = vld [vmem:[%s493 + $0x50] sm:$0xff]
      %v525 = vld [vmem:[%s493 + $0x58] sm:$0xff]
      %v526 = vld [vmem:[%s493 + $0x60] sm:$0xff]
      %v527 = vld [vmem:[%s493 + $0x68] sm:$0xff]
      %v528 = vld [vmem:[%s493 + $0x70] sm:$0xff]
      %v529 = vld [vmem:[%s493 + $0x78] sm:$0xff]
      %v530 = vld [vmem:[%s493 + $0x80] sm:$0xff]
      %v531 = vld [vmem:[%s493 + $0x88] sm:$0xff]
      %v532 = vld [vmem:[%s493 + $0x90] sm:$0xff]
      %v533 = vld [vmem:[%s493 + $0x98] sm:$0xff]
      %v534 = vld [vmem:[%s493 + $0xa0] sm:$0xff]
      %v535 = vld [vmem:[%s493 + $0xa8] sm:$0xff]
      %v536 = vld [vmem:[%s493 + $0xb0] sm:$0xff]
      %v537 = vld [vmem:[%s493 + $0xb8] sm:$0xff]
      %v538 = vld [vmem:[%s493 + $0xc0] sm:$0xff]
      %v539 = vld [vmem:[%s493 + $0xc8] sm:$0xff]
      %v540 = vld [vmem:[%s493 + $0xd0] sm:$0xff]
      %v541 = vld [vmem:[%s493 + $0xd8] sm:$0xff]
      %v542 = vld [vmem:[%s493 + $0xe0] sm:$0xff]
      %v543 = vld [vmem:[%s493 + $0xe8] sm:$0xff]
      %v544 = vld [vmem:[%s493 + $0xf0] sm:$0xff]
      %v545 = vld [vmem:[%s493 + $0xf8] sm:$0xff]
      %v546 = vld [vmem:[%s493 + $0x100] sm:$0xff]
      %v547 = vld [vmem:[%s493 + $0x108] sm:$0xff]
      %v548 = vld [vmem:[%s493 + $0x110] sm:$0xff]
      %v549 = vld [vmem:[%s493 + $0x118] sm:$0xff]
      %v550 = vld [vmem:[%s502] sm:$0xff]
      %v551 = vld [vmem:[%s502 + $0x8] sm:$0xff]
      %v552 = vld [vmem:[%s502 + $0x10] sm:$0xff]
      %v553 = vld [vmem:[%s502 + $0x18] sm:$0xff]
      %v554 = vld [vmem:[%s502 + $0x20] sm:$0xff]
      %v555 = vld [vmem:[%s502 + $0x28] sm:$0xff]
      %v556 = vld [vmem:[%s502 + $0x30] sm:$0xff]
      %v557 = vld [vmem:[%s502 + $0x38] sm:$0xff]
      %v558 = vld [vmem:[%s502 + $0x40] sm:$0xff]
      %v559 = vld [vmem:[%s502 + $0x48] sm:$0xff]
      %v560 = vld [vmem:[%s502 + $0x50] sm:$0xff]
      %v561 = vld [vmem:[%s502 + $0x58] sm:$0xff]
      %v562 = vld [vmem:[%s502 + $0x60] sm:$0xff]
      %v563 = vld [vmem:[%s502 + $0x68] sm:$0xff]
      %v564 = vld [vmem:[%s502 + $0x70] sm:$0xff]
      %v565 = vld [vmem:[%s502 + $0x78] sm:$0xff]
      %v566 = vld [vmem:[%s502 + $0x80] sm:$0xff]
      %v567 = vld [vmem:[%s502 + $0x88] sm:$0xff]
      %v568 = vld [vmem:[%s502 + $0x90] sm:$0xff]
      %v569 = vld [vmem:[%s502 + $0x98] sm:$0xff]
      %v570 = vld [vmem:[%s502 + $0xa0] sm:$0xff]
      %v571 = vld [vmem:[%s502 + $0xa8] sm:$0xff]
      %v572 = vld [vmem:[%s502 + $0xb0] sm:$0xff]
      %v573 = vld [vmem:[%s502 + $0xb8] sm:$0xff]
      %v574 = vld [vmem:[%s502 + $0xc0] sm:$0xff]
      %v575 = vld [vmem:[%s502 + $0xc8] sm:$0xff]
      %v576 = vld [vmem:[%s502 + $0xd0] sm:$0xff]
      %v577 = vld [vmem:[%s502 + $0xd8] sm:$0xff]
      %v578 = vld [vmem:[%s502 + $0xe0] sm:$0xff]
      %v579 = vld [vmem:[%s502 + $0xe8] sm:$0xff]
      %v580 = vld [vmem:[%s502 + $0xf0] sm:$0xff]
      %v581 = vld [vmem:[%s502 + $0xf8] sm:$0xff]
      %v582 = vld [vmem:[%s502 + $0x100] sm:$0xff]
      %v583 = vld [vmem:[%s502 + $0x108] sm:$0xff]
      %v584 = vld [vmem:[%s502 + $0x110] sm:$0xff]
      %v585 = vld [vmem:[%s502 + $0x118] sm:$0xff]
      %v586 = vld [vmem:[%s7] sm:$0x1]
      %v588 = vlaneseq
      %v589 = vshrl.u32 %v588, 7
      %v590 = vsub.s32 0, %v589
      %v591 = vrot.slane %v586, %v590
      %v593 = vmul.f32 %v514, %v591
      %v594 = vmul.f32 %v515, %v591
      %v595 = vmul.f32 %v516, %v591
      %v596 = vmul.f32 %v517, %v591
      %v597 = vmul.f32 %v518, %v591
      %v598 = vmul.f32 %v519, %v591
      %v599 = vmul.f32 %v520, %v591
      %v600 = vmul.f32 %v521, %v591
      %v601 = vmul.f32 %v522, %v591
      %v602 = vmul.f32 %v523, %v591
      %v603 = vmul.f32 %v524, %v591
      %v604 = vmul.f32 %v525, %v591
      %v605 = vmul.f32 %v526, %v591
      %v606 = vmul.f32 %v527, %v591
      %v607 = vmul.f32 %v528, %v591
      %v608 = vmul.f32 %v529, %v591
      %v609 = vmul.f32 %v530, %v591
      %v610 = vmul.f32 %v531, %v591
      %v611 = vmul.f32 %v532, %v591
      %v612 = vmul.f32 %v533, %v591
      %v613 = vmul.f32 %v534, %v591
      %v614 = vmul.f32 %v535, %v591
      %v615 = vmul.f32 %v536, %v591
      %v616 = vmul.f32 %v537, %v591
      %v617 = vmul.f32 %v538, %v591
      %v618 = vmul.f32 %v539, %v591
      %v619 = vmul.f32 %v540, %v591
      %v620 = vmul.f32 %v541, %v591
      %v621 = vmul.f32 %v542, %v591
      %v622 = vmul.f32 %v543, %v591
      %v623 = vmul.f32 %v544, %v591
      %v624 = vmul.f32 %v545, %v591
      %v625 = vmul.f32 %v546, %v591
      %v626 = vmul.f32 %v547, %v591
      %v627 = vmul.f32 %v548, %v591
      %v628 = vmul.f32 %v549, %v591
      %v629 = vld [vmem:[%s8] sm:$0x1]
      %v631 = vlaneseq
      %v632 = vshrl.u32 %v631, 7
      %v633 = vsub.s32 0, %v632
      %v634 = vrot.slane %v629, %v633
      %v636 = vadd.f32 %v593, %v634
      %v637 = vadd.f32 %v594, %v634
      %v638 = vadd.f32 %v595, %v634
      %v639 = vadd.f32 %v596, %v634
      %v640 = vadd.f32 %v597, %v634
      %v641 = vadd.f32 %v598, %v634
      %v642 = vadd.f32 %v599, %v634
      %v643 = vadd.f32 %v600, %v634
      %v644 = vadd.f32 %v601, %v634
      %v645 = vadd.f32 %v602, %v634
      %v646 = vadd.f32 %v603, %v634
      %v647 = vadd.f32 %v604, %v634
      %v648 = vadd.f32 %v605, %v634
      %v649 = vadd.f32 %v606, %v634
      %v650 = vadd.f32 %v607, %v634
      %v651 = vadd.f32 %v608, %v634
      %v652 = vadd.f32 %v609, %v634
      %v653 = vadd.f32 %v610, %v634
      %v654 = vadd.f32 %v611, %v634
      %v655 = vadd.f32 %v612, %v634
      %v656 = vadd.f32 %v613, %v634
      %v657 = vadd.f32 %v614, %v634
      %v658 = vadd.f32 %v615, %v634
      %v659 = vadd.f32 %v616, %v634
      %v660 = vadd.f32 %v617, %v634
      %v661 = vadd.f32 %v618, %v634
      %v662 = vadd.f32 %v619, %v634
      %v663 = vadd.f32 %v620, %v634
      %v664 = vadd.f32 %v621, %v634
      %v665 = vadd.f32 %v622, %v634
      %v666 = vadd.f32 %v623, %v634
      %v667 = vadd.f32 %v624, %v634
      %v668 = vadd.f32 %v625, %v634
      %v669 = vadd.f32 %v626, %v634
      %v670 = vadd.f32 %v627, %v634
      %v671 = vadd.f32 %v628, %v634
      %v672 = vmax.f32 %v636, 0.0
      %v673 = vmax.f32 %v637, 0.0
      %v674 = vmax.f32 %v638, 0.0
      %v675 = vmax.f32 %v639, 0.0
      %v676 = vmax.f32 %v640, 0.0
      %v677 = vmax.f32 %v641, 0.0
      %v678 = vmax.f32 %v642, 0.0
      %v679 = vmax.f32 %v643, 0.0
      %v680 = vmax.f32 %v644, 0.0
      %v681 = vmax.f32 %v645, 0.0
      %v682 = vmax.f32 %v646, 0.0
      %v683 = vmax.f32 %v647, 0.0
      %v684 = vmax.f32 %v648, 0.0
      %v685 = vmax.f32 %v649, 0.0
      %v686 = vmax.f32 %v650, 0.0
      %v687 = vmax.f32 %v651, 0.0
      %v688 = vmax.f32 %v652, 0.0
      %v689 = vmax.f32 %v653, 0.0
      %v690 = vmax.f32 %v654, 0.0
      %v691 = vmax.f32 %v655, 0.0
      %v692 = vmax.f32 %v656, 0.0
      %v693 = vmax.f32 %v657, 0.0
      %v694 = vmax.f32 %v658, 0.0
      %v695 = vmax.f32 %v659, 0.0
      %v696 = vmax.f32 %v660, 0.0
      %v697 = vmax.f32 %v661, 0.0
      %v698 = vmax.f32 %v662, 0.0
      %v699 = vmax.f32 %v663, 0.0
      %v700 = vmax.f32 %v664, 0.0
      %v701 = vmax.f32 %v665, 0.0
      %v702 = vmax.f32 %v666, 0.0
      %v703 = vmax.f32 %v667, 0.0
      %v704 = vmax.f32 %v668, 0.0
      %v705 = vmax.f32 %v669, 0.0
      %v706 = vmax.f32 %v670, 0.0
      %v707 = vmax.f32 %v671, 0.0
      %v708 = vld [vmem:[%s9] sm:$0x1]
      %v710 = vlaneseq
      %v711 = vshrl.u32 %v710, 7
      %v712 = vsub.s32 0, %v711
      %v713 = vrot.slane %v708, %v712
      %v715 = vmul.f32 %v550, %v713
      %v716 = vmul.f32 %v551, %v713
      %v717 = vmul.f32 %v552, %v713
      %v718 = vmul.f32 %v553, %v713
      %v719 = vmul.f32 %v554, %v713
      %v720 = vmul.f32 %v555, %v713
      %v721 = vmul.f32 %v556, %v713
      %v722 = vmul.f32 %v557, %v713
      %v723 = vmul.f32 %v558, %v713
      %v724 = vmul.f32 %v559, %v713
      %v725 = vmul.f32 %v560, %v713
      %v726 = vmul.f32 %v561, %v713
      %v727 = vmul.f32 %v562, %v713
      %v728 = vmul.f32 %v563, %v713
      %v729 = vmul.f32 %v564, %v713
      %v730 = vmul.f32 %v565, %v713
      %v731 = vmul.f32 %v566, %v713
      %v732 = vmul.f32 %v567, %v713
      %v733 = vmul.f32 %v568, %v713
      %v734 = vmul.f32 %v569, %v713
      %v735 = vmul.f32 %v570, %v713
      %v736 = vmul.f32 %v571, %v713
      %v737 = vmul.f32 %v572, %v713
      %v738 = vmul.f32 %v573, %v713
      %v739 = vmul.f32 %v574, %v713
      %v740 = vmul.f32 %v575, %v713
      %v741 = vmul.f32 %v576, %v713
      %v742 = vmul.f32 %v577, %v713
      %v743 = vmul.f32 %v578, %v713
      %v744 = vmul.f32 %v579, %v713
      %v745 = vmul.f32 %v580, %v713
      %v746 = vmul.f32 %v581, %v713
      %v747 = vmul.f32 %v582, %v713
      %v748 = vmul.f32 %v583, %v713
      %v749 = vmul.f32 %v584, %v713
      %v750 = vmul.f32 %v585, %v713
      %v751 = vld [vmem:[%s10] sm:$0x1]
      %v753 = vlaneseq
      %v754 = vshrl.u32 %v753, 7
      %v755 = vsub.s32 0, %v754
      %v756 = vrot.slane %v751, %v755
      %v758 = vadd.f32 %v715, %v756
      %v759 = vadd.f32 %v716, %v756
      %v760 = vadd.f32 %v717, %v756
      %v761 = vadd.f32 %v718, %v756
      %v762 = vadd.f32 %v719, %v756
      %v763 = vadd.f32 %v720, %v756
      %v764 = vadd.f32 %v721, %v756
      %v765 = vadd.f32 %v722, %v756
      %v766 = vadd.f32 %v723, %v756
      %v767 = vadd.f32 %v724, %v756
      %v768 = vadd.f32 %v725, %v756
      %v769 = vadd.f32 %v726, %v756
      %v770 = vadd.f32 %v727, %v756
      %v771 = vadd.f32 %v728, %v756
      %v772 = vadd.f32 %v729, %v756
      %v773 = vadd.f32 %v730, %v756
      %v774 = vadd.f32 %v731, %v756
      %v775 = vadd.f32 %v732, %v756
      %v776 = vadd.f32 %v733, %v756
      %v777 = vadd.f32 %v734, %v756
      %v778 = vadd.f32 %v735, %v756
      %v779 = vadd.f32 %v736, %v756
      %v780 = vadd.f32 %v737, %v756
      %v781 = vadd.f32 %v738, %v756
      %v782 = vadd.f32 %v739, %v756
      %v783 = vadd.f32 %v740, %v756
      %v784 = vadd.f32 %v741, %v756
      %v785 = vadd.f32 %v742, %v756
      %v786 = vadd.f32 %v743, %v756
      %v787 = vadd.f32 %v744, %v756
      %v788 = vadd.f32 %v745, %v756
      %v789 = vadd.f32 %v746, %v756
      %v790 = vadd.f32 %v747, %v756
      %v791 = vadd.f32 %v748, %v756
      %v792 = vadd.f32 %v749, %v756
      %v793 = vadd.f32 %v750, %v756
      %v794 = vmax.f32 %v758, 0.0
      %v795 = vmax.f32 %v759, 0.0
      %v796 = vmax.f32 %v760, 0.0
      %v797 = vmax.f32 %v761, 0.0
      %v798 = vmax.f32 %v762, 0.0
      %v799 = vmax.f32 %v763, 0.0
      %v800 = vmax.f32 %v764, 0.0
      %v801 = vmax.f32 %v765, 0.0
      %v802 = vmax.f32 %v766, 0.0
      %v803 = vmax.f32 %v767, 0.0
      %v804 = vmax.f32 %v768, 0.0
      %v805 = vmax.f32 %v769, 0.0
      %v806 = vmax.f32 %v770, 0.0
      %v807 = vmax.f32 %v771, 0.0
      %v808 = vmax.f32 %v772, 0.0
      %v809 = vmax.f32 %v773, 0.0
      %v810 = vmax.f32 %v774, 0.0
      %v811 = vmax.f32 %v775, 0.0
      %v812 = vmax.f32 %v776, 0.0
      %v813 = vmax.f32 %v777, 0.0
      %v814 = vmax.f32 %v778, 0.0
      %v815 = vmax.f32 %v779, 0.0
      %v816 = vmax.f32 %v780, 0.0
      %v817 = vmax.f32 %v781, 0.0
      %v818 = vmax.f32 %v782, 0.0
      %v819 = vmax.f32 %v783, 0.0
      %v820 = vmax.f32 %v784, 0.0
      %v821 = vmax.f32 %v785, 0.0
      %v822 = vmax.f32 %v786, 0.0
      %v823 = vmax.f32 %v787, 0.0
      %v824 = vmax.f32 %v788, 0.0
      %v825 = vmax.f32 %v789, 0.0
      %v826 = vmax.f32 %v790, 0.0
      %v827 = vmax.f32 %v791, 0.0
      %v828 = vmax.f32 %v792, 0.0
      %v829 = vmax.f32 %v793, 0.0
      %866 = vrot.lane.b32.xlu0 %v794, 16
      %v867 = vpop.permute.xlu0 %866
      %868 = vrot.lane.b32.xlu0 %v795, 16
      %v869 = vpop.permute.xlu0 %868
      %870 = vrot.lane.b32.xlu0 %v796, 16
      %v871 = vpop.permute.xlu0 %870
      %872 = vrot.lane.b32.xlu0 %v797, 16
      %v873 = vpop.permute.xlu0 %872
      %874 = vrot.lane.b32.xlu0 %v798, 16
      %v875 = vpop.permute.xlu0 %874
      %876 = vrot.lane.b32.xlu0 %v799, 16
      %v877 = vpop.permute.xlu0 %876
      %878 = vrot.lane.b32.xlu0 %v800, 16
      %v879 = vpop.permute.xlu0 %878
      %880 = vrot.lane.b32.xlu0 %v801, 16
      %v881 = vpop.permute.xlu0 %880
      %882 = vrot.lane.b32.xlu0 %v802, 16
      %v883 = vpop.permute.xlu0 %882
      %884 = vrot.lane.b32.xlu0 %v803, 16
      %v885 = vpop.permute.xlu0 %884
      %886 = vrot.lane.b32.xlu0 %v804, 16
      %v887 = vpop.permute.xlu0 %886
      %888 = vrot.lane.b32.xlu0 %v805, 16
      %v889 = vpop.permute.xlu0 %888
      %890 = vrot.lane.b32.xlu0 %v806, 16
      %v891 = vpop.permute.xlu0 %890
      %892 = vrot.lane.b32.xlu0 %v807, 16
      %v893 = vpop.permute.xlu0 %892
      %894 = vrot.lane.b32.xlu0 %v808, 16
      %v895 = vpop.permute.xlu0 %894
      %896 = vrot.lane.b32.xlu0 %v809, 16
      %v897 = vpop.permute.xlu0 %896
      %898 = vrot.lane.b32.xlu0 %v810, 16
      %v899 = vpop.permute.xlu0 %898
      %900 = vrot.lane.b32.xlu0 %v811, 16
      %v901 = vpop.permute.xlu0 %900
      %902 = vrot.lane.b32.xlu0 %v812, 16
      %v903 = vpop.permute.xlu0 %902
      %904 = vrot.lane.b32.xlu0 %v813, 16
      %v905 = vpop.permute.xlu0 %904
      %906 = vrot.lane.b32.xlu0 %v814, 16
      %v907 = vpop.permute.xlu0 %906
      %908 = vrot.lane.b32.xlu0 %v815, 16
      %v909 = vpop.permute.xlu0 %908
      %910 = vrot.lane.b32.xlu0 %v816, 16
      %v911 = vpop.permute.xlu0 %910
      %912 = vrot.lane.b32.xlu0 %v817, 16
      %v913 = vpop.permute.xlu0 %912
      %914 = vrot.lane.b32.xlu0 %v818, 16
      %v915 = vpop.permute.xlu0 %914
      %916 = vrot.lane.b32.xlu0 %v819, 16
      %v917 = vpop.permute.xlu0 %916
      %918 = vrot.lane.b32.xlu0 %v820, 16
      %v919 = vpop.permute.xlu0 %918
      %920 = vrot.lane.b32.xlu0 %v821, 16
      %v921 = vpop.permute.xlu0 %920
      %922 = vrot.lane.b32.xlu0 %v822, 16
      %v923 = vpop.permute.xlu0 %922
      %924 = vrot.lane.b32.xlu0 %v823, 16
      %v925 = vpop.permute.xlu0 %924
      %926 = vrot.lane.b32.xlu0 %v824, 16
      %v927 = vpop.permute.xlu0 %926
      %928 = vrot.lane.b32.xlu0 %v825, 16
      %v929 = vpop.permute.xlu0 %928
      %930 = vrot.lane.b32.xlu0 %v826, 16
      %v931 = vpop.permute.xlu0 %930
      %932 = vrot.lane.b32.xlu0 %v827, 16
      %v933 = vpop.permute.xlu0 %932
      %934 = vrot.lane.b32.xlu0 %v828, 16
      %v935 = vpop.permute.xlu0 %934
      %936 = vrot.lane.b32.xlu0 %v829, 16
      %v937 = vpop.permute.xlu0 %936
      %vm974 = vcmask 130048
      %v975 = vsel %vm974, %v672, %v867
      %v976 = vsel %vm974, %v673, %v869
      %v977 = vsel %vm974, %v674, %v871
      %v978 = vsel %vm974, %v675, %v873
      %v979 = vsel %vm974, %v676, %v875
      %v980 = vsel %vm974, %v677, %v877
      %v981 = vsel %vm974, %v678, %v879
      %v982 = vsel %vm974, %v679, %v881
      %v983 = vsel %vm974, %v680, %v883
      %v984 = vsel %vm974, %v681, %v885
      %v985 = vsel %vm974, %v682, %v887
      %v986 = vsel %vm974, %v683, %v889
      %v987 = vsel %vm974, %v684, %v891
      %v988 = vsel %vm974, %v685, %v893
      %v989 = vsel %vm974, %v686, %v895
      %v990 = vsel %vm974, %v687, %v897
      %v991 = vsel %vm974, %v688, %v899
      %v992 = vsel %vm974, %v689, %v901
      %v993 = vsel %vm974, %v690, %v903
      %v994 = vsel %vm974, %v691, %v905
      %v995 = vsel %vm974, %v692, %v907
      %v996 = vsel %vm974, %v693, %v909
      %v997 = vsel %vm974, %v694, %v911
      %v998 = vsel %vm974, %v695, %v913
      %v999 = vsel %vm974, %v696, %v915
      %v1000 = vsel %vm974, %v697, %v917
      %v1001 = vsel %vm974, %v698, %v919
      %v1002 = vsel %vm974, %v699, %v921
      %v1003 = vsel %vm974, %v700, %v923
      %v1004 = vsel %vm974, %v701, %v925
      %v1005 = vsel %vm974, %v702, %v927
      %v1006 = vsel %vm974, %v703, %v929
      %v1007 = vsel %vm974, %v704, %v931
      %v1008 = vsel %vm974, %v705, %v933
      %v1009 = vsel %vm974, %v706, %v935
      %v1010 = vsel %vm974, %v707, %v937
      %v1011 = vlaneseq
      %v1012 = vshrl.u32 %v1011, 7
      %v1013 = vadd.s32 %v1012, 8
      %v1014 = vadd.s32 %v1012, 16
      %vm1015 = vcmp.ge.s32.totalorder %v1012, 1
      %vm1016 = vcmp.ge.s32.totalorder %v1013, 1
      %vm1017 = vcmp.ge.s32.totalorder %v1014, 1
      %v1018 = vrot.slane %v975, 7
      %v1019 = vrot.slane %v978, 7
      %v1020 = vrot.slane %v981, 7
      %v1021 = vrot.slane %v984, 7
      %v1022 = vrot.slane %v987, 7
      %v1023 = vrot.slane %v990, 7
      %v1024 = vrot.slane %v993, 7
      %v1025 = vrot.slane %v996, 7
      %v1026 = vrot.slane %v999, 7
      %v1027 = vrot.slane %v1002, 7
      %v1028 = vrot.slane %v1005, 7
      %v1029 = vrot.slane %v1008, 7
      %v1030 = vrot.slane %v976, 7
      %v1031 = vrot.slane %v979, 7
      %v1032 = vrot.slane %v982, 7
      %v1033 = vrot.slane %v985, 7
      %v1034 = vrot.slane %v988, 7
      %v1035 = vrot.slane %v991, 7
      %v1036 = vrot.slane %v994, 7
      %v1037 = vrot.slane %v997, 7
      %v1038 = vrot.slane %v1000, 7
      %v1039 = vrot.slane %v1003, 7
      %v1040 = vrot.slane %v1006, 7
      %v1041 = vrot.slane %v1009, 7
      %v1042 = vrot.slane %v977, 7
      %v1043 = vrot.slane %v980, 7
      %v1044 = vrot.slane %v983, 7
      %v1045 = vrot.slane %v986, 7
      %v1046 = vrot.slane %v989, 7
      %v1047 = vrot.slane %v992, 7
      %v1048 = vrot.slane %v995, 7
      %v1049 = vrot.slane %v998, 7
      %v1050 = vrot.slane %v1001, 7
      %v1051 = vrot.slane %v1004, 7
      %v1052 = vrot.slane %v1007, 7
      %v1053 = vrot.slane %v1010, 7
      %vm1054 = vcmp.lt.s32.totalorder %v1012, 1
      %v1055 = vsel %vm1054, %v1030, %v1042
      %v1056 = vsel %vm1054, %v1031, %v1043
      %v1057 = vsel %vm1054, %v1032, %v1044
      %v1058 = vsel %vm1054, %v1033, %v1045
      %v1059 = vsel %vm1054, %v1034, %v1046
      %v1060 = vsel %vm1054, %v1035, %v1047
      %v1061 = vsel %vm1054, %v1036, %v1048
      %v1062 = vsel %vm1054, %v1037, %v1049
      %v1063 = vsel %vm1054, %v1038, %v1050
      %v1064 = vsel %vm1054, %v1039, %v1051
      %v1065 = vsel %vm1054, %v1040, %v1052
      %v1066 = vsel %vm1054, %v1041, %v1053
      %v1067 = vsel %vm1054, %v1018, %v1030
      %v1068 = vsel %vm1054, %v1019, %v1031
      %v1069 = vsel %vm1054, %v1020, %v1032
      %v1070 = vsel %vm1054, %v1021, %v1033
      %v1071 = vsel %vm1054, %v1022, %v1034
      %v1072 = vsel %vm1054, %v1023, %v1035
      %v1073 = vsel %vm1054, %v1024, %v1036
      %v1074 = vsel %vm1054, %v1025, %v1037
      %v1075 = vsel %vm1054, %v1026, %v1038
      %v1076 = vsel %vm1054, %v1027, %v1039
      %v1077 = vsel %vm1054, %v1028, %v1040
      %v1078 = vsel %vm1054, %v1029, %v1041
      %v1079 = vsel %vm1054, %v1042, %v1018
      %v1080 = vsel %vm1054, %v1043, %v1019
      %v1081 = vsel %vm1054, %v1044, %v1020
      %v1082 = vsel %vm1054, %v1045, %v1021
      %v1083 = vsel %vm1054, %v1046, %v1022
      %v1084 = vsel %vm1054, %v1047, %v1023
      %v1085 = vsel %vm1054, %v1048, %v1024
      %v1086 = vsel %vm1054, %v1049, %v1025
      %v1087 = vsel %vm1054, %v1050, %v1026
      %v1088 = vsel %vm1054, %v1051, %v1027
      %v1089 = vsel %vm1054, %v1052, %v1028
      %v1090 = vsel %vm1054, %v1053, %v1029
      %v1091 = vsel %vm1015, 1, 0
      %v1092 = vsel %vm1016, 1, 0
      %v1093 = vsel %vm1017, 1, 0
      %vm1094 = vcmp.eq.s32.totalorder %v1091, 1
      %vm1095 = vcmp.eq.s32.totalorder %v1092, 1
      %vm1096 = vcmp.eq.s32.totalorder %v1093, 1
      %v1097 = vsel %vm1094, %v1079, 0.0
      %v1098 = vsel %vm1095, %v1067, 0.0
      %v1099 = vsel %vm1096, %v1055, 0.0
      %v1100 = vsel %vm1094, %v1080, 0.0
      %v1101 = vsel %vm1095, %v1068, 0.0
      %v1102 = vsel %vm1096, %v1056, 0.0
      %v1103 = vsel %vm1094, %v1081, 0.0
      %v1104 = vsel %vm1095, %v1069, 0.0
      %v1105 = vsel %vm1096, %v1057, 0.0
      %v1106 = vsel %vm1094, %v1082, 0.0
      %v1107 = vsel %vm1095, %v1070, 0.0
      %v1108 = vsel %vm1096, %v1058, 0.0
      %v1109 = vsel %vm1094, %v1083, 0.0
      %v1110 = vsel %vm1095, %v1071, 0.0
      %v1111 = vsel %vm1096, %v1059, 0.0
      %v1112 = vsel %vm1094, %v1084, 0.0
      %v1113 = vsel %vm1095, %v1072, 0.0
      %v1114 = vsel %vm1096, %v1060, 0.0
      %v1115 = vsel %vm1094, %v1085, 0.0
      %v1116 = vsel %vm1095, %v1073, 0.0
      %v1117 = vsel %vm1096, %v1061, 0.0
      %v1118 = vsel %vm1094, %v1086, 0.0
      %v1119 = vsel %vm1095, %v1074, 0.0
      %v1120 = vsel %vm1096, %v1062, 0.0
      %v1121 = vsel %vm1094, %v1087, 0.0
      %v1122 = vsel %vm1095, %v1075, 0.0
      %v1123 = vsel %vm1096, %v1063, 0.0
      %v1124 = vsel %vm1094, %v1088, 0.0
      %v1125 = vsel %vm1095, %v1076, 0.0
      %v1126 = vsel %vm1096, %v1064, 0.0
      %v1127 = vsel %vm1094, %v1089, 0.0
      %v1128 = vsel %vm1095, %v1077, 0.0
      %v1129 = vsel %vm1096, %v1065, 0.0
      %v1130 = vsel %vm1094, %v1090, 0.0
      %v1131 = vsel %vm1095, %v1078, 0.0
      %v1132 = vsel %vm1096, %v1066, 0.0
      %vm1133 = vcmp.le.s32.totalorder %v1012, 22
      %vm1134 = vcmp.le.s32.totalorder %v1013, 22
      %vm1135 = vcmp.le.s32.totalorder %v1014, 22
      %v1136 = vrot.slane %v975, 1
      %v1137 = vrot.slane %v978, 1
      %v1138 = vrot.slane %v981, 1
      %v1139 = vrot.slane %v984, 1
      %v1140 = vrot.slane %v987, 1
      %v1141 = vrot.slane %v990, 1
      %v1142 = vrot.slane %v993, 1
      %v1143 = vrot.slane %v996, 1
      %v1144 = vrot.slane %v999, 1
      %v1145 = vrot.slane %v1002, 1
      %v1146 = vrot.slane %v1005, 1
      %v1147 = vrot.slane %v1008, 1
      %v1148 = vrot.slane %v976, 1
      %v1149 = vrot.slane %v979, 1
      %v1150 = vrot.slane %v982, 1
      %v1151 = vrot.slane %v985, 1
      %v1152 = vrot.slane %v988, 1
      %v1153 = vrot.slane %v991, 1
      %v1154 = vrot.slane %v994, 1
      %v1155 = vrot.slane %v997, 1
      %v1156 = vrot.slane %v1000, 1
      %v1157 = vrot.slane %v1003, 1
      %v1158 = vrot.slane %v1006, 1
      %v1159 = vrot.slane %v1009, 1
      %v1160 = vrot.slane %v977, 1
      %v1161 = vrot.slane %v980, 1
      %v1162 = vrot.slane %v983, 1
      %v1163 = vrot.slane %v986, 1
      %v1164 = vrot.slane %v989, 1
      %v1165 = vrot.slane %v992, 1
      %v1166 = vrot.slane %v995, 1
      %v1167 = vrot.slane %v998, 1
      %v1168 = vrot.slane %v1001, 1
      %v1169 = vrot.slane %v1004, 1
      %v1170 = vrot.slane %v1007, 1
      %v1171 = vrot.slane %v1010, 1
      %vm1172 = vcmp.lt.s32.totalorder %v1012, 7
      %v1173 = vsel %vm1172, %v1148, %v1160
      %v1174 = vsel %vm1172, %v1149, %v1161
      %v1175 = vsel %vm1172, %v1150, %v1162
      %v1176 = vsel %vm1172, %v1151, %v1163
      %v1177 = vsel %vm1172, %v1152, %v1164
      %v1178 = vsel %vm1172, %v1153, %v1165
      %v1179 = vsel %vm1172, %v1154, %v1166
      %v1180 = vsel %vm1172, %v1155, %v1167
      %v1181 = vsel %vm1172, %v1156, %v1168
      %v1182 = vsel %vm1172, %v1157, %v1169
      %v1183 = vsel %vm1172, %v1158, %v1170
      %v1184 = vsel %vm1172, %v1159, %v1171
      %v1185 = vsel %vm1172, %v1136, %v1148
      %v1186 = vsel %vm1172, %v1137, %v1149
      %v1187 = vsel %vm1172, %v1138, %v1150
      %v1188 = vsel %vm1172, %v1139, %v1151
      %v1189 = vsel %vm1172, %v1140, %v1152
      %v1190 = vsel %vm1172, %v1141, %v1153
      %v1191 = vsel %vm1172, %v1142, %v1154
      %v1192 = vsel %vm1172, %v1143, %v1155
      %v1193 = vsel %vm1172, %v1144, %v1156
      %v1194 = vsel %vm1172, %v1145, %v1157
      %v1195 = vsel %vm1172, %v1146, %v1158
      %v1196 = vsel %vm1172, %v1147, %v1159
      %v1197 = vsel %vm1172, %v1160, %v1136
      %v1198 = vsel %vm1172, %v1161, %v1137
      %v1199 = vsel %vm1172, %v1162, %v1138
      %v1200 = vsel %vm1172, %v1163, %v1139
      %v1201 = vsel %vm1172, %v1164, %v1140
      %v1202 = vsel %vm1172, %v1165, %v1141
      %v1203 = vsel %vm1172, %v1166, %v1142
      %v1204 = vsel %vm1172, %v1167, %v1143
      %v1205 = vsel %vm1172, %v1168, %v1144
      %v1206 = vsel %vm1172, %v1169, %v1145
      %v1207 = vsel %vm1172, %v1170, %v1146
      %v1208 = vsel %vm1172, %v1171, %v1147
      %v1209 = vsel %vm1133, 1, 0
      %v1210 = vsel %vm1134, 1, 0
      %v1211 = vsel %vm1135, 1, 0
      %vm1212 = vcmp.eq.s32.totalorder %v1209, 1
      %vm1213 = vcmp.eq.s32.totalorder %v1210, 1
      %vm1214 = vcmp.eq.s32.totalorder %v1211, 1
      %v1215 = vsel %vm1212, %v1185, 0.0
      %v1216 = vsel %vm1213, %v1173, 0.0
      %v1217 = vsel %vm1214, %v1197, 0.0
      %v1218 = vsel %vm1212, %v1186, 0.0
      %v1219 = vsel %vm1213, %v1174, 0.0
      %v1220 = vsel %vm1214, %v1198, 0.0
      %v1221 = vsel %vm1212, %v1187, 0.0
      %v1222 = vsel %vm1213, %v1175, 0.0
      %v1223 = vsel %vm1214, %v1199, 0.0
      %v1224 = vsel %vm1212, %v1188, 0.0
      %v1225 = vsel %vm1213, %v1176, 0.0
      %v1226 = vsel %vm1214, %v1200, 0.0
      %v1227 = vsel %vm1212, %v1189, 0.0
      %v1228 = vsel %vm1213, %v1177, 0.0
      %v1229 = vsel %vm1214, %v1201, 0.0
      %v1230 = vsel %vm1212, %v1190, 0.0
      %v1231 = vsel %vm1213, %v1178, 0.0
      %v1232 = vsel %vm1214, %v1202, 0.0
      %v1233 = vsel %vm1212, %v1191, 0.0
      %v1234 = vsel %vm1213, %v1179, 0.0
      %v1235 = vsel %vm1214, %v1203, 0.0
      %v1236 = vsel %vm1212, %v1192, 0.0
      %v1237 = vsel %vm1213, %v1180, 0.0
      %v1238 = vsel %vm1214, %v1204, 0.0
      %v1239 = vsel %vm1212, %v1193, 0.0
      %v1240 = vsel %vm1213, %v1181, 0.0
      %v1241 = vsel %vm1214, %v1205, 0.0
      %v1242 = vsel %vm1212, %v1194, 0.0
      %v1243 = vsel %vm1213, %v1182, 0.0
      %v1244 = vsel %vm1214, %v1206, 0.0
      %v1245 = vsel %vm1212, %v1195, 0.0
      %v1246 = vsel %vm1213, %v1183, 0.0
      %v1247 = vsel %vm1214, %v1207, 0.0
      %v1248 = vsel %vm1212, %v1196, 0.0
      %v1249 = vsel %vm1213, %v1184, 0.0
      %v1250 = vsel %vm1214, %v1208, 0.0
      %1287 = vrot.lane.b32.xlu0 %v975, 24
      %v1288 = vpop.permute.xlu0 %1287
      %1289 = vrot.lane.b32.xlu0 %v976, 24
      %v1290 = vpop.permute.xlu0 %1289
      %1291 = vrot.lane.b32.xlu0 %v977, 24
      %v1292 = vpop.permute.xlu0 %1291
      %1293 = vrot.lane.b32.xlu0 %v978, 24
      %v1294 = vpop.permute.xlu0 %1293
      %1295 = vrot.lane.b32.xlu0 %v979, 24
      %v1296 = vpop.permute.xlu0 %1295
      %1297 = vrot.lane.b32.xlu0 %v980, 24
      %v1298 = vpop.permute.xlu0 %1297
      %1299 = vrot.lane.b32.xlu0 %v981, 24
      %v1300 = vpop.permute.xlu0 %1299
      %1301 = vrot.lane.b32.xlu0 %v982, 24
      %v1302 = vpop.permute.xlu0 %1301
      %1303 = vrot.lane.b32.xlu0 %v983, 24
      %v1304 = vpop.permute.xlu0 %1303
      %1305 = vrot.lane.b32.xlu0 %v984, 24
      %v1306 = vpop.permute.xlu0 %1305
      %1307 = vrot.lane.b32.xlu0 %v985, 24
      %v1308 = vpop.permute.xlu0 %1307
      %1309 = vrot.lane.b32.xlu0 %v986, 24
      %v1310 = vpop.permute.xlu0 %1309
      %1311 = vrot.lane.b32.xlu0 %v987, 24
      %v1312 = vpop.permute.xlu0 %1311
      %1313 = vrot.lane.b32.xlu0 %v988, 24
      %v1314 = vpop.permute.xlu0 %1313
      %1315 = vrot.lane.b32.xlu0 %v989, 24
      %v1316 = vpop.permute.xlu0 %1315
      %1317 = vrot.lane.b32.xlu0 %v990, 24
      %v1318 = vpop.permute.xlu0 %1317
      %1319 = vrot.lane.b32.xlu0 %v991, 24
      %v1320 = vpop.permute.xlu0 %1319
      %1321 = vrot.lane.b32.xlu0 %v992, 24
      %v1322 = vpop.permute.xlu0 %1321
      %1323 = vrot.lane.b32.xlu0 %v993, 24
      %v1324 = vpop.permute.xlu0 %1323
      %1325 = vrot.lane.b32.xlu0 %v994, 24
      %v1326 = vpop.permute.xlu0 %1325
      %1327 = vrot.lane.b32.xlu0 %v995, 24
      %v1328 = vpop.permute.xlu0 %1327
      %1329 = vrot.lane.b32.xlu0 %v996, 24
      %v1330 = vpop.permute.xlu0 %1329
      %1331 = vrot.lane.b32.xlu0 %v997, 24
      %v1332 = vpop.permute.xlu0 %1331
      %1333 = vrot.lane.b32.xlu0 %v998, 24
      %v1334 = vpop.permute.xlu0 %1333
      %1335 = vrot.lane.b32.xlu0 %v999, 24
      %v1336 = vpop.permute.xlu0 %1335
      %1337 = vrot.lane.b32.xlu0 %v1000, 24
      %v1338 = vpop.permute.xlu0 %1337
      %1339 = vrot.lane.b32.xlu0 %v1001, 24
      %v1340 = vpop.permute.xlu0 %1339
      %1341 = vrot.lane.b32.xlu0 %v1002, 24
      %v1342 = vpop.permute.xlu0 %1341
      %1343 = vrot.lane.b32.xlu0 %v1003, 24
      %v1344 = vpop.permute.xlu0 %1343
      %1345 = vrot.lane.b32.xlu0 %v1004, 24
      %v1346 = vpop.permute.xlu0 %1345
      %1347 = vrot.lane.b32.xlu0 %v1005, 24
      %v1348 = vpop.permute.xlu0 %1347
      %1349 = vrot.lane.b32.xlu0 %v1006, 24
      %v1350 = vpop.permute.xlu0 %1349
      %1351 = vrot.lane.b32.xlu0 %v1007, 24
      %v1352 = vpop.permute.xlu0 %1351
      %1353 = vrot.lane.b32.xlu0 %v1008, 24
      %v1354 = vpop.permute.xlu0 %1353
      %1355 = vrot.lane.b32.xlu0 %v1009, 24
      %v1356 = vpop.permute.xlu0 %1355
      %1357 = vrot.lane.b32.xlu0 %v1010, 24
      %v1358 = vpop.permute.xlu0 %1357
      %1431 = vrot.lane.b32.xlu0 %v1215, 48
      %v1432 = vpop.permute.xlu0 %1431
      %1433 = vrot.lane.b32.xlu0 %v1216, 48
      %v1434 = vpop.permute.xlu0 %1433
      %1435 = vrot.lane.b32.xlu0 %v1217, 48
      %v1436 = vpop.permute.xlu0 %1435
      %1437 = vrot.lane.b32.xlu0 %v1218, 48
      %v1438 = vpop.permute.xlu0 %1437
      %1439 = vrot.lane.b32.xlu0 %v1219, 48
      %v1440 = vpop.permute.xlu0 %1439
      %1441 = vrot.lane.b32.xlu0 %v1220, 48
      %v1442 = vpop.permute.xlu0 %1441
      %1443 = vrot.lane.b32.xlu0 %v1221, 48
      %v1444 = vpop.permute.xlu0 %1443
      %1445 = vrot.lane.b32.xlu0 %v1222, 48
      %v1446 = vpop.permute.xlu0 %1445
      %1447 = vrot.lane.b32.xlu0 %v1223, 48
      %v1448 = vpop.permute.xlu0 %1447
      %1449 = vrot.lane.b32.xlu0 %v1224, 48
      %v1450 = vpop.permute.xlu0 %1449
      %1451 = vrot.lane.b32.xlu0 %v1225, 48
      %v1452 = vpop.permute.xlu0 %1451
      %1453 = vrot.lane.b32.xlu0 %v1226, 48
      %v1454 = vpop.permute.xlu0 %1453
      %1455 = vrot.lane.b32.xlu0 %v1227, 48
      %v1456 = vpop.permute.xlu0 %1455
      %1457 = vrot.lane.b32.xlu0 %v1228, 48
      %v1458 = vpop.permute.xlu0 %1457
      %1459 = vrot.lane.b32.xlu0 %v1229, 48
      %v1460 = vpop.permute.xlu0 %1459
      %1461 = vrot.lane.b32.xlu0 %v1230, 48
      %v1462 = vpop.permute.xlu0 %1461
      %1463 = vrot.lane.b32.xlu0 %v1231, 48
      %v1464 = vpop.permute.xlu0 %1463
      %1465 = vrot.lane.b32.xlu0 %v1232, 48
      %v1466 = vpop.permute.xlu0 %1465
      %1467 = vrot.lane.b32.xlu0 %v1233, 48
      %v1468 = vpop.permute.xlu0 %1467
      %1469 = vrot.lane.b32.xlu0 %v1234, 48
      %v1470 = vpop.permute.xlu0 %1469
      %1471 = vrot.lane.b32.xlu0 %v1235, 48
      %v1472 = vpop.permute.xlu0 %1471
      %1473 = vrot.lane.b32.xlu0 %v1236, 48
      %v1474 = vpop.permute.xlu0 %1473
      %1475 = vrot.lane.b32.xlu0 %v1237, 48
      %v1476 = vpop.permute.xlu0 %1475
      %1477 = vrot.lane.b32.xlu0 %v1238, 48
      %v1478 = vpop.permute.xlu0 %1477
      %1479 = vrot.lane.b32.xlu0 %v1239, 48
      %v1480 = vpop.permute.xlu0 %1479
      %1481 = vrot.lane.b32.xlu0 %v1240, 48
      %v1482 = vpop.permute.xlu0 %1481
      %1483 = vrot.lane.b32.xlu0 %v1241, 48
      %v1484 = vpop.permute.xlu0 %1483
      %1485 = vrot.lane.b32.xlu0 %v1242, 48
      %v1486 = vpop.permute.xlu0 %1485
      %1487 = vrot.lane.b32.xlu0 %v1243, 48
      %v1488 = vpop.permute.xlu0 %1487
      %1489 = vrot.lane.b32.xlu0 %v1244, 48
      %v1490 = vpop.permute.xlu0 %1489
      %1491 = vrot.lane.b32.xlu0 %v1245, 48
      %v1492 = vpop.permute.xlu0 %1491
      %1493 = vrot.lane.b32.xlu0 %v1246, 48
      %v1494 = vpop.permute.xlu0 %1493
      %1495 = vrot.lane.b32.xlu0 %v1247, 48
      %v1496 = vpop.permute.xlu0 %1495
      %1497 = vrot.lane.b32.xlu0 %v1248, 48
      %v1498 = vpop.permute.xlu0 %1497
      %1499 = vrot.lane.b32.xlu0 %v1249, 48
      %v1500 = vpop.permute.xlu0 %1499
      %1501 = vrot.lane.b32.xlu0 %v1250, 48
      %v1502 = vpop.permute.xlu0 %1501
      %vm1539 = vcmask 195584
      %v1540 = vsel %vm1539, %v1097, %v1288
      %v1541 = vsel %vm1539, %v1098, %v1290
      %v1542 = vsel %vm1539, %v1099, %v1292
      %v1543 = vsel %vm1539, %v1100, %v1294
      %v1544 = vsel %vm1539, %v1101, %v1296
      %v1545 = vsel %vm1539, %v1102, %v1298
      %v1546 = vsel %vm1539, %v1103, %v1300
      %v1547 = vsel %vm1539, %v1104, %v1302
      %v1548 = vsel %vm1539, %v1105, %v1304
      %v1549 = vsel %vm1539, %v1106, %v1306
      %v1550 = vsel %vm1539, %v1107, %v1308
      %v1551 = vsel %vm1539, %v1108, %v1310
      %v1552 = vsel %vm1539, %v1109, %v1312
      %v1553 = vsel %vm1539, %v1110, %v1314
      %v1554 = vsel %vm1539, %v1111, %v1316
      %v1555 = vsel %vm1539, %v1112, %v1318
      %v1556 = vsel %vm1539, %v1113, %v1320
      %v1557 = vsel %vm1539, %v1114, %v1322
      %v1558 = vsel %vm1539, %v1115, %v1324
      %v1559 = vsel %vm1539, %v1116, %v1326
      %v1560 = vsel %vm1539, %v1117, %v1328
      %v1561 = vsel %vm1539, %v1118, %v1330
      %v1562 = vsel %vm1539, %v1119, %v1332
      %v1563 = vsel %vm1539, %v1120, %v1334
      %v1564 = vsel %vm1539, %v1121, %v1336
      %v1565 = vsel %vm1539, %v1122, %v1338
      %v1566 = vsel %vm1539, %v1123, %v1340
      %v1567 = vsel %vm1539, %v1124, %v1342
      %v1568 = vsel %vm1539, %v1125, %v1344
      %v1569 = vsel %vm1539, %v1126, %v1346
      %v1570 = vsel %vm1539, %v1127, %v1348
      %v1571 = vsel %vm1539, %v1128, %v1350
      %v1572 = vsel %vm1539, %v1129, %v1352
      %v1573 = vsel %vm1539, %v1130, %v1354
      %v1574 = vsel %vm1539, %v1131, %v1356
      %v1575 = vsel %vm1539, %v1132, %v1358
      %vm1576 = vcmask 392192
      %v1577 = vsel %vm1576, %v1540, %v1432
      %v1578 = vsel %vm1576, %v1541, %v1434
      %v1579 = vsel %vm1576, %v1542, %v1436
      %v1580 = vsel %vm1576, %v1543, %v1438
      %v1581 = vsel %vm1576, %v1544, %v1440
      %v1582 = vsel %vm1576, %v1545, %v1442
      %v1583 = vsel %vm1576, %v1546, %v1444
      %v1584 = vsel %vm1576, %v1547, %v1446
      %v1585 = vsel %vm1576, %v1548, %v1448
      %v1586 = vsel %vm1576, %v1549, %v1450
      %v1587 = vsel %vm1576, %v1550, %v1452
      %v1588 = vsel %vm1576, %v1551, %v1454
      %v1589 = vsel %vm1576, %v1552, %v1456
      %v1590 = vsel %vm1576, %v1553, %v1458
      %v1591 = vsel %vm1576, %v1554, %v1460
      %v1592 = vsel %vm1576, %v1555, %v1462
      %v1593 = vsel %vm1576, %v1556, %v1464
      %v1594 = vsel %vm1576, %v1557, %v1466
      %v1595 = vsel %vm1576, %v1558, %v1468
      %v1596 = vsel %vm1576, %v1559, %v1470
      %v1597 = vsel %vm1576, %v1560, %v1472
      %v1598 = vsel %vm1576, %v1561, %v1474
      %v1599 = vsel %vm1576, %v1562, %v1476
      %v1600 = vsel %vm1576, %v1563, %v1478
      %v1601 = vsel %vm1576, %v1564, %v1480
      %v1602 = vsel %vm1576, %v1565, %v1482
      %v1603 = vsel %vm1576, %v1566, %v1484
      %v1604 = vsel %vm1576, %v1567, %v1486
      %v1605 = vsel %vm1576, %v1568, %v1488
      %v1606 = vsel %vm1576, %v1569, %v1490
      %v1607 = vsel %vm1576, %v1570, %v1492
      %v1608 = vsel %vm1576, %v1571, %v1494
      %v1609 = vsel %vm1576, %v1572, %v1496
      %v1610 = vsel %vm1576, %v1573, %v1498
      %v1611 = vsel %vm1576, %v1574, %v1500
      %v1612 = vsel %vm1576, %v1575, %v1502
      %vm1613 = vcmask 588800
      %1614 = vst.msk [vmem:[#allocation2] sm:$0xff] %vm1613, %v1577
      %1615 = vst.msk [vmem:[#allocation2 + $0x8] sm:$0xff] %vm1613, %v1578
      %1616 = vst.msk [vmem:[#allocation2 + $0x10] sm:$0xff] %vm1613, %v1579
      %1617 = vst.msk [vmem:[#allocation2 + $0x18] sm:$0xff] %vm1613, %v1580
      %1618 = vst.msk [vmem:[#allocation2 + $0x20] sm:$0xff] %vm1613, %v1581
      %1619 = vst.msk [vmem:[#allocation2 + $0x28] sm:$0xff] %vm1613, %v1582
      %1620 = vst.msk [vmem:[#allocation2 + $0x30] sm:$0xff] %vm1613, %v1583
      %1621 = vst.msk [vmem:[#allocation2 + $0x38] sm:$0xff] %vm1613, %v1584
      %1622 = vst.msk [vmem:[#allocation2 + $0x40] sm:$0xff] %vm1613, %v1585
      %1623 = vst.msk [vmem:[#allocation2 + $0x48] sm:$0xff] %vm1613, %v1586
      %1624 = vst.msk [vmem:[#allocation2 + $0x50] sm:$0xff] %vm1613, %v1587
      %1625 = vst.msk [vmem:[#allocation2 + $0x58] sm:$0xff] %vm1613, %v1588
      %1626 = vst.msk [vmem:[#allocation2 + $0x60] sm:$0xff] %vm1613, %v1589
      %1627 = vst.msk [vmem:[#allocation2 + $0x68] sm:$0xff] %vm1613, %v1590
      %1628 = vst.msk [vmem:[#allocation2 + $0x70] sm:$0xff] %vm1613, %v1591
      %1629 = vst.msk [vmem:[#allocation2 + $0x78] sm:$0xff] %vm1613, %v1592
      %1630 = vst.msk [vmem:[#allocation2 + $0x80] sm:$0xff] %vm1613, %v1593
      %1631 = vst.msk [vmem:[#allocation2 + $0x88] sm:$0xff] %vm1613, %v1594
      %1632 = vst.msk [vmem:[#allocation2 + $0x90] sm:$0xff] %vm1613, %v1595
      %1633 = vst.msk [vmem:[#allocation2 + $0x98] sm:$0xff] %vm1613, %v1596
      %1634 = vst.msk [vmem:[#allocation2 + $0xa0] sm:$0xff] %vm1613, %v1597
      %1635 = vst.msk [vmem:[#allocation2 + $0xa8] sm:$0xff] %vm1613, %v1598
      %1636 = vst.msk [vmem:[#allocation2 + $0xb0] sm:$0xff] %vm1613, %v1599
      %1637 = vst.msk [vmem:[#allocation2 + $0xb8] sm:$0xff] %vm1613, %v1600
      %1638 = vst.msk [vmem:[#allocation2 + $0xc0] sm:$0xff] %vm1613, %v1601
      %1639 = vst.msk [vmem:[#allocation2 + $0xc8] sm:$0xff] %vm1613, %v1602
      %1640 = vst.msk [vmem:[#allocation2 + $0xd0] sm:$0xff] %vm1613, %v1603
      %1641 = vst.msk [vmem:[#allocation2 + $0xd8] sm:$0xff] %vm1613, %v1604
      %1642 = vst.msk [vmem:[#allocation2 + $0xe0] sm:$0xff] %vm1613, %v1605
      %1643 = vst.msk [vmem:[#allocation2 + $0xe8] sm:$0xff] %vm1613, %v1606
      %1644 = vst.msk [vmem:[#allocation2 + $0xf0] sm:$0xff] %vm1613, %v1607
      %1645 = vst.msk [vmem:[#allocation2 + $0xf8] sm:$0xff] %vm1613, %v1608
      %1646 = vst.msk [vmem:[#allocation2 + $0x100] sm:$0xff] %vm1613, %v1609
      %1647 = vst.msk [vmem:[#allocation2 + $0x108] sm:$0xff] %vm1613, %v1610
      %1648 = vst.msk [vmem:[#allocation2 + $0x110] sm:$0xff] %vm1613, %v1611
      %1649 = vst.msk [vmem:[#allocation2 + $0x118] sm:$0xff] %vm1613, %v1612
      %p1650 = scmp.eq.s32.totalorder %s29, 0
      // Predicated region
      $region73: #{tpu_custom_call.1} parent=71 // pred_check
        %p1651 = pneg %p1650
      $region74: #{tpu_custom_call.1} parent=71 // pred_check_branch
        %1653 = sbr.rel (%p1651) target = $region76
      $region75: #{tpu_custom_call.1} parent=71 // pred_region
        %1654 = vst.msk [vmem:[#allocation2] sm:$0xff] %vm1613, 0.0
        %1655 = vst.msk [vmem:[#allocation2 + $0x8] sm:$0xff] %vm1613, 0.0
        %1656 = vst.msk [vmem:[#allocation2 + $0x10] sm:$0xff] %vm1613, 0.0
        %1657 = vst.msk [vmem:[#allocation2 + $0x18] sm:$0xff] %vm1613, 0.0
        %1658 = vst.msk [vmem:[#allocation2 + $0x20] sm:$0xff] %vm1613, 0.0
        %1659 = vst.msk [vmem:[#allocation2 + $0x28] sm:$0xff] %vm1613, 0.0
      $region76: #{tpu_custom_call.1} parent=71 // pred_fallthru
        _
      %p1660 = scmp.eq.s32.totalorder %s29, 2
      // Predicated region
      $region77: #{tpu_custom_call.1} parent=71 // pred_check
        %p1661 = pneg %p1660
      $region78: #{tpu_custom_call.1} parent=71 // pred_check_branch
        %1663 = sbr.rel (%p1661) target = $region80
      $region79: #{tpu_custom_call.1} parent=71 // pred_region
        %s1664 = scalar_lea.vmem [#allocation2], 240
        %1665 = vst.msk [vmem:[%s1664] sm:$0xff] %vm1613, 0.0
        %1666 = vst.msk [vmem:[%s1664 + $0x8] sm:$0xff] %vm1613, 0.0
        %1667 = vst.msk [vmem:[%s1664 + $0x10] sm:$0xff] %vm1613, 0.0
        %1668 = vst.msk [vmem:[%s1664 + $0x18] sm:$0xff] %vm1613, 0.0
        %1669 = vst.msk [vmem:[%s1664 + $0x20] sm:$0xff] %vm1613, 0.0
        %1670 = vst.msk [vmem:[%s1664 + $0x28] sm:$0xff] %vm1613, 0.0
      $region80: #{tpu_custom_call.1} parent=71 // pred_fallthru
        _
      %v1671 = vld [vmem:[#allocation2] sm:$0xff]
      %v1672 = vld [vmem:[#allocation2 + $0x8] sm:$0xff]
      %v1673 = vld [vmem:[#allocation2 + $0x10] sm:$0xff]
      %v1674 = vld [vmem:[#allocation2 + $0x18] sm:$0xff]
      %v1675 = vld [vmem:[#allocation2 + $0x20] sm:$0xff]
      %v1676 = vld [vmem:[#allocation2 + $0x28] sm:$0xff]
      %v1677 = vld [vmem:[#allocation2 + $0x30] sm:$0xff]
      %v1678 = vld [vmem:[#allocation2 + $0x38] sm:$0xff]
      %v1679 = vld [vmem:[#allocation2 + $0x40] sm:$0xff]
      %v1680 = vld [vmem:[#allocation2 + $0x48] sm:$0xff]
      %v1681 = vld [vmem:[#allocation2 + $0x50] sm:$0xff]
      %v1682 = vld [vmem:[#allocation2 + $0x58] sm:$0xff]
      %v1683 = vld [vmem:[#allocation2 + $0x60] sm:$0xff]
      %v1684 = vld [vmem:[#allocation2 + $0x68] sm:$0xff]
      %v1685 = vld [vmem:[#allocation2 + $0x70] sm:$0xff]
      %v1686 = vld [vmem:[#allocation2 + $0x78] sm:$0xff]
      %v1687 = vld [vmem:[#allocation2 + $0x80] sm:$0xff]
      %v1688 = vld [vmem:[#allocation2 + $0x88] sm:$0xff]
      %v1689 = vld [vmem:[#allocation2 + $0x90] sm:$0xff]
      %v1690 = vld [vmem:[#allocation2 + $0x98] sm:$0xff]
      %v1691 = vld [vmem:[#allocation2 + $0xa0] sm:$0xff]
      %v1692 = vld [vmem:[#allocation2 + $0xa8] sm:$0xff]
      %v1693 = vld [vmem:[#allocation2 + $0xb0] sm:$0xff]
      %v1694 = vld [vmem:[#allocation2 + $0xb8] sm:$0xff]
      %v1695 = vld [vmem:[#allocation2 + $0xc0] sm:$0xff]
      %v1696 = vld [vmem:[#allocation2 + $0xc8] sm:$0xff]
      %v1697 = vld [vmem:[#allocation2 + $0xd0] sm:$0xff]
      %v1698 = vld [vmem:[#allocation2 + $0xd8] sm:$0xff]
      %v1699 = vld [vmem:[#allocation2 + $0xe0] sm:$0xff]
      %v1700 = vld [vmem:[#allocation2 + $0xe8] sm:$0xff]
      %v1701 = vld [vmem:[%s2] sm:$0xff]
      %v1702 = vld [vmem:[%s2 + $0x8] sm:$0xff]
      %v1703 = vld [vmem:[%s2 + $0x10] sm:$0xff]
      %v1704 = vld [vmem:[%s2 + $0x18] sm:$0xff]
      %v1705 = vld [vmem:[%s2 + $0x20] sm:$0xff]
      %v1706 = vld [vmem:[%s2 + $0x28] sm:$0xff]
      %v1707 = vld [vmem:[%s2 + $0x30] sm:$0xff]
      %v1708 = vld [vmem:[%s2 + $0x38] sm:$0xff]
      %v1709 = vld [vmem:[%s2 + $0x40] sm:$0xff]
      %s1710 = scalar_lea.vmem [#allocation2], 24
      %v1711 = vld [vmem:[%s1710] sm:$0xff]
      %v1712 = vld [vmem:[%s1710 + $0x8] sm:$0xff]
      %v1713 = vld [vmem:[%s1710 + $0x10] sm:$0xff]
      %v1714 = vld [vmem:[%s1710 + $0x18] sm:$0xff]
      %v1715 = vld [vmem:[%s1710 + $0x20] sm:$0xff]
      %v1716 = vld [vmem:[%s1710 + $0x28] sm:$0xff]
      %v1717 = vld [vmem:[%s1710 + $0x30] sm:$0xff]
      %v1718 = vld [vmem:[%s1710 + $0x38] sm:$0xff]
      %v1719 = vld [vmem:[%s1710 + $0x40] sm:$0xff]
      %v1720 = vld [vmem:[%s1710 + $0x48] sm:$0xff]
      %v1721 = vld [vmem:[%s1710 + $0x50] sm:$0xff]
      %v1722 = vld [vmem:[%s1710 + $0x58] sm:$0xff]
      %v1723 = vld [vmem:[%s1710 + $0x60] sm:$0xff]
      %v1724 = vld [vmem:[%s1710 + $0x68] sm:$0xff]
      %v1725 = vld [vmem:[%s1710 + $0x70] sm:$0xff]
      %v1726 = vld [vmem:[%s1710 + $0x78] sm:$0xff]
      %v1727 = vld [vmem:[%s1710 + $0x80] sm:$0xff]
      %v1728 = vld [vmem:[%s1710 + $0x88] sm:$0xff]
      %v1729 = vld [vmem:[%s1710 + $0x90] sm:$0xff]
      %v1730 = vld [vmem:[%s1710 + $0x98] sm:$0xff]
      %v1731 = vld [vmem:[%s1710 + $0xa0] sm:$0xff]
      %v1732 = vld [vmem:[%s1710 + $0xa8] sm:$0xff]
      %v1733 = vld [vmem:[%s1710 + $0xb0] sm:$0xff]
      %v1734 = vld [vmem:[%s1710 + $0xb8] sm:$0xff]
      %v1735 = vld [vmem:[%s1710 + $0xc0] sm:$0xff]
      %v1736 = vld [vmem:[%s1710 + $0xc8] sm:$0xff]
      %v1737 = vld [vmem:[%s1710 + $0xd0] sm:$0xff]
      %v1738 = vld [vmem:[%s1710 + $0xd8] sm:$0xff]
      %v1739 = vld [vmem:[%s1710 + $0xe0] sm:$0xff]
      %v1740 = vld [vmem:[%s1710 + $0xe8] sm:$0xff]
      %s1741 = scalar_lea.vmem %s2, 72
      %v1742 = vld [vmem:[%s1741] sm:$0xff]
      %v1743 = vld [vmem:[%s1741 + $0x8] sm:$0xff]
      %v1744 = vld [vmem:[%s1741 + $0x10] sm:$0xff]
      %v1745 = vld [vmem:[%s1741 + $0x18] sm:$0xff]
      %v1746 = vld [vmem:[%s1741 + $0x20] sm:$0xff]
      %v1747 = vld [vmem:[%s1741 + $0x28] sm:$0xff]
      %v1748 = vld [vmem:[%s1741 + $0x30] sm:$0xff]
      %v1749 = vld [vmem:[%s1741 + $0x38] sm:$0xff]
      %v1750 = vld [vmem:[%s1741 + $0x40] sm:$0xff]
      %v1752 = vsel %vm1613, %v1711, 0
      %v1755 = vsel %vm1613, %v1712, 0
      %v1758 = vsel %vm1613, %v1713, 0
      %v1761 = vsel %vm1613, %v1714, 0
      %v1764 = vsel %vm1613, %v1715, 0
      %v1767 = vsel %vm1613, %v1716, 0
      %v1770 = vsel %vm1613, %v1717, 0
      %v1773 = vsel %vm1613, %v1718, 0
      %v1776 = vsel %vm1613, %v1719, 0
      %v1779 = vsel %vm1613, %v1720, 0
      %v1782 = vsel %vm1613, %v1721, 0
      %v1785 = vsel %vm1613, %v1722, 0
      %v1788 = vsel %vm1613, %v1723, 0
      %v1791 = vsel %vm1613, %v1724, 0
      %v1794 = vsel %vm1613, %v1725, 0
      %v1797 = vsel %vm1613, %v1726, 0
      %v1800 = vsel %vm1613, %v1727, 0
      %v1803 = vsel %vm1613, %v1728, 0
      %v1806 = vsel %vm1613, %v1729, 0
      %v1809 = vsel %vm1613, %v1730, 0
      %v1812 = vsel %vm1613, %v1731, 0
      %v1815 = vsel %vm1613, %v1732, 0
      %v1818 = vsel %vm1613, %v1733, 0
      %v1821 = vsel %vm1613, %v1734, 0
      %v1824 = vsel %vm1613, %v1735, 0
      %v1827 = vsel %vm1613, %v1736, 0
      %v1830 = vsel %vm1613, %v1737, 0
      %v1833 = vsel %vm1613, %v1738, 0
      %v1836 = vsel %vm1613, %v1739, 0
      %v1839 = vsel %vm1613, %v1740, 0
      %1841 = vmatprep.subr.mxu0 0.0
      %1842 = vmatpush1.msra.mxu0 %v1742
      %1843 = vmatprep.subr.mxu0 0.0
      %1844 = vmatpush1.msra.mxu0 %v1743
      %1845 = vmatprep.subr.mxu0 0.0
      %1846 = vmatpush1.msra.mxu0 %v1744
      %1847 = vmatprep.subr.mxu0 0.0
      %1848 = vmatpush1.msra.mxu0 %v1745
      %1849 = vmatprep.subr.mxu0 0.0
      %1850 = vmatpush1.msra.mxu0 %v1746
      %1851 = vmatprep.subr.mxu0 0.0
      %1852 = vmatpush1.msra.mxu0 %v1747
      %1853 = vmatprep.subr.mxu0 0.0
      %1854 = vmatpush1.msra.mxu0 %v1748
      %1855 = vmatprep.subr.mxu0 0.0
      %1856 = vmatpush1.msra.mxu0 %v1749
      %1857 = vmatprep.subr.mxu0 0.0
      %1858 = vmatpush1.msra.mxu0 %v1750
      %1859 = vmatprep.subr.mxu0 0.0
      %1860 = vmatpush1.msra.mxu0 0.0
      %1861 = vmatprep.subr.mxu0 0.0
      %1862 = vmatpush1.msra.mxu0 0.0
      %1863 = vmatprep.subr.mxu0 0.0
      %1864 = vmatpush1.msra.mxu0 0.0
      %1865 = vmatprep.subr.mxu0 0.0
      %1866 = vmatpush1.msra.mxu0 0.0
      %1867 = vmatprep.subr.mxu0 0.0
      %1868 = vmatpush1.msra.mxu0 0.0
      %1869 = vmatprep.subr.mxu0 0.0
      %1870 = vmatpush1.msra.mxu0 0.0
      %1871 = vmatprep.subr.mxu0 0.0
      %1872 = vmatpush1.msra.mxu0 0.0
      %1873 = vmatprep.subr.mxu0 0.0
      %1874 = vmatpush1.msra.mxu0 0.0
      %1875 = vmatprep.subr.mxu0 0.0
      %1876 = vmatpush1.msra.mxu0 0.0
      %1877 = vmatprep.subr.mxu0 0.0
      %1878 = vmatpush1.msra.mxu0 0.0
      %1879 = vmatprep.subr.mxu0 0.0
      %1880 = vmatpush1.msra.mxu0 0.0
      %1881 = vmatprep.subr.mxu0 0.0
      %1882 = vmatpush1.msra.mxu0 0.0
      %1883 = vmatprep.subr.mxu0 0.0
      %1884 = vmatpush1.msra.mxu0 0.0
      %1885 = vmatprep.subr.mxu0 0.0
      %1886 = vmatpush1.msra.mxu0 0.0
      %1887 = vmatprep.subr.mxu0 0.0
      %1888 = vmatpush1.msra.mxu0 0.0
      %1889 = vmatprep.subr.mxu0 0.0
      %1890 = vmatpush1.msra.mxu0 0.0
      %1891 = vmatprep.subr.mxu0 0.0
      %1892 = vmatpush1.msra.mxu0 0.0
      %1893 = vmatprep.subr.mxu0 0.0
      %1894 = vmatpush1.msra.mxu0 0.0
      %1895 = vmatprep.subr.mxu0 0.0
      %1896 = vmatpush1.msra.mxu0 0.0
      %1897 = vmatprep.subr.mxu0 0.0
      %1898 = vmatpush1.msra.mxu0 0.0
      %1899 = vmatprep.subr.mxu0 0.0
      %1900 = vmatpush1.msra.mxu0 0.0
      %1901 = vmatprep.subr.mxu0 0.0
      %1902 = vmatpush1.msra.mxu0 0.0
      %1903 = vmatprep.subr.mxu0 0.0
      %1904 = vmatpush1.msra.mxu0 0.0
      %1905 = vmatprep.mubr.f32.mxu0 0.0
      %1906 = vmatmul.mubr.f32.gmra.mrb[0].mxu0 %v1752
      %v1907 = vpop.f32.mrb[0].mxu0
      %v1908 = vadd.f32 0.0, %v1907
      %v1909 = vpop.f32.mrb[0].mxu0
      %1910 = vmatprep.mubr.f32.mxu0 0.0
      %1911 = vmatmul.mubr.f32.gmra.mrb[0].mxu0 %v1755
      %v1912 = vpop.f32.mrb[0].mxu0
      %v1913 = vadd.f32 0.0, %v1912
      %v1914 = vpop.f32.mrb[0].mxu0
      %1915 = vmatprep.mubr.f32.mxu0 0.0
      %1916 = vmatmul.mubr.f32.gmra.mrb[0].mxu0 %v1758
      %v1917 = vpop.f32.mrb[0].mxu0
      %v1918 = vadd.f32 0.0, %v1917
      %v1919 = vpop.f32.mrb[0].mxu0
      %1920 = vmatprep.mubr.f32.mxu0 0.0
      %1921 = vmatmul.mubr.f32.gmra.mrb[0].mxu0 %v1761
      %v1922 = vpop.f32.mrb[0].mxu0
      %v1923 = vadd.f32 0.0, %v1922
      %v1924 = vpop.f32.mrb[0].mxu0
      %1925 = vmatprep.mubr.f32.mxu0 0.0
      %1926 = vmatmul.mubr.f32.gmra.mrb[0].mxu0 %v1764
      %v1927 = vpop.f32.mrb[0].mxu0
      %v1928 = vadd.f32 0.0, %v1927
      %v1929 = vpop.f32.mrb[0].mxu0
      %1930 = vmatprep.mubr.f32.mxu0 0.0
      %1931 = vmatmul.mubr.f32.gmra.mrb[0].mxu0 %v1767
      %v1932 = vpop.f32.mrb[0].mxu0
      %v1933 = vadd.f32 0.0, %v1932
      %v1934 = vpop.f32.mrb[0].mxu0
      %1935 = vmatprep.mubr.f32.mxu0 0.0
      %1936 = vmatmul.mubr.f32.gmra.mrb[0].mxu0 %v1770
      %v1937 = vpop.f32.mrb[0].mxu0
      %v1938 = vadd.f32 0.0, %v1937
      %v1939 = vpop.f32.mrb[0].mxu0
      %1940 = vmatprep.mubr.f32.mxu0 0.0
      %1941 = vmatmul.mubr.f32.gmra.mrb[0].mxu0 %v1773
      %v1942 = vpop.f32.mrb[0].mxu0
      %v1943 = vadd.f32 0.0, %v1942
      %v1944 = vpop.f32.mrb[0].mxu0
      %1945 = vmatprep.mubr.f32.mxu0 0.0
      %1946 = vmatmul.mubr.f32.gmra.mrb[0].mxu0 %v1776
      %v1947 = vpop.f32.mrb[0].mxu0
      %v1948 = vadd.f32 0.0, %v1947
      %v1949 = vpop.f32.mrb[0].mxu0
      %1950 = vmatprep.mubr.f32.mxu0 0.0
      %1951 = vmatmul.mubr.f32.gmra.mrb[0].mxu0 %v1779
      %v1952 = vpop.f32.mrb[0].mxu0
      %v1953 = vadd.f32 0.0, %v1952
      %v1954 = vpop.f32.mrb[0].mxu0
      %1955 = vmatprep.mubr.f32.mxu0 0.0
      %1956 = vmatmul.mubr.f32.gmra.mrb[0].mxu0 %v1782
      %v1957 = vpop.f32.mrb[0].mxu0
      %v1958 = vadd.f32 0.0, %v1957
      %v1959 = vpop.f32.mrb[0].mxu0
      %1960 = vmatprep.mubr.f32.mxu0 0.0
      %1961 = vmatmul.mubr.f32.gmra.mrb[0].mxu0 %v1785
      %v1962 = vpop.f32.mrb[0].mxu0
      %v1963 = vadd.f32 0.0, %v1962
      %v1964 = vpop.f32.mrb[0].mxu0
      %1965 = vmatprep.mubr.f32.mxu0 0.0
      %1966 = vmatmul.mubr.f32.gmra.mrb[0].mxu0 %v1788
      %v1967 = vpop.f32.mrb[0].mxu0
      %v1968 = vadd.f32 0.0, %v1967
      %v1969 = vpop.f32.mrb[0].mxu0
      %1970 = vmatprep.mubr.f32.mxu0 0.0
      %1971 = vmatmul.mubr.f32.gmra.mrb[0].mxu0 %v1791
      %v1972 = vpop.f32.mrb[0].mxu0
      %v1973 = vadd.f32 0.0, %v1972
      %v1974 = vpop.f32.mrb[0].mxu0
      %1975 = vmatprep.mubr.f32.mxu0 0.0
      %1976 = vmatmul.mubr.f32.gmra.mrb[0].mxu0 %v1794
      %v1977 = vpop.f32.mrb[0].mxu0
      %v1978 = vadd.f32 0.0, %v1977
      %v1979 = vpop.f32.mrb[0].mxu0
      %1980 = vmatprep.mubr.f32.mxu0 0.0
      %1981 = vmatmul.mubr.f32.gmra.mrb[0].mxu0 %v1797
      %v1982 = vpop.f32.mrb[0].mxu0
      %v1983 = vadd.f32 0.0, %v1982
      %v1984 = vpop.f32.mrb[0].mxu0
      %1985 = vmatprep.mubr.f32.mxu0 0.0
      %1986 = vmatmul.mubr.f32.gmra.mrb[0].mxu0 %v1800
      %v1987 = vpop.f32.mrb[0].mxu0
      %v1988 = vadd.f32 0.0, %v1987
      %v1989 = vpop.f32.mrb[0].mxu0
      %1990 = vmatprep.mubr.f32.mxu0 0.0
      %1991 = vmatmul.mubr.f32.gmra.mrb[0].mxu0 %v1803
      %v1992 = vpop.f32.mrb[0].mxu0
      %v1993 = vadd.f32 0.0, %v1992
      %v1994 = vpop.f32.mrb[0].mxu0
      %1995 = vmatprep.mubr.f32.mxu0 0.0
      %1996 = vmatmul.mubr.f32.gmra.mrb[0].mxu0 %v1806
      %v1997 = vpop.f32.mrb[0].mxu0
      %v1998 = vadd.f32 0.0, %v1997
      %v1999 = vpop.f32.mrb[0].mxu0
      %2000 = vmatprep.mubr.f32.mxu0 0.0
      %2001 = vmatmul.mubr.f32.gmra.mrb[0].mxu0 %v1809
      %v2002 = vpop.f32.mrb[0].mxu0
      %v2003 = vadd.f32 0.0, %v2002
      %v2004 = vpop.f32.mrb[0].mxu0
      %2005 = vmatprep.mubr.f32.mxu0 0.0
      %2006 = vmatmul.mubr.f32.gmra.mrb[0].mxu0 %v1812
      %v2007 = vpop.f32.mrb[0].mxu0
      %v2008 = vadd.f32 0.0, %v2007
      %v2009 = vpop.f32.mrb[0].mxu0
      %2010 = vmatprep.mubr.f32.mxu0 0.0
      %2011 = vmatmul.mubr.f32.gmra.mrb[0].mxu0 %v1815
      %v2012 = vpop.f32.mrb[0].mxu0
      %v2013 = vadd.f32 0.0, %v2012
      %v2014 = vpop.f32.mrb[0].mxu0
      %2015 = vmatprep.mubr.f32.mxu0 0.0
      %2016 = vmatmul.mubr.f32.gmra.mrb[0].mxu0 %v1818
      %v2017 = vpop.f32.mrb[0].mxu0
      %v2018 = vadd.f32 0.0, %v2017
      %v2019 = vpop.f32.mrb[0].mxu0
      %2020 = vmatprep.mubr.f32.mxu0 0.0
      %2021 = vmatmul.mubr.f32.gmra.mrb[0].mxu0 %v1821
      %v2022 = vpop.f32.mrb[0].mxu0
      %v2023 = vadd.f32 0.0, %v2022
      %v2024 = vpop.f32.mrb[0].mxu0
      %2025 = vmatprep.mubr.f32.mxu0 0.0
      %2026 = vmatmul.mubr.f32.gmra.mrb[0].mxu0 %v1824
      %v2027 = vpop.f32.mrb[0].mxu0
      %v2028 = vadd.f32 0.0, %v2027
      %v2029 = vpop.f32.mrb[0].mxu0
      %2030 = vmatprep.mubr.f32.mxu0 0.0
      %2031 = vmatmul.mubr.f32.gmra.mrb[0].mxu0 %v1827
      %v2032 = vpop.f32.mrb[0].mxu0
      %v2033 = vadd.f32 0.0, %v2032
      %v2034 = vpop.f32.mrb[0].mxu0
      %2035 = vmatprep.mubr.f32.mxu0 0.0
      %2036 = vmatmul.mubr.f32.gmra.mrb[0].mxu0 %v1830
      %v2037 = vpop.f32.mrb[0].mxu0
      %v2038 = vadd.f32 0.0, %v2037
      %v2039 = vpop.f32.mrb[0].mxu0
      %2040 = vmatprep.mubr.f32.mxu0 0.0
      %2041 = vmatmul.mubr.f32.gmra.mrb[0].mxu0 %v1833
      %v2042 = vpop.f32.mrb[0].mxu0
      %v2043 = vadd.f32 0.0, %v2042
      %v2044 = vpop.f32.mrb[0].mxu0
      %2045 = vmatprep.mubr.f32.mxu0 0.0
      %2046 = vmatmul.mubr.f32.gmra.mrb[0].mxu0 %v1836
      %v2047 = vpop.f32.mrb[0].mxu0
      %v2048 = vadd.f32 0.0, %v2047
      %v2049 = vpop.f32.mrb[0].mxu0
      %2050 = vmatprep.mubr.f32.mxu0 0.0
      %2051 = vmatmul.mubr.f32.gmra.mrb[0].mxu0 %v1839
      %v2052 = vpop.f32.mrb[0].mxu0
      %v2053 = vadd.f32 0.0, %v2052
      %v2054 = vpop.f32.mrb[0].mxu0
      %2055 = vdwg.mxu0
      %v2057 = vsel %vm1613, %v1671, 0
      %v2060 = vsel %vm1613, %v1672, 0
      %v2063 = vsel %vm1613, %v1673, 0
      %v2066 = vsel %vm1613, %v1674, 0
      %v2069 = vsel %vm1613, %v1675, 0
      %v2072 = vsel %vm1613, %v1676, 0
      %v2075 = vsel %vm1613, %v1677, 0
      %v2078 = vsel %vm1613, %v1678, 0
      %v2081 = vsel %vm1613, %v1679, 0
      %v2084 = vsel %vm1613, %v1680, 0
      %v2087 = vsel %vm1613, %v1681, 0
      %v2090 = vsel %vm1613, %v1682, 0
      %v2093 = vsel %vm1613, %v1683, 0
      %v2096 = vsel %vm1613, %v1684, 0
      %v2099 = vsel %vm1613, %v1685, 0
      %v2102 = vsel %vm1613, %v1686, 0
      %v2105 = vsel %vm1613, %v1687, 0
      %v2108 = vsel %vm1613, %v1688, 0
      %v2111 = vsel %vm1613, %v1689, 0
      %v2114 = vsel %vm1613, %v1690, 0
      %v2117 = vsel %vm1613, %v1691, 0
      %v2120 = vsel %vm1613, %v1692, 0
      %v2123 = vsel %vm1613, %v1693, 0
      %v2126 = vsel %vm1613, %v1694, 0
      %v2129 = vsel %vm1613, %v1695, 0
      %v2132 = vsel %vm1613, %v1696, 0
      %v2135 = vsel %vm1613, %v1697, 0
      %v2138 = vsel %vm1613, %v1698, 0
      %v2141 = vsel %vm1613, %v1699, 0
      %v2144 = vsel %vm1613, %v1700, 0
      %2146 = vmatprep.subr.mxu0 0.0
      %2147 = vmatpush1.msra.mxu0 %v1701
      %2148 = vmatprep.subr.mxu0 0.0
      %2149 = vmatpush1.msra.mxu0 %v1702
      %2150 = vmatprep.subr.mxu0 0.0
      %2151 = vmatpush1.msra.mxu0 %v1703
      %2152 = vmatprep.subr.mxu0 0.0
      %2153 = vmatpush1.msra.mxu0 %v1704
      %2154 = vmatprep.subr.mxu0 0.0
      %2155 = vmatpush1.msra.mxu0 %v1705
      %2156 = vmatprep.subr.mxu0 0.0
      %2157 = vmatpush1.msra.mxu0 %v1706
      %2158 = vmatprep.subr.mxu0 0.0
      %2159 = vmatpush1.msra.mxu0 %v1707
      %2160 = vmatprep.subr.mxu0 0.0
      %2161 = vmatpush1.msra.mxu0 %v1708
      %2162 = vmatprep.subr.mxu0 0.0
      %2163 = vmatpush1.msra.mxu0 %v1709
      %2164 = vmatprep.subr.mxu0 0.0
      %2165 = vmatpush1.msra.mxu0 0.0
      %2166 = vmatprep.subr.mxu0 0.0
      %2167 = vmatpush1.msra.mxu0 0.0
      %2168 = vmatprep.subr.mxu0 0.0
      %2169 = vmatpush1.msra.mxu0 0.0
      %2170 = vmatprep.subr.mxu0 0.0
      %2171 = vmatpush1.msra.mxu0 0.0
      %2172 = vmatprep.subr.mxu0 0.0
      %2173 = vmatpush1.msra.mxu0 0.0
      %2174 = vmatprep.subr.mxu0 0.0
      %2175 = vmatpush1.msra.mxu0 0.0
      %2176 = vmatprep.subr.mxu0 0.0
      %2177 = vmatpush1.msra.mxu0 0.0
      %2178 = vmatprep.subr.mxu0 0.0
      %2179 = vmatpush1.msra.mxu0 0.0
      %2180 = vmatprep.subr.mxu0 0.0
      %2181 = vmatpush1.msra.mxu0 0.0
      %2182 = vmatprep.subr.mxu0 0.0
      %2183 = vmatpush1.msra.mxu0 0.0
      %2184 = vmatprep.subr.mxu0 0.0
      %2185 = vmatpush1.msra.mxu0 0.0
      %2186 = vmatprep.subr.mxu0 0.0
      %2187 = vmatpush1.msra.mxu0 0.0
      %2188 = vmatprep.subr.mxu0 0.0
      %2189 = vmatpush1.msra.mxu0 0.0
      %2190 = vmatprep.subr.mxu0 0.0
      %2191 = vmatpush1.msra.mxu0 0.0
      %2192 = vmatprep.subr.mxu0 0.0
      %2193 = vmatpush1.msra.mxu0 0.0
      %2194 = vmatprep.subr.mxu0 0.0
      %2195 = vmatpush1.msra.mxu0 0.0
      %2196 = vmatprep.subr.mxu0 0.0
      %2197 = vmatpush1.msra.mxu0 0.0
      %2198 = vmatprep.subr.mxu0 0.0
      %2199 = vmatpush1.msra.mxu0 0.0
      %2200 = vmatprep.subr.mxu0 0.0
      %2201 = vmatpush1.msra.mxu0 0.0
      %2202 = vmatprep.subr.mxu0 0.0
      %2203 = vmatpush1.msra.mxu0 0.0
      %2204 = vmatprep.subr.mxu0 0.0
      %2205 = vmatpush1.msra.mxu0 0.0
      %2206 = vmatprep.subr.mxu0 0.0
      %2207 = vmatpush1.msra.mxu0 0.0
      %2208 = vmatprep.subr.mxu0 0.0
      %2209 = vmatpush1.msra.mxu0 0.0
      %2210 = vmatprep.mubr.f32.mxu0 0.0
      %2211 = vmatmul.mubr.f32.gmra.mrb[0].mxu0 %v2057
      %v2212 = vpop.f32.mrb[0].mxu0
      %v2213 = vadd.f32 %v1908, %v2212
      %v2214 = vpop.f32.mrb[0].mxu0
      %2215 = vmatprep.mubr.f32.mxu0 0.0
      %2216 = vmatmul.mubr.f32.gmra.mrb[0].mxu0 %v2060
      %v2217 = vpop.f32.mrb[0].mxu0
      %v2218 = vadd.f32 %v1913, %v2217
      %v2219 = vpop.f32.mrb[0].mxu0
      %2220 = vmatprep.mubr.f32.mxu0 0.0
      %2221 = vmatmul.mubr.f32.gmra.mrb[0].mxu0 %v2063
      %v2222 = vpop.f32.mrb[0].mxu0
      %v2223 = vadd.f32 %v1918, %v2222
      %v2224 = vpop.f32.mrb[0].mxu0
      %2225 = vmatprep.mubr.f32.mxu0 0.0
      %2226 = vmatmul.mubr.f32.gmra.mrb[0].mxu0 %v2066
      %v2227 = vpop.f32.mrb[0].mxu0
      %v2228 = vadd.f32 %v1923, %v2227
      %v2229 = vpop.f32.mrb[0].mxu0
      %2230 = vmatprep.mubr.f32.mxu0 0.0
      %2231 = vmatmul.mubr.f32.gmra.mrb[0].mxu0 %v2069
      %v2232 = vpop.f32.mrb[0].mxu0
      %v2233 = vadd.f32 %v1928, %v2232
      %v2234 = vpop.f32.mrb[0].mxu0
      %2235 = vmatprep.mubr.f32.mxu0 0.0
      %2236 = vmatmul.mubr.f32.gmra.mrb[0].mxu0 %v2072
      %v2237 = vpop.f32.mrb[0].mxu0
      %v2238 = vadd.f32 %v1933, %v2237
      %v2239 = vpop.f32.mrb[0].mxu0
      %2240 = vmatprep.mubr.f32.mxu0 0.0
      %2241 = vmatmul.mubr.f32.gmra.mrb[0].mxu0 %v2075
      %v2242 = vpop.f32.mrb[0].mxu0
      %v2243 = vadd.f32 %v1938, %v2242
      %v2244 = vpop.f32.mrb[0].mxu0
      %2245 = vmatprep.mubr.f32.mxu0 0.0
      %2246 = vmatmul.mubr.f32.gmra.mrb[0].mxu0 %v2078
      %v2247 = vpop.f32.mrb[0].mxu0
      %v2248 = vadd.f32 %v1943, %v2247
      %v2249 = vpop.f32.mrb[0].mxu0
      %2250 = vmatprep.mubr.f32.mxu0 0.0
      %2251 = vmatmul.mubr.f32.gmra.mrb[0].mxu0 %v2081
      %v2252 = vpop.f32.mrb[0].mxu0
      %v2253 = vadd.f32 %v1948, %v2252
      %v2254 = vpop.f32.mrb[0].mxu0
      %2255 = vmatprep.mubr.f32.mxu0 0.0
      %2256 = vmatmul.mubr.f32.gmra.mrb[0].mxu0 %v2084
      %v2257 = vpop.f32.mrb[0].mxu0
      %v2258 = vadd.f32 %v1953, %v2257
      %v2259 = vpop.f32.mrb[0].mxu0
      %2260 = vmatprep.mubr.f32.mxu0 0.0
      %2261 = vmatmul.mubr.f32.gmra.mrb[0].mxu0 %v2087
      %v2262 = vpop.f32.mrb[0].mxu0
      %v2263 = vadd.f32 %v1958, %v2262
      %v2264 = vpop.f32.mrb[0].mxu0
      %2265 = vmatprep.mubr.f32.mxu0 0.0
      %2266 = vmatmul.mubr.f32.gmra.mrb[0].mxu0 %v2090
      %v2267 = vpop.f32.mrb[0].mxu0
      %v2268 = vadd.f32 %v1963, %v2267
      %v2269 = vpop.f32.mrb[0].mxu0
      %2270 = vmatprep.mubr.f32.mxu0 0.0
      %2271 = vmatmul.mubr.f32.gmra.mrb[0].mxu0 %v2093
      %v2272 = vpop.f32.mrb[0].mxu0
      %v2273 = vadd.f32 %v1968, %v2272
      %v2274 = vpop.f32.mrb[0].mxu0
      %2275 = vmatprep.mubr.f32.mxu0 0.0
      %2276 = vmatmul.mubr.f32.gmra.mrb[0].mxu0 %v2096
      %v2277 = vpop.f32.mrb[0].mxu0
      %v2278 = vadd.f32 %v1973, %v2277
      %v2279 = vpop.f32.mrb[0].mxu0
      %2280 = vmatprep.mubr.f32.mxu0 0.0
      %2281 = vmatmul.mubr.f32.gmra.mrb[0].mxu0 %v2099
      %v2282 = vpop.f32.mrb[0].mxu0
      %v2283 = vadd.f32 %v1978, %v2282
      %v2284 = vpop.f32.mrb[0].mxu0
      %2285 = vmatprep.mubr.f32.mxu0 0.0
      %2286 = vmatmul.mubr.f32.gmra.mrb[0].mxu0 %v2102
      %v2287 = vpop.f32.mrb[0].mxu0
      %v2288 = vadd.f32 %v1983, %v2287
      %v2289 = vpop.f32.mrb[0].mxu0
      %2290 = vmatprep.mubr.f32.mxu0 0.0
      %2291 = vmatmul.mubr.f32.gmra.mrb[0].mxu0 %v2105
      %v2292 = vpop.f32.mrb[0].mxu0
      %v2293 = vadd.f32 %v1988, %v2292
      %v2294 = vpop.f32.mrb[0].mxu0
      %2295 = vmatprep.mubr.f32.mxu0 0.0
      %2296 = vmatmul.mubr.f32.gmra.mrb[0].mxu0 %v2108
      %v2297 = vpop.f32.mrb[0].mxu0
      %v2298 = vadd.f32 %v1993, %v2297
      %v2299 = vpop.f32.mrb[0].mxu0
      %2300 = vmatprep.mubr.f32.mxu0 0.0
      %2301 = vmatmul.mubr.f32.gmra.mrb[0].mxu0 %v2111
      %v2302 = vpop.f32.mrb[0].mxu0
      %v2303 = vadd.f32 %v1998, %v2302
      %v2304 = vpop.f32.mrb[0].mxu0
      %2305 = vmatprep.mubr.f32.mxu0 0.0
      %2306 = vmatmul.mubr.f32.gmra.mrb[0].mxu0 %v2114
      %v2307 = vpop.f32.mrb[0].mxu0
      %v2308 = vadd.f32 %v2003, %v2307
      %v2309 = vpop.f32.mrb[0].mxu0
      %2310 = vmatprep.mubr.f32.mxu0 0.0
      %2311 = vmatmul.mubr.f32.gmra.mrb[0].mxu0 %v2117
      %v2312 = vpop.f32.mrb[0].mxu0
      %v2313 = vadd.f32 %v2008, %v2312
      %v2314 = vpop.f32.mrb[0].mxu0
      %2315 = vmatprep.mubr.f32.mxu0 0.0
      %2316 = vmatmul.mubr.f32.gmra.mrb[0].mxu0 %v2120
      %v2317 = vpop.f32.mrb[0].mxu0
      %v2318 = vadd.f32 %v2013, %v2317
      %v2319 = vpop.f32.mrb[0].mxu0
      %2320 = vmatprep.mubr.f32.mxu0 0.0
      %2321 = vmatmul.mubr.f32.gmra.mrb[0].mxu0 %v2123
      %v2322 = vpop.f32.mrb[0].mxu0
      %v2323 = vadd.f32 %v2018, %v2322
      %v2324 = vpop.f32.mrb[0].mxu0
      %2325 = vmatprep.mubr.f32.mxu0 0.0
      %2326 = vmatmul.mubr.f32.gmra.mrb[0].mxu0 %v2126
      %v2327 = vpop.f32.mrb[0].mxu0
      %v2328 = vadd.f32 %v2023, %v2327
      %v2329 = vpop.f32.mrb[0].mxu0
      %2330 = vmatprep.mubr.f32.mxu0 0.0
      %2331 = vmatmul.mubr.f32.gmra.mrb[0].mxu0 %v2129
      %v2332 = vpop.f32.mrb[0].mxu0
      %v2333 = vadd.f32 %v2028, %v2332
      %v2334 = vpop.f32.mrb[0].mxu0
      %2335 = vmatprep.mubr.f32.mxu0 0.0
      %2336 = vmatmul.mubr.f32.gmra.mrb[0].mxu0 %v2132
      %v2337 = vpop.f32.mrb[0].mxu0
      %v2338 = vadd.f32 %v2033, %v2337
      %v2339 = vpop.f32.mrb[0].mxu0
      %2340 = vmatprep.mubr.f32.mxu0 0.0
      %2341 = vmatmul.mubr.f32.gmra.mrb[0].mxu0 %v2135
      %v2342 = vpop.f32.mrb[0].mxu0
      %v2343 = vadd.f32 %v2038, %v2342
      %v2344 = vpop.f32.mrb[0].mxu0
      %2345 = vmatprep.mubr.f32.mxu0 0.0
      %2346 = vmatmul.mubr.f32.gmra.mrb[0].mxu0 %v2138
      %v2347 = vpop.f32.mrb[0].mxu0
      %v2348 = vadd.f32 %v2043, %v2347
      %v2349 = vpop.f32.mrb[0].mxu0
      %2350 = vmatprep.mubr.f32.mxu0 0.0
      %2351 = vmatmul.mubr.f32.gmra.mrb[0].mxu0 %v2141
      %v2352 = vpop.f32.mrb[0].mxu0
      %v2353 = vadd.f32 %v2048, %v2352
      %v2354 = vpop.f32.mrb[0].mxu0
      %2355 = vmatprep.mubr.f32.mxu0 0.0
      %2356 = vmatmul.mubr.f32.gmra.mrb[0].mxu0 %v2144
      %v2357 = vpop.f32.mrb[0].mxu0
      %v2358 = vadd.f32 %v2053, %v2357
      %v2359 = vpop.f32.mrb[0].mxu0
      %2360 = vdwg.mxu0
      %s2361 = scalar_lea.vmem [#allocation2], 48
      %v2362 = vld [vmem:[%s2361] sm:$0xff]
      %v2363 = vld [vmem:[%s2361 + $0x8] sm:$0xff]
      %v2364 = vld [vmem:[%s2361 + $0x10] sm:$0xff]
      %v2365 = vld [vmem:[%s2361 + $0x18] sm:$0xff]
      %v2366 = vld [vmem:[%s2361 + $0x20] sm:$0xff]
      %v2367 = vld [vmem:[%s2361 + $0x28] sm:$0xff]
      %v2368 = vld [vmem:[%s2361 + $0x30] sm:$0xff]
      %v2369 = vld [vmem:[%s2361 + $0x38] sm:$0xff]
      %v2370 = vld [vmem:[%s2361 + $0x40] sm:$0xff]
      %v2371 = vld [vmem:[%s2361 + $0x48] sm:$0xff]
      %v2372 = vld [vmem:[%s2361 + $0x50] sm:$0xff]
      %v2373 = vld [vmem:[%s2361 + $0x58] sm:$0xff]
      %v2374 = vld [vmem:[%s2361 + $0x60] sm:$0xff]
      %v2375 = vld [vmem:[%s2361 + $0x68] sm:$0xff]
      %v2376 = vld [vmem:[%s2361 + $0x70] sm:$0xff]
      %v2377 = vld [vmem:[%s2361 + $0x78] sm:$0xff]
      %v2378 = vld [vmem:[%s2361 + $0x80] sm:$0xff]
      %v2379 = vld [vmem:[%s2361 + $0x88] sm:$0xff]
      %v2380 = vld [vmem:[%s2361 + $0x90] sm:$0xff]
      %v2381 = vld [vmem:[%s2361 + $0x98] sm:$0xff]
      %v2382 = vld [vmem:[%s2361 + $0xa0] sm:$0xff]
      %v2383 = vld [vmem:[%s2361 + $0xa8] sm:$0xff]
      %v2384 = vld [vmem:[%s2361 + $0xb0] sm:$0xff]
      %v2385 = vld [vmem:[%s2361 + $0xb8] sm:$0xff]
      %v2386 = vld [vmem:[%s2361 + $0xc0] sm:$0xff]
      %v2387 = vld [vmem:[%s2361 + $0xc8] sm:$0xff]
      %v2388 = vld [vmem:[%s2361 + $0xd0] sm:$0xff]
      %v2389 = vld [vmem:[%s2361 + $0xd8] sm:$0xff]
      %v2390 = vld [vmem:[%s2361 + $0xe0] sm:$0xff]
      %v2391 = vld [vmem:[%s2361 + $0xe8] sm:$0xff]
      %s2392 = scalar_lea.vmem %s2, 144
      %v2393 = vld [vmem:[%s2392] sm:$0xff]
      %v2394 = vld [vmem:[%s2392 + $0x8] sm:$0xff]
      %v2395 = vld [vmem:[%s2392 + $0x10] sm:$0xff]
      %v2396 = vld [vmem:[%s2392 + $0x18] sm:$0xff]
      %v2397 = vld [vmem:[%s2392 + $0x20] sm:$0xff]
      %v2398 = vld [vmem:[%s2392 + $0x28] sm:$0xff]
      %v2399 = vld [vmem:[%s2392 + $0x30] sm:$0xff]
      %v2400 = vld [vmem:[%s2392 + $0x38] sm:$0xff]
      %v2401 = vld [vmem:[%s2392 + $0x40] sm:$0xff]
      %v2403 = vsel %vm1613, %v2362, 0
      %v2406 = vsel %vm1613, %v2363, 0
      %v2409 = vsel %vm1613, %v2364, 0
      %v2412 = vsel %vm1613, %v2365, 0
      %v2415 = vsel %vm1613, %v2366, 0
      %v2418 = vsel %vm1613, %v2367, 0
      %v2421 = vsel %vm1613, %v2368, 0
      %v2424 = vsel %vm1613, %v2369, 0
      %v2427 = vsel %vm1613, %v2370, 0
      %v2430 = vsel %vm1613, %v2371, 0
      %v2433 = vsel %vm1613, %v2372, 0
      %v2436 = vsel %vm1613, %v2373, 0
      %v2439 = vsel %vm1613, %v2374, 0
      %v2442 = vsel %vm1613, %v2375, 0
      %v2445 = vsel %vm1613, %v2376, 0
      %v2448 = vsel %vm1613, %v2377, 0
      %v2451 = vsel %vm1613, %v2378, 0
      %v2454 = vsel %vm1613, %v2379, 0
      %v2457 = vsel %vm1613, %v2380, 0
      %v2460 = vsel %vm1613, %v2381, 0
      %v2463 = vsel %vm1613, %v2382, 0
      %v2466 = vsel %vm1613, %v2383, 0
      %v2469 = vsel %vm1613, %v2384, 0
      %v2472 = vsel %vm1613, %v2385, 0
      %v2475 = vsel %vm1613, %v2386, 0
      %v2478 = vsel %vm1613, %v2387, 0
      %v2481 = vsel %vm1613, %v2388, 0
      %v2484 = vsel %vm1613, %v2389, 0
      %v2487 = vsel %vm1613, %v2390, 0
      %v2490 = vsel %vm1613, %v2391, 0
      %2492 = vmatprep.subr.mxu0 0.0
      %2493 = vmatpush1.msra.mxu0 %v2393
      %2494 = vmatprep.subr.mxu0 0.0
      %2495 = vmatpush1.msra.mxu0 %v2394
      %2496 = vmatprep.subr.mxu0 0.0
      %2497 = vmatpush1.msra.mxu0 %v2395
      %2498 = vmatprep.subr.mxu0 0.0
      %2499 = vmatpush1.msra.mxu0 %v2396
      %2500 = vmatprep.subr.mxu0 0.0
      %2501 = vmatpush1.msra.mxu0 %v2397
      %2502 = vmatprep.subr.mxu0 0.0
      %2503 = vmatpush1.msra.mxu0 %v2398
      %2504 = vmatprep.subr.mxu0 0.0
      %2505 = vmatpush1.msra.mxu0 %v2399
      %2506 = vmatprep.subr.mxu0 0.0
      %2507 = vmatpush1.msra.mxu0 %v2400
      %2508 = vmatprep.subr.mxu0 0.0
      %2509 = vmatpush1.msra.mxu0 %v2401
      %2510 = vmatprep.subr.mxu0 0.0
      %2511 = vmatpush1.msra.mxu0 0.0
      %2512 = vmatprep.subr.mxu0 0.0
      %2513 = vmatpush1.msra.mxu0 0.0
      %2514 = vmatprep.subr.mxu0 0.0
      %2515 = vmatpush1.msra.mxu0 0.0
      %2516 = vmatprep.subr.mxu0 0.0
      %2517 = vmatpush1.msra.mxu0 0.0
      %2518 = vmatprep.subr.mxu0 0.0
      %2519 = vmatpush1.msra.mxu0 0.0
      %2520 = vmatprep.subr.mxu0 0.0
      %2521 = vmatpush1.msra.mxu0 0.0
      %2522 = vmatprep.subr.mxu0 0.0
      %2523 = vmatpush1.msra.mxu0 0.0
      %2524 = vmatprep.subr.mxu0 0.0
      %2525 = vmatpush1.msra.mxu0 0.0
      %2526 = vmatprep.subr.mxu0 0.0
      %2527 = vmatpush1.msra.mxu0 0.0
      %2528 = vmatprep.subr.mxu0 0.0
      %2529 = vmatpush1.msra.mxu0 0.0
      %2530 = vmatprep.subr.mxu0 0.0
      %2531 = vmatpush1.msra.mxu0 0.0
      %2532 = vmatprep.subr.mxu0 0.0
      %2533 = vmatpush1.msra.mxu0 0.0
      %2534 = vmatprep.subr.mxu0 0.0
      %2535 = vmatpush1.msra.mxu0 0.0
      %2536 = vmatprep.subr.mxu0 0.0
      %2537 = vmatpush1.msra.mxu0 0.0
      %2538 = vmatprep.subr.mxu0 0.0
      %2539 = vmatpush1.msra.mxu0 0.0
      %2540 = vmatprep.subr.mxu0 0.0
      %2541 = vmatpush1.msra.mxu0 0.0
      %2542 = vmatprep.subr.mxu0 0.0
      %2543 = vmatpush1.msra.mxu0 0.0
      %2544 = vmatprep.subr.mxu0 0.0
      %2545 = vmatpush1.msra.mxu0 0.0
      %2546 = vmatprep.subr.mxu0 0.0
      %2547 = vmatpush1.msra.mxu0 0.0
      %2548 = vmatprep.subr.mxu0 0.0
      %2549 = vmatpush1.msra.mxu0 0.0
      %2550 = vmatprep.subr.mxu0 0.0
      %2551 = vmatpush1.msra.mxu0 0.0
      %2552 = vmatprep.subr.mxu0 0.0
      %2553 = vmatpush1.msra.mxu0 0.0
      %2554 = vmatprep.subr.mxu0 0.0
      %2555 = vmatpush1.msra.mxu0 0.0
      %2556 = vmatprep.mubr.f32.mxu0 0.0
      %2557 = vmatmul.mubr.f32.gmra.mrb[0].mxu0 %v2403
      %v2558 = vpop.f32.mrb[0].mxu0
      %v2559 = vadd.f32 0.0, %v2558
      %v2560 = vpop.f32.mrb[0].mxu0
      %2561 = vmatprep.mubr.f32.mxu0 0.0
      %2562 = vmatmul.mubr.f32.gmra.mrb[0].mxu0 %v2406
      %v2563 = vpop.f32.mrb[0].mxu0
      %v2564 = vadd.f32 0.0, %v2563
      %v2565 = vpop.f32.mrb[0].mxu0
      %2566 = vmatprep.mubr.f32.mxu0 0.0
      %2567 = vmatmul.mubr.f32.gmra.mrb[0].mxu0 %v2409
      %v2568 = vpop.f32.mrb[0].mxu0
      %v2569 = vadd.f32 0.0, %v2568
      %v2570 = vpop.f32.mrb[0].mxu0
      %2571 = vmatprep.mubr.f32.mxu0 0.0
      %2572 = vmatmul.mubr.f32.gmra.mrb[0].mxu0 %v2412
      %v2573 = vpop.f32.mrb[0].mxu0
      %v2574 = vadd.f32 0.0, %v2573
      %v2575 = vpop.f32.mrb[0].mxu0
      %2576 = vmatprep.mubr.f32.mxu0 0.0
      %2577 = vmatmul.mubr.f32.gmra.mrb[0].mxu0 %v2415
      %v2578 = vpop.f32.mrb[0].mxu0
      %v2579 = vadd.f32 0.0, %v2578
      %v2580 = vpop.f32.mrb[0].mxu0
      %2581 = vmatprep.mubr.f32.mxu0 0.0
      %2582 = vmatmul.mubr.f32.gmra.mrb[0].mxu0 %v2418
      %v2583 = vpop.f32.mrb[0].mxu0
      %v2584 = vadd.f32 0.0, %v2583
      %v2585 = vpop.f32.mrb[0].mxu0
      %2586 = vmatprep.mubr.f32.mxu0 0.0
      %2587 = vmatmul.mubr.f32.gmra.mrb[0].mxu0 %v2421
      %v2588 = vpop.f32.mrb[0].mxu0
      %v2589 = vadd.f32 0.0, %v2588
      %v2590 = vpop.f32.mrb[0].mxu0
      %2591 = vmatprep.mubr.f32.mxu0 0.0
      %2592 = vmatmul.mubr.f32.gmra.mrb[0].mxu0 %v2424
      %v2593 = vpop.f32.mrb[0].mxu0
      %v2594 = vadd.f32 0.0, %v2593
      %v2595 = vpop.f32.mrb[0].mxu0
      %2596 = vmatprep.mubr.f32.mxu0 0.0
      %2597 = vmatmul.mubr.f32.gmra.mrb[0].mxu0 %v2427
      %v2598 = vpop.f32.mrb[0].mxu0
      %v2599 = vadd.f32 0.0, %v2598
      %v2600 = vpop.f32.mrb[0].mxu0
      %2601 = vmatprep.mubr.f32.mxu0 0.0
      %2602 = vmatmul.mubr.f32.gmra.mrb[0].mxu0 %v2430
      %v2603 = vpop.f32.mrb[0].mxu0
      %v2604 = vadd.f32 0.0, %v2603
      %v2605 = vpop.f32.mrb[0].mxu0
      %2606 = vmatprep.mubr.f32.mxu0 0.0
      %2607 = vmatmul.mubr.f32.gmra.mrb[0].mxu0 %v2433
      %v2608 = vpop.f32.mrb[0].mxu0
      %v2609 = vadd.f32 0.0, %v2608
      %v2610 = vpop.f32.mrb[0].mxu0
      %2611 = vmatprep.mubr.f32.mxu0 0.0
      %2612 = vmatmul.mubr.f32.gmra.mrb[0].mxu0 %v2436
      %v2613 = vpop.f32.mrb[0].mxu0
      %v2614 = vadd.f32 0.0, %v2613
      %v2615 = vpop.f32.mrb[0].mxu0
      %2616 = vmatprep.mubr.f32.mxu0 0.0
      %2617 = vmatmul.mubr.f32.gmra.mrb[0].mxu0 %v2439
      %v2618 = vpop.f32.mrb[0].mxu0
      %v2619 = vadd.f32 0.0, %v2618
      %v2620 = vpop.f32.mrb[0].mxu0
      %2621 = vmatprep.mubr.f32.mxu0 0.0
      %2622 = vmatmul.mubr.f32.gmra.mrb[0].mxu0 %v2442
      %v2623 = vpop.f32.mrb[0].mxu0
      %v2624 = vadd.f32 0.0, %v2623
      %v2625 = vpop.f32.mrb[0].mxu0
      %2626 = vmatprep.mubr.f32.mxu0 0.0
      %2627 = vmatmul.mubr.f32.gmra.mrb[0].mxu0 %v2445
      %v2628 = vpop.f32.mrb[0].mxu0
      %v2629 = vadd.f32 0.0, %v2628
      %v2630 = vpop.f32.mrb[0].mxu0
      %2631 = vmatprep.mubr.f32.mxu0 0.0
      %2632 = vmatmul.mubr.f32.gmra.mrb[0].mxu0 %v2448
      %v2633 = vpop.f32.mrb[0].mxu0
      %v2634 = vadd.f32 0.0, %v2633
      %v2635 = vpop.f32.mrb[0].mxu0
      %2636 = vmatprep.mubr.f32.mxu0 0.0
      %2637 = vmatmul.mubr.f32.gmra.mrb[0].mxu0 %v2451
      %v2638 = vpop.f32.mrb[0].mxu0
      %v2639 = vadd.f32 0.0, %v2638
      %v2640 = vpop.f32.mrb[0].mxu0
      %2641 = vmatprep.mubr.f32.mxu0 0.0
      %2642 = vmatmul.mubr.f32.gmra.mrb[0].mxu0 %v2454
      %v2643 = vpop.f32.mrb[0].mxu0
      %v2644 = vadd.f32 0.0, %v2643
      %v2645 = vpop.f32.mrb[0].mxu0
      %2646 = vmatprep.mubr.f32.mxu0 0.0
      %2647 = vmatmul.mubr.f32.gmra.mrb[0].mxu0 %v2457
      %v2648 = vpop.f32.mrb[0].mxu0
      %v2649 = vadd.f32 0.0, %v2648
      %v2650 = vpop.f32.mrb[0].mxu0
      %2651 = vmatprep.mubr.f32.mxu0 0.0
      %2652 = vmatmul.mubr.f32.gmra.mrb[0].mxu0 %v2460
      %v2653 = vpop.f32.mrb[0].mxu0
      %v2654 = vadd.f32 0.0, %v2653
      %v2655 = vpop.f32.mrb[0].mxu0
      %2656 = vmatprep.mubr.f32.mxu0 0.0
      %2657 = vmatmul.mubr.f32.gmra.mrb[0].mxu0 %v2463
      %v2658 = vpop.f32.mrb[0].mxu0
      %v2659 = vadd.f32 0.0, %v2658
      %v2660 = vpop.f32.mrb[0].mxu0
      %2661 = vmatprep.mubr.f32.mxu0 0.0
      %2662 = vmatmul.mubr.f32.gmra.mrb[0].mxu0 %v2466
      %v2663 = vpop.f32.mrb[0].mxu0
      %v2664 = vadd.f32 0.0, %v2663
      %v2665 = vpop.f32.mrb[0].mxu0
      %2666 = vmatprep.mubr.f32.mxu0 0.0
      %2667 = vmatmul.mubr.f32.gmra.mrb[0].mxu0 %v2469
      %v2668 = vpop.f32.mrb[0].mxu0
      %v2669 = vadd.f32 0.0, %v2668
      %v2670 = vpop.f32.mrb[0].mxu0
      %2671 = vmatprep.mubr.f32.mxu0 0.0
      %2672 = vmatmul.mubr.f32.gmra.mrb[0].mxu0 %v2472
      %v2673 = vpop.f32.mrb[0].mxu0
      %v2674 = vadd.f32 0.0, %v2673
      %v2675 = vpop.f32.mrb[0].mxu0
      %2676 = vmatprep.mubr.f32.mxu0 0.0
      %2677 = vmatmul.mubr.f32.gmra.mrb[0].mxu0 %v2475
      %v2678 = vpop.f32.mrb[0].mxu0
      %v2679 = vadd.f32 0.0, %v2678
      %v2680 = vpop.f32.mrb[0].mxu0
      %2681 = vmatprep.mubr.f32.mxu0 0.0
      %2682 = vmatmul.mubr.f32.gmra.mrb[0].mxu0 %v2478
      %v2683 = vpop.f32.mrb[0].mxu0
      %v2684 = vadd.f32 0.0, %v2683
      %v2685 = vpop.f32.mrb[0].mxu0
      %2686 = vmatprep.mubr.f32.mxu0 0.0
      %2687 = vmatmul.mubr.f32.gmra.mrb[0].mxu0 %v2481
      %v2688 = vpop.f32.mrb[0].mxu0
      %v2689 = vadd.f32 0.0, %v2688
      %v2690 = vpop.f32.mrb[0].mxu0
      %2691 = vmatprep.mubr.f32.mxu0 0.0
      %2692 = vmatmul.mubr.f32.gmra.mrb[0].mxu0 %v2484
      %v2693 = vpop.f32.mrb[0].mxu0
      %v2694 = vadd.f32 0.0, %v2693
      %v2695 = vpop.f32.mrb[0].mxu0
      %2696 = vmatprep.mubr.f32.mxu0 0.0
      %2697 = vmatmul.mubr.f32.gmra.mrb[0].mxu0 %v2487
      %v2698 = vpop.f32.mrb[0].mxu0
      %v2699 = vadd.f32 0.0, %v2698
      %v2700 = vpop.f32.mrb[0].mxu0
      %2701 = vmatprep.mubr.f32.mxu0 0.0
      %2702 = vmatmul.mubr.f32.gmra.mrb[0].mxu0 %v2490
      %v2703 = vpop.f32.mrb[0].mxu0
      %v2704 = vadd.f32 0.0, %v2703
      %v2705 = vpop.f32.mrb[0].mxu0
      %2706 = vdwg.mxu0
      %v2707 = vadd.f32 %v2213, %v2559
      %v2708 = vadd.f32 %v2218, %v2564
      %v2709 = vadd.f32 %v2223, %v2569
      %v2710 = vadd.f32 %v2228, %v2574
      %v2711 = vadd.f32 %v2233, %v2579
      %v2712 = vadd.f32 %v2238, %v2584
      %v2713 = vadd.f32 %v2243, %v2589
      %v2714 = vadd.f32 %v2248, %v2594
      %v2715 = vadd.f32 %v2253, %v2599
      %v2716 = vadd.f32 %v2258, %v2604
      %v2717 = vadd.f32 %v2263, %v2609
      %v2718 = vadd.f32 %v2268, %v2614
      %v2719 = vadd.f32 %v2273, %v2619
      %v2720 = vadd.f32 %v2278, %v2624
      %v2721 = vadd.f32 %v2283, %v2629
      %v2722 = vadd.f32 %v2288, %v2634
      %v2723 = vadd.f32 %v2293, %v2639
      %v2724 = vadd.f32 %v2298, %v2644
      %v2725 = vadd.f32 %v2303, %v2649
      %v2726 = vadd.f32 %v2308, %v2654
      %v2727 = vadd.f32 %v2313, %v2659
      %v2728 = vadd.f32 %v2318, %v2664
      %v2729 = vadd.f32 %v2323, %v2669
      %v2730 = vadd.f32 %v2328, %v2674
      %v2731 = vadd.f32 %v2333, %v2679
      %v2732 = vadd.f32 %v2338, %v2684
      %v2733 = vadd.f32 %v2343, %v2689
      %v2734 = vadd.f32 %v2348, %v2694
      %v2735 = vadd.f32 %v2353, %v2699
      %v2736 = vadd.f32 %v2358, %v2704
      %v2737 = vld [vmem:[%s11] sm:$0x1]
      %v2739 = vlaneseq
      %v2740 = vshrl.u32 %v2739, 7
      %v2741 = vsub.s32 0, %v2740
      %v2742 = vrot.slane %v2737, %v2741
      %v2744 = vmul.f32 %v2707, %v2742
      %v2745 = vmul.f32 %v2708, %v2742
      %v2746 = vmul.f32 %v2709, %v2742
      %v2747 = vmul.f32 %v2710, %v2742
      %v2748 = vmul.f32 %v2711, %v2742
      %v2749 = vmul.f32 %v2712, %v2742
      %v2750 = vmul.f32 %v2713, %v2742
      %v2751 = vmul.f32 %v2714, %v2742
      %v2752 = vmul.f32 %v2715, %v2742
      %v2753 = vmul.f32 %v2716, %v2742
      %v2754 = vmul.f32 %v2717, %v2742
      %v2755 = vmul.f32 %v2718, %v2742
      %v2756 = vmul.f32 %v2719, %v2742
      %v2757 = vmul.f32 %v2720, %v2742
      %v2758 = vmul.f32 %v2721, %v2742
      %v2759 = vmul.f32 %v2722, %v2742
      %v2760 = vmul.f32 %v2723, %v2742
      %v2761 = vmul.f32 %v2724, %v2742
      %v2762 = vmul.f32 %v2725, %v2742
      %v2763 = vmul.f32 %v2726, %v2742
      %v2764 = vmul.f32 %v2727, %v2742
      %v2765 = vmul.f32 %v2728, %v2742
      %v2766 = vmul.f32 %v2729, %v2742
      %v2767 = vmul.f32 %v2730, %v2742
      %v2768 = vmul.f32 %v2731, %v2742
      %v2769 = vmul.f32 %v2732, %v2742
      %v2770 = vmul.f32 %v2733, %v2742
      %v2771 = vmul.f32 %v2734, %v2742
      %v2772 = vmul.f32 %v2735, %v2742
      %v2773 = vmul.f32 %v2736, %v2742
      %v2774 = vld [vmem:[%s12] sm:$0x1]
      %v2776 = vlaneseq
      %v2777 = vshrl.u32 %v2776, 7
      %v2778 = vsub.s32 0, %v2777
      %v2779 = vrot.slane %v2774, %v2778
      %v2781 = vadd.f32 %v2744, %v2779
      %v2782 = vadd.f32 %v2745, %v2779
      %v2783 = vadd.f32 %v2746, %v2779
      %v2784 = vadd.f32 %v2747, %v2779
      %v2785 = vadd.f32 %v2748, %v2779
      %v2786 = vadd.f32 %v2749, %v2779
      %v2787 = vadd.f32 %v2750, %v2779
      %v2788 = vadd.f32 %v2751, %v2779
      %v2789 = vadd.f32 %v2752, %v2779
      %v2790 = vadd.f32 %v2753, %v2779
      %v2791 = vadd.f32 %v2754, %v2779
      %v2792 = vadd.f32 %v2755, %v2779
      %v2793 = vadd.f32 %v2756, %v2779
      %v2794 = vadd.f32 %v2757, %v2779
      %v2795 = vadd.f32 %v2758, %v2779
      %v2796 = vadd.f32 %v2759, %v2779
      %v2797 = vadd.f32 %v2760, %v2779
      %v2798 = vadd.f32 %v2761, %v2779
      %v2799 = vadd.f32 %v2762, %v2779
      %v2800 = vadd.f32 %v2763, %v2779
      %v2801 = vadd.f32 %v2764, %v2779
      %v2802 = vadd.f32 %v2765, %v2779
      %v2803 = vadd.f32 %v2766, %v2779
      %v2804 = vadd.f32 %v2767, %v2779
      %v2805 = vadd.f32 %v2768, %v2779
      %v2806 = vadd.f32 %v2769, %v2779
      %v2807 = vadd.f32 %v2770, %v2779
      %v2808 = vadd.f32 %v2771, %v2779
      %v2809 = vadd.f32 %v2772, %v2779
      %v2810 = vadd.f32 %v2773, %v2779
      %v2811 = vmax.f32 %v2781, 0.0
      %v2812 = vmax.f32 %v2782, 0.0
      %v2813 = vmax.f32 %v2783, 0.0
      %v2814 = vmax.f32 %v2784, 0.0
      %v2815 = vmax.f32 %v2785, 0.0
      %v2816 = vmax.f32 %v2786, 0.0
      %v2817 = vmax.f32 %v2787, 0.0
      %v2818 = vmax.f32 %v2788, 0.0
      %v2819 = vmax.f32 %v2789, 0.0
      %v2820 = vmax.f32 %v2790, 0.0
      %v2821 = vmax.f32 %v2791, 0.0
      %v2822 = vmax.f32 %v2792, 0.0
      %v2823 = vmax.f32 %v2793, 0.0
      %v2824 = vmax.f32 %v2794, 0.0
      %v2825 = vmax.f32 %v2795, 0.0
      %v2826 = vmax.f32 %v2796, 0.0
      %v2827 = vmax.f32 %v2797, 0.0
      %v2828 = vmax.f32 %v2798, 0.0
      %v2829 = vmax.f32 %v2799, 0.0
      %v2830 = vmax.f32 %v2800, 0.0
      %v2831 = vmax.f32 %v2801, 0.0
      %v2832 = vmax.f32 %v2802, 0.0
      %v2833 = vmax.f32 %v2803, 0.0
      %v2834 = vmax.f32 %v2804, 0.0
      %v2835 = vmax.f32 %v2805, 0.0
      %v2836 = vmax.f32 %v2806, 0.0
      %v2837 = vmax.f32 %v2807, 0.0
      %v2838 = vmax.f32 %v2808, 0.0
      %v2839 = vmax.f32 %v2809, 0.0
      %v2840 = vmax.f32 %v2810, 0.0
      %v2841 = vrot.slane %v2811, 7
      %v2842 = vrot.slane %v2814, 7
      %v2843 = vrot.slane %v2817, 7
      %v2844 = vrot.slane %v2820, 7
      %v2845 = vrot.slane %v2823, 7
      %v2846 = vrot.slane %v2826, 7
      %v2847 = vrot.slane %v2829, 7
      %v2848 = vrot.slane %v2832, 7
      %v2849 = vrot.slane %v2835, 7
      %v2850 = vrot.slane %v2838, 7
      %v2851 = vrot.slane %v2812, 7
      %v2852 = vrot.slane %v2815, 7
      %v2853 = vrot.slane %v2818, 7
      %v2854 = vrot.slane %v2821, 7
      %v2855 = vrot.slane %v2824, 7
      %v2856 = vrot.slane %v2827, 7
      %v2857 = vrot.slane %v2830, 7
      %v2858 = vrot.slane %v2833, 7
      %v2859 = vrot.slane %v2836, 7
      %v2860 = vrot.slane %v2839, 7
      %v2861 = vrot.slane %v2813, 7
      %v2862 = vrot.slane %v2816, 7
      %v2863 = vrot.slane %v2819, 7
      %v2864 = vrot.slane %v2822, 7
      %v2865 = vrot.slane %v2825, 7
      %v2866 = vrot.slane %v2828, 7
      %v2867 = vrot.slane %v2831, 7
      %v2868 = vrot.slane %v2834, 7
      %v2869 = vrot.slane %v2837, 7
      %v2870 = vrot.slane %v2840, 7
      %v2871 = vsel %vm1054, %v2851, %v2861
      %v2872 = vsel %vm1054, %v2852, %v2862
      %v2873 = vsel %vm1054, %v2853, %v2863
      %v2874 = vsel %vm1054, %v2854, %v2864
      %v2875 = vsel %vm1054, %v2855, %v2865
      %v2876 = vsel %vm1054, %v2856, %v2866
      %v2877 = vsel %vm1054, %v2857, %v2867
      %v2878 = vsel %vm1054, %v2858, %v2868
      %v2879 = vsel %vm1054, %v2859, %v2869
      %v2880 = vsel %vm1054, %v2860, %v2870
      %v2881 = vsel %vm1054, %v2841, %v2851
      %v2882 = vsel %vm1054, %v2842, %v2852
      %v2883 = vsel %vm1054, %v2843, %v2853
      %v2884 = vsel %vm1054, %v2844, %v2854
      %v2885 = vsel %vm1054, %v2845, %v2855
      %v2886 = vsel %vm1054, %v2846, %v2856
      %v2887 = vsel %vm1054, %v2847, %v2857
      %v2888 = vsel %vm1054, %v2848, %v2858
      %v2889 = vsel %vm1054, %v2849, %v2859
      %v2890 = vsel %vm1054, %v2850, %v2860
      %v2891 = vsel %vm1054, %v2861, %v2841
      %v2892 = vsel %vm1054, %v2862, %v2842
      %v2893 = vsel %vm1054, %v2863, %v2843
      %v2894 = vsel %vm1054, %v2864, %v2844
      %v2895 = vsel %vm1054, %v2865, %v2845
      %v2896 = vsel %vm1054, %v2866, %v2846
      %v2897 = vsel %vm1054, %v2867, %v2847
      %v2898 = vsel %vm1054, %v2868, %v2848
      %v2899 = vsel %vm1054, %v2869, %v2849
      %v2900 = vsel %vm1054, %v2870, %v2850
      %v2901 = vsel %vm1094, %v2891, 0.0
      %v2902 = vsel %vm1095, %v2881, 0.0
      %v2903 = vsel %vm1096, %v2871, 0.0
      %v2904 = vsel %vm1094, %v2892, 0.0
      %v2905 = vsel %vm1095, %v2882, 0.0
      %v2906 = vsel %vm1096, %v2872, 0.0
      %v2907 = vsel %vm1094, %v2893, 0.0
      %v2908 = vsel %vm1095, %v2883, 0.0
      %v2909 = vsel %vm1096, %v2873, 0.0
      %v2910 = vsel %vm1094, %v2894, 0.0
      %v2911 = vsel %vm1095, %v2884, 0.0
      %v2912 = vsel %vm1096, %v2874, 0.0
      %v2913 = vsel %vm1094, %v2895, 0.0
      %v2914 = vsel %vm1095, %v2885, 0.0
      %v2915 = vsel %vm1096, %v2875, 0.0
      %v2916 = vsel %vm1094, %v2896, 0.0
      %v2917 = vsel %vm1095, %v2886, 0.0
      %v2918 = vsel %vm1096, %v2876, 0.0
      %v2919 = vsel %vm1094, %v2897, 0.0
      %v2920 = vsel %vm1095, %v2887, 0.0
      %v2921 = vsel %vm1096, %v2877, 0.0
      %v2922 = vsel %vm1094, %v2898, 0.0
      %v2923 = vsel %vm1095, %v2888, 0.0
      %v2924 = vsel %vm1096, %v2878, 0.0
      %v2925 = vsel %vm1094, %v2899, 0.0
      %v2926 = vsel %vm1095, %v2889, 0.0
      %v2927 = vsel %vm1096, %v2879, 0.0
      %v2928 = vsel %vm1094, %v2900, 0.0
      %v2929 = vsel %vm1095, %v2890, 0.0
      %v2930 = vsel %vm1096, %v2880, 0.0
      %v2931 = vrot.slane %v2811, 1
      %v2932 = vrot.slane %v2814, 1
      %v2933 = vrot.slane %v2817, 1
      %v2934 = vrot.slane %v2820, 1
      %v2935 = vrot.slane %v2823, 1
      %v2936 = vrot.slane %v2826, 1
      %v2937 = vrot.slane %v2829, 1
      %v2938 = vrot.slane %v2832, 1
      %v2939 = vrot.slane %v2835, 1
      %v2940 = vrot.slane %v2838, 1
      %v2941 = vrot.slane %v2812, 1
      %v2942 = vrot.slane %v2815, 1
      %v2943 = vrot.slane %v2818, 1
      %v2944 = vrot.slane %v2821, 1
      %v2945 = vrot.slane %v2824, 1
      %v2946 = vrot.slane %v2827, 1
      %v2947 = vrot.slane %v2830, 1
      %v2948 = vrot.slane %v2833, 1
      %v2949 = vrot.slane %v2836, 1
      %v2950 = vrot.slane %v2839, 1
      %v2951 = vrot.slane %v2813, 1
      %v2952 = vrot.slane %v2816, 1
      %v2953 = vrot.slane %v2819, 1
      %v2954 = vrot.slane %v2822, 1
      %v2955 = vrot.slane %v2825, 1
      %v2956 = vrot.slane %v2828, 1
      %v2957 = vrot.slane %v2831, 1
      %v2958 = vrot.slane %v2834, 1
      %v2959 = vrot.slane %v2837, 1
      %v2960 = vrot.slane %v2840, 1
      %v2961 = vsel %vm1172, %v2941, %v2951
      %v2962 = vsel %vm1172, %v2942, %v2952
      %v2963 = vsel %vm1172, %v2943, %v2953
      %v2964 = vsel %vm1172, %v2944, %v2954
      %v2965 = vsel %vm1172, %v2945, %v2955
      %v2966 = vsel %vm1172, %v2946, %v2956
      %v2967 = vsel %vm1172, %v2947, %v2957
      %v2968 = vsel %vm1172, %v2948, %v2958
      %v2969 = vsel %vm1172, %v2949, %v2959
      %v2970 = vsel %vm1172, %v2950, %v2960
      %v2971 = vsel %vm1172, %v2931, %v2941
      %v2972 = vsel %vm1172, %v2932, %v2942
      %v2973 = vsel %vm1172, %v2933, %v2943
      %v2974 = vsel %vm1172, %v2934, %v2944
      %v2975 = vsel %vm1172, %v2935, %v2945
      %v2976 = vsel %vm1172, %v2936, %v2946
      %v2977 = vsel %vm1172, %v2937, %v2947
      %v2978 = vsel %vm1172, %v2938, %v2948
      %v2979 = vsel %vm1172, %v2939, %v2949
      %v2980 = vsel %vm1172, %v2940, %v2950
      %v2981 = vsel %vm1172, %v2951, %v2931
      %v2982 = vsel %vm1172, %v2952, %v2932
      %v2983 = vsel %vm1172, %v2953, %v2933
      %v2984 = vsel %vm1172, %v2954, %v2934
      %v2985 = vsel %vm1172, %v2955, %v2935
      %v2986 = vsel %vm1172, %v2956, %v2936
      %v2987 = vsel %vm1172, %v2957, %v2937
      %v2988 = vsel %vm1172, %v2958, %v2938
      %v2989 = vsel %vm1172, %v2959, %v2939
      %v2990 = vsel %vm1172, %v2960, %v2940
      %v2991 = vsel %vm1212, %v2971, 0.0
      %v2992 = vsel %vm1213, %v2961, 0.0
      %v2993 = vsel %vm1214, %v2981, 0.0
      %v2994 = vsel %vm1212, %v2972, 0.0
      %v2995 = vsel %vm1213, %v2962, 0.0
      %v2996 = vsel %vm1214, %v2982, 0.0
      %v2997 = vsel %vm1212, %v2973, 0.0
      %v2998 = vsel %vm1213, %v2963, 0.0
      %v2999 = vsel %vm1214, %v2983, 0.0
      %v3000 = vsel %vm1212, %v2974, 0.0
      %v3001 = vsel %vm1213, %v2964, 0.0
      %v3002 = vsel %vm1214, %v2984, 0.0
      %v3003 = vsel %vm1212, %v2975, 0.0
      %v3004 = vsel %vm1213, %v2965, 0.0
      %v3005 = vsel %vm1214, %v2985, 0.0
      %v3006 = vsel %vm1212, %v2976, 0.0
      %v3007 = vsel %vm1213, %v2966, 0.0
      %v3008 = vsel %vm1214, %v2986, 0.0
      %v3009 = vsel %vm1212, %v2977, 0.0
      %v3010 = vsel %vm1213, %v2967, 0.0
      %v3011 = vsel %vm1214, %v2987, 0.0
      %v3012 = vsel %vm1212, %v2978, 0.0
      %v3013 = vsel %vm1213, %v2968, 0.0
      %v3014 = vsel %vm1214, %v2988, 0.0
      %v3015 = vsel %vm1212, %v2979, 0.0
      %v3016 = vsel %vm1213, %v2969, 0.0
      %v3017 = vsel %vm1214, %v2989, 0.0
      %v3018 = vsel %vm1212, %v2980, 0.0
      %v3019 = vsel %vm1213, %v2970, 0.0
      %v3020 = vsel %vm1214, %v2990, 0.0
      %3051 = vrot.lane.b32.xlu0 %v2811, 8
      %v3052 = vpop.permute.xlu0 %3051
      %3053 = vrot.lane.b32.xlu0 %v2812, 8
      %v3054 = vpop.permute.xlu0 %3053
      %3055 = vrot.lane.b32.xlu0 %v2813, 8
      %v3056 = vpop.permute.xlu0 %3055
      %3057 = vrot.lane.b32.xlu0 %v2814, 8
      %v3058 = vpop.permute.xlu0 %3057
      %3059 = vrot.lane.b32.xlu0 %v2815, 8
      %v3060 = vpop.permute.xlu0 %3059
      %3061 = vrot.lane.b32.xlu0 %v2816, 8
      %v3062 = vpop.permute.xlu0 %3061
      %3063 = vrot.lane.b32.xlu0 %v2817, 8
      %v3064 = vpop.permute.xlu0 %3063
      %3065 = vrot.lane.b32.xlu0 %v2818, 8
      %v3066 = vpop.permute.xlu0 %3065
      %3067 = vrot.lane.b32.xlu0 %v2819, 8
      %v3068 = vpop.permute.xlu0 %3067
      %3069 = vrot.lane.b32.xlu0 %v2820, 8
      %v3070 = vpop.permute.xlu0 %3069
      %3071 = vrot.lane.b32.xlu0 %v2821, 8
      %v3072 = vpop.permute.xlu0 %3071
      %3073 = vrot.lane.b32.xlu0 %v2822, 8
      %v3074 = vpop.permute.xlu0 %3073
      %3075 = vrot.lane.b32.xlu0 %v2823, 8
      %v3076 = vpop.permute.xlu0 %3075
      %3077 = vrot.lane.b32.xlu0 %v2824, 8
      %v3078 = vpop.permute.xlu0 %3077
      %3079 = vrot.lane.b32.xlu0 %v2825, 8
      %v3080 = vpop.permute.xlu0 %3079
      %3081 = vrot.lane.b32.xlu0 %v2826, 8
      %v3082 = vpop.permute.xlu0 %3081
      %3083 = vrot.lane.b32.xlu0 %v2827, 8
      %v3084 = vpop.permute.xlu0 %3083
      %3085 = vrot.lane.b32.xlu0 %v2828, 8
      %v3086 = vpop.permute.xlu0 %3085
      %3087 = vrot.lane.b32.xlu0 %v2829, 8
      %v3088 = vpop.permute.xlu0 %3087
      %3089 = vrot.lane.b32.xlu0 %v2830, 8
      %v3090 = vpop.permute.xlu0 %3089
      %3091 = vrot.lane.b32.xlu0 %v2831, 8
      %v3092 = vpop.permute.xlu0 %3091
      %3093 = vrot.lane.b32.xlu0 %v2832, 8
      %v3094 = vpop.permute.xlu0 %3093
      %3095 = vrot.lane.b32.xlu0 %v2833, 8
      %v3096 = vpop.permute.xlu0 %3095
      %3097 = vrot.lane.b32.xlu0 %v2834, 8
      %v3098 = vpop.permute.xlu0 %3097
      %3099 = vrot.lane.b32.xlu0 %v2835, 8
      %v3100 = vpop.permute.xlu0 %3099
      %3101 = vrot.lane.b32.xlu0 %v2836, 8
      %v3102 = vpop.permute.xlu0 %3101
      %3103 = vrot.lane.b32.xlu0 %v2837, 8
      %v3104 = vpop.permute.xlu0 %3103
      %3105 = vrot.lane.b32.xlu0 %v2838, 8
      %v3106 = vpop.permute.xlu0 %3105
      %3107 = vrot.lane.b32.xlu0 %v2839, 8
      %v3108 = vpop.permute.xlu0 %3107
      %3109 = vrot.lane.b32.xlu0 %v2840, 8
      %v3110 = vpop.permute.xlu0 %3109
      %3171 = vrot.lane.b32.xlu0 %v2991, 16
      %v3172 = vpop.permute.xlu0 %3171
      %3173 = vrot.lane.b32.xlu0 %v2992, 16
      %v3174 = vpop.permute.xlu0 %3173
      %3175 = vrot.lane.b32.xlu0 %v2993, 16
      %v3176 = vpop.permute.xlu0 %3175
      %3177 = vrot.lane.b32.xlu0 %v2994, 16
      %v3178 = vpop.permute.xlu0 %3177
      %3179 = vrot.lane.b32.xlu0 %v2995, 16
      %v3180 = vpop.permute.xlu0 %3179
      %3181 = vrot.lane.b32.xlu0 %v2996, 16
      %v3182 = vpop.permute.xlu0 %3181
      %3183 = vrot.lane.b32.xlu0 %v2997, 16
      %v3184 = vpop.permute.xlu0 %3183
      %3185 = vrot.lane.b32.xlu0 %v2998, 16
      %v3186 = vpop.permute.xlu0 %3185
      %3187 = vrot.lane.b32.xlu0 %v2999, 16
      %v3188 = vpop.permute.xlu0 %3187
      %3189 = vrot.lane.b32.xlu0 %v3000, 16
      %v3190 = vpop.permute.xlu0 %3189
      %3191 = vrot.lane.b32.xlu0 %v3001, 16
      %v3192 = vpop.permute.xlu0 %3191
      %3193 = vrot.lane.b32.xlu0 %v3002, 16
      %v3194 = vpop.permute.xlu0 %3193
      %3195 = vrot.lane.b32.xlu0 %v3003, 16
      %v3196 = vpop.permute.xlu0 %3195
      %3197 = vrot.lane.b32.xlu0 %v3004, 16
      %v3198 = vpop.permute.xlu0 %3197
      %3199 = vrot.lane.b32.xlu0 %v3005, 16
      %v3200 = vpop.permute.xlu0 %3199
      %3201 = vrot.lane.b32.xlu0 %v3006, 16
      %v3202 = vpop.permute.xlu0 %3201
      %3203 = vrot.lane.b32.xlu0 %v3007, 16
      %v3204 = vpop.permute.xlu0 %3203
      %3205 = vrot.lane.b32.xlu0 %v3008, 16
      %v3206 = vpop.permute.xlu0 %3205
      %3207 = vrot.lane.b32.xlu0 %v3009, 16
      %v3208 = vpop.permute.xlu0 %3207
      %3209 = vrot.lane.b32.xlu0 %v3010, 16
      %v3210 = vpop.permute.xlu0 %3209
      %3211 = vrot.lane.b32.xlu0 %v3011, 16
      %v3212 = vpop.permute.xlu0 %3211
      %3213 = vrot.lane.b32.xlu0 %v3012, 16
      %v3214 = vpop.permute.xlu0 %3213
      %3215 = vrot.lane.b32.xlu0 %v3013, 16
      %v3216 = vpop.permute.xlu0 %3215
      %3217 = vrot.lane.b32.xlu0 %v3014, 16
      %v3218 = vpop.permute.xlu0 %3217
      %3219 = vrot.lane.b32.xlu0 %v3015, 16
      %v3220 = vpop.permute.xlu0 %3219
      %3221 = vrot.lane.b32.xlu0 %v3016, 16
      %v3222 = vpop.permute.xlu0 %3221
      %3223 = vrot.lane.b32.xlu0 %v3017, 16
      %v3224 = vpop.permute.xlu0 %3223
      %3225 = vrot.lane.b32.xlu0 %v3018, 16
      %v3226 = vpop.permute.xlu0 %3225
      %3227 = vrot.lane.b32.xlu0 %v3019, 16
      %v3228 = vpop.permute.xlu0 %3227
      %3229 = vrot.lane.b32.xlu0 %v3020, 16
      %v3230 = vpop.permute.xlu0 %3229
      %vm3261 = vcmask 64512
      %v3262 = vsel %vm3261, %v2901, %v3052
      %v3263 = vsel %vm3261, %v2902, %v3054
      %v3264 = vsel %vm3261, %v2903, %v3056
      %v3265 = vsel %vm3261, %v2904, %v3058
      %v3266 = vsel %vm3261, %v2905, %v3060
      %v3267 = vsel %vm3261, %v2906, %v3062
      %v3268 = vsel %vm3261, %v2907, %v3064
      %v3269 = vsel %vm3261, %v2908, %v3066
      %v3270 = vsel %vm3261, %v2909, %v3068
      %v3271 = vsel %vm3261, %v2910, %v3070
      %v3272 = vsel %vm3261, %v2911, %v3072
      %v3273 = vsel %vm3261, %v2912, %v3074
      %v3274 = vsel %vm3261, %v2913, %v3076
      %v3275 = vsel %vm3261, %v2914, %v3078
      %v3276 = vsel %vm3261, %v2915, %v3080
      %v3277 = vsel %vm3261, %v2916, %v3082
      %v3278 = vsel %vm3261, %v2917, %v3084
      %v3279 = vsel %vm3261, %v2918, %v3086
      %v3280 = vsel %vm3261, %v2919, %v3088
      %v3281 = vsel %vm3261, %v2920, %v3090
      %v3282 = vsel %vm3261, %v2921, %v3092
      %v3283 = vsel %vm3261, %v2922, %v3094
      %v3284 = vsel %vm3261, %v2923, %v3096
      %v3285 = vsel %vm3261, %v2924, %v3098
      %v3286 = vsel %vm3261, %v2925, %v3100
      %v3287 = vsel %vm3261, %v2926, %v3102
      %v3288 = vsel %vm3261, %v2927, %v3104
      %v3289 = vsel %vm3261, %v2928, %v3106
      %v3290 = vsel %vm3261, %v2929, %v3108
      %v3291 = vsel %vm3261, %v2930, %v3110
      %v3292 = vsel %vm974, %v3262, %v3172
      %v3293 = vsel %vm974, %v3263, %v3174
      %v3294 = vsel %vm974, %v3264, %v3176
      %v3295 = vsel %vm974, %v3265, %v3178
      %v3296 = vsel %vm974, %v3266, %v3180
      %v3297 = vsel %vm974, %v3267, %v3182
      %v3298 = vsel %vm974, %v3268, %v3184
      %v3299 = vsel %vm974, %v3269, %v3186
      %v3300 = vsel %vm974, %v3270, %v3188
      %v3301 = vsel %vm974, %v3271, %v3190
      %v3302 = vsel %vm974, %v3272, %v3192
      %v3303 = vsel %vm974, %v3273, %v3194
      %v3304 = vsel %vm974, %v3274, %v3196
      %v3305 = vsel %vm974, %v3275, %v3198
      %v3306 = vsel %vm974, %v3276, %v3200
      %v3307 = vsel %vm974, %v3277, %v3202
      %v3308 = vsel %vm974, %v3278, %v3204
      %v3309 = vsel %vm974, %v3279, %v3206
      %v3310 = vsel %vm974, %v3280, %v3208
      %v3311 = vsel %vm974, %v3281, %v3210
      %v3312 = vsel %vm974, %v3282, %v3212
      %v3313 = vsel %vm974, %v3283, %v3214
      %v3314 = vsel %vm974, %v3284, %v3216
      %v3315 = vsel %vm974, %v3285, %v3218
      %v3316 = vsel %vm974, %v3286, %v3220
      %v3317 = vsel %vm974, %v3287, %v3222
      %v3318 = vsel %vm974, %v3288, %v3224
      %v3319 = vsel %vm974, %v3289, %v3226
      %v3320 = vsel %vm974, %v3290, %v3228
      %v3321 = vsel %vm974, %v3291, %v3230
      %3322 = vst.msk [vmem:[#allocation3] sm:$0xff] %vm1539, %v3292
      %3323 = vst.msk [vmem:[#allocation3 + $0x8] sm:$0xff] %vm1539, %v3293
      %3324 = vst.msk [vmem:[#allocation3 + $0x10] sm:$0xff] %vm1539, %v3294
      %3325 = vst.msk [vmem:[#allocation3 + $0x18] sm:$0xff] %vm1539, %v3295
      %3326 = vst.msk [vmem:[#allocation3 + $0x20] sm:$0xff] %vm1539, %v3296
      %3327 = vst.msk [vmem:[#allocation3 + $0x28] sm:$0xff] %vm1539, %v3297
      %3328 = vst.msk [vmem:[#allocation3 + $0x30] sm:$0xff] %vm1539, %v3298
      %3329 = vst.msk [vmem:[#allocation3 + $0x38] sm:$0xff] %vm1539, %v3299
      %3330 = vst.msk [vmem:[#allocation3 + $0x40] sm:$0xff] %vm1539, %v3300
      %3331 = vst.msk [vmem:[#allocation3 + $0x48] sm:$0xff] %vm1539, %v3301
      %3332 = vst.msk [vmem:[#allocation3 + $0x50] sm:$0xff] %vm1539, %v3302
      %3333 = vst.msk [vmem:[#allocation3 + $0x58] sm:$0xff] %vm1539, %v3303
      %3334 = vst.msk [vmem:[#allocation3 + $0x60] sm:$0xff] %vm1539, %v3304
      %3335 = vst.msk [vmem:[#allocation3 + $0x68] sm:$0xff] %vm1539, %v3305
      %3336 = vst.msk [vmem:[#allocation3 + $0x70] sm:$0xff] %vm1539, %v3306
      %3337 = vst.msk [vmem:[#allocation3 + $0x78] sm:$0xff] %vm1539, %v3307
      %3338 = vst.msk [vmem:[#allocation3 + $0x80] sm:$0xff] %vm1539, %v3308
      %3339 = vst.msk [vmem:[#allocation3 + $0x88] sm:$0xff] %vm1539, %v3309
      %3340 = vst.msk [vmem:[#allocation3 + $0x90] sm:$0xff] %vm1539, %v3310
      %3341 = vst.msk [vmem:[#allocation3 + $0x98] sm:$0xff] %vm1539, %v3311
      %3342 = vst.msk [vmem:[#allocation3 + $0xa0] sm:$0xff] %vm1539, %v3312
      %3343 = vst.msk [vmem:[#allocation3 + $0xa8] sm:$0xff] %vm1539, %v3313
      %3344 = vst.msk [vmem:[#allocation3 + $0xb0] sm:$0xff] %vm1539, %v3314
      %3345 = vst.msk [vmem:[#allocation3 + $0xb8] sm:$0xff] %vm1539, %v3315
      %3346 = vst.msk [vmem:[#allocation3 + $0xc0] sm:$0xff] %vm1539, %v3316
      %3347 = vst.msk [vmem:[#allocation3 + $0xc8] sm:$0xff] %vm1539, %v3317
      %3348 = vst.msk [vmem:[#allocation3 + $0xd0] sm:$0xff] %vm1539, %v3318
      %3349 = vst.msk [vmem:[#allocation3 + $0xd8] sm:$0xff] %vm1539, %v3319
      %3350 = vst.msk [vmem:[#allocation3 + $0xe0] sm:$0xff] %vm1539, %v3320
      %3351 = vst.msk [vmem:[#allocation3 + $0xe8] sm:$0xff] %vm1539, %v3321
      // Predicated region
      $region81: #{tpu_custom_call.1} parent=71 // pred_check
        %p3352 = pneg %p1650
      $region82: #{tpu_custom_call.1} parent=71 // pred_check_branch
        %3354 = sbr.rel (%p3352) target = $region84
      $region83: #{tpu_custom_call.1} parent=71 // pred_region
        %3355 = vst.msk [vmem:[#allocation3] sm:$0xff] %vm1539, 0.0
        %3356 = vst.msk [vmem:[#allocation3 + $0x8] sm:$0xff] %vm1539, 0.0
        %3357 = vst.msk [vmem:[#allocation3 + $0x10] sm:$0xff] %vm1539, 0.0
      $region84: #{tpu_custom_call.1} parent=71 // pred_fallthru
        _
      // Predicated region
      $region85: #{tpu_custom_call.1} parent=71 // pred_check
        %p3358 = pneg %p1660
      $region86: #{tpu_custom_call.1} parent=71 // pred_check_branch
        %3360 = sbr.rel (%p3358) target = $region88
      $region87: #{tpu_custom_call.1} parent=71 // pred_region
        %s3361 = scalar_lea.vmem [#allocation3], 216
        %3362 = vst.msk [vmem:[%s3361] sm:$0xff] %vm1539, 0.0
        %3363 = vst.msk [vmem:[%s3361 + $0x8] sm:$0xff] %vm1539, 0.0
        %3364 = vst.msk [vmem:[%s3361 + $0x10] sm:$0xff] %vm1539, 0.0
      $region88: #{tpu_custom_call.1} parent=71 // pred_fallthru
        _
      %v3365 = vld [vmem:[%s4] sm:$0xff]
      %v3366 = vld [vmem:[%s4 + $0x8] sm:$0xff]
      %v3367 = vld [vmem:[%s5] sm:$0xff]
      %v3369 = vsel %vm3261, %v556, 0
      %v3372 = vsel %vm3261, %v557, 0
      %v3375 = vsel %vm3261, %v558, 0
      %v3378 = vsel %vm3261, %v559, 0
      %v3381 = vsel %vm3261, %v560, 0
      %v3384 = vsel %vm3261, %v561, 0
      %v3387 = vsel %vm3261, %v562, 0
      %v3390 = vsel %vm3261, %v563, 0
      %v3393 = vsel %vm3261, %v564, 0
      %v3396 = vsel %vm3261, %v565, 0
      %v3399 = vsel %vm3261, %v566, 0
      %v3402 = vsel %vm3261, %v567, 0
      %v3405 = vsel %vm3261, %v568, 0
      %v3408 = vsel %vm3261, %v569, 0
      %v3411 = vsel %vm3261, %v570, 0
      %v3414 = vsel %vm3261, %v571, 0
      %v3417 = vsel %vm3261, %v572, 0
      %v3420 = vsel %vm3261, %v573, 0
      %v3423 = vsel %vm3261, %v574, 0
      %v3426 = vsel %vm3261, %v575, 0
      %v3429 = vsel %vm3261, %v576, 0
      %v3432 = vsel %vm3261, %v577, 0
      %v3435 = vsel %vm3261, %v578, 0
      %v3438 = vsel %vm3261, %v579, 0
      %3440 = vmatprep.subr.mxu0 0.0
      %3441 = vmatpush1.msra.mxu0 %v3367
      %3442 = vmatprep.subr.mxu0 0.0
      %3443 = vmatpush1.msra.mxu0 0.0
      %3444 = vmatprep.subr.mxu0 0.0
      %3445 = vmatpush1.msra.mxu0 0.0
      %3446 = vmatprep.subr.mxu0 0.0
      %3447 = vmatpush1.msra.mxu0 0.0
      %3448 = vmatprep.subr.mxu0 0.0
      %3449 = vmatpush1.msra.mxu0 0.0
      %3450 = vmatprep.subr.mxu0 0.0
      %3451 = vmatpush1.msra.mxu0 0.0
      %3452 = vmatprep.subr.mxu0 0.0
      %3453 = vmatpush1.msra.mxu0 0.0
      %3454 = vmatprep.subr.mxu0 0.0
      %3455 = vmatpush1.msra.mxu0 0.0
      %3456 = vmatprep.subr.mxu0 0.0
      %3457 = vmatpush1.msra.mxu0 0.0
      %3458 = vmatprep.subr.mxu0 0.0
      %3459 = vmatpush1.msra.mxu0 0.0
      %3460 = vmatprep.subr.mxu0 0.0
      %3461 = vmatpush1.msra.mxu0 0.0
      %3462 = vmatprep.subr.mxu0 0.0
      %3463 = vmatpush1.msra.mxu0 0.0
      %3464 = vmatprep.subr.mxu0 0.0
      %3465 = vmatpush1.msra.mxu0 0.0
      %3466 = vmatprep.subr.mxu0 0.0
      %3467 = vmatpush1.msra.mxu0 0.0
      %3468 = vmatprep.subr.mxu0 0.0
      %3469 = vmatpush1.msra.mxu0 0.0
      %3470 = vmatprep.subr.mxu0 0.0
      %3471 = vmatpush1.msra.mxu0 0.0
      %3472 = vmatprep.subr.mxu0 0.0
      %3473 = vmatpush1.msra.mxu0 0.0
      %3474 = vmatprep.subr.mxu0 0.0
      %3475 = vmatpush1.msra.mxu0 0.0
      %3476 = vmatprep.subr.mxu0 0.0
      %3477 = vmatpush1.msra.mxu0 0.0
      %3478 = vmatprep.subr.mxu0 0.0
      %3479 = vmatpush1.msra.mxu0 0.0
      %3480 = vmatprep.subr.mxu0 0.0
      %3481 = vmatpush1.msra.mxu0 0.0
      %3482 = vmatprep.subr.mxu0 0.0
      %3483 = vmatpush1.msra.mxu0 0.0
      %3484 = vmatprep.subr.mxu0 0.0
      %3485 = vmatpush1.msra.mxu0 0.0
      %3486 = vmatprep.subr.mxu0 0.0
      %3487 = vmatpush1.msra.mxu0 0.0
      %3488 = vmatprep.subr.mxu0 0.0
      %3489 = vmatpush1.msra.mxu0 0.0
      %3490 = vmatprep.subr.mxu0 0.0
      %3491 = vmatpush1.msra.mxu0 0.0
      %3492 = vmatprep.subr.mxu0 0.0
      %3493 = vmatpush1.msra.mxu0 0.0
      %3494 = vmatprep.subr.mxu0 0.0
      %3495 = vmatpush1.msra.mxu0 0.0
      %3496 = vmatprep.subr.mxu0 0.0
      %3497 = vmatpush1.msra.mxu0 0.0
      %3498 = vmatprep.subr.mxu0 0.0
      %3499 = vmatpush1.msra.mxu0 0.0
      %3500 = vmatprep.subr.mxu0 0.0
      %3501 = vmatpush1.msra.mxu0 0.0
      %3502 = vmatprep.subr.mxu0 0.0
      %3503 = vmatpush1.msra.mxu0 0.0
      %3504 = vmatprep.mubr.f32.mxu0 0.0
      %3505 = vmatmul.mubr.f32.gmra.mrb[0].mxu0 %v3369
      %v3506 = vpop.f32.mrb[0].mxu0
      %v3507 = vadd.f32 0.0, %v3506
      %v3508 = vpop.f32.mrb[0].mxu0
      %3509 = vmatprep.mubr.f32.mxu0 0.0
      %3510 = vmatmul.mubr.f32.gmra.mrb[0].mxu0 %v3372
      %v3511 = vpop.f32.mrb[0].mxu0
      %v3512 = vadd.f32 0.0, %v3511
      %v3513 = vpop.f32.mrb[0].mxu0
      %3514 = vmatprep.mubr.f32.mxu0 0.0
      %3515 = vmatmul.mubr.f32.gmra.mrb[0].mxu0 %v3375
      %v3516 = vpop.f32.mrb[0].mxu0
      %v3517 = vadd.f32 0.0, %v3516
      %v3518 = vpop.f32.mrb[0].mxu0
      %3519 = vmatprep.mubr.f32.mxu0 0.0
      %3520 = vmatmul.mubr.f32.gmra.mrb[0].mxu0 %v3378
      %v3521 = vpop.f32.mrb[0].mxu0
      %v3522 = vadd.f32 0.0, %v3521
      %v3523 = vpop.f32.mrb[0].mxu0
      %3524 = vmatprep.mubr.f32.mxu0 0.0
      %3525 = vmatmul.mubr.f32.gmra.mrb[0].mxu0 %v3381
      %v3526 = vpop.f32.mrb[0].mxu0
      %v3527 = vadd.f32 0.0, %v3526
      %v3528 = vpop.f32.mrb[0].mxu0
      %3529 = vmatprep.mubr.f32.mxu0 0.0
      %3530 = vmatmul.mubr.f32.gmra.mrb[0].mxu0 %v3384
      %v3531 = vpop.f32.mrb[0].mxu0
      %v3532 = vadd.f32 0.0, %v3531
      %v3533 = vpop.f32.mrb[0].mxu0
      %3534 = vmatprep.mubr.f32.mxu0 0.0
      %3535 = vmatmul.mubr.f32.gmra.mrb[0].mxu0 %v3387
      %v3536 = vpop.f32.mrb[0].mxu0
      %v3537 = vadd.f32 0.0, %v3536
      %v3538 = vpop.f32.mrb[0].mxu0
      %3539 = vmatprep.mubr.f32.mxu0 0.0
      %3540 = vmatmul.mubr.f32.gmra.mrb[0].mxu0 %v3390
      %v3541 = vpop.f32.mrb[0].mxu0
      %v3542 = vadd.f32 0.0, %v3541
      %v3543 = vpop.f32.mrb[0].mxu0
      %3544 = vmatprep.mubr.f32.mxu0 0.0
      %3545 = vmatmul.mubr.f32.gmra.mrb[0].mxu0 %v3393
      %v3546 = vpop.f32.mrb[0].mxu0
      %v3547 = vadd.f32 0.0, %v3546
      %v3548 = vpop.f32.mrb[0].mxu0
      %3549 = vmatprep.mubr.f32.mxu0 0.0
      %3550 = vmatmul.mubr.f32.gmra.mrb[0].mxu0 %v3396
      %v3551 = vpop.f32.mrb[0].mxu0
      %v3552 = vadd.f32 0.0, %v3551
      %v3553 = vpop.f32.mrb[0].mxu0
      %3554 = vmatprep.mubr.f32.mxu0 0.0
      %3555 = vmatmul.mubr.f32.gmra.mrb[0].mxu0 %v3399
      %v3556 = vpop.f32.mrb[0].mxu0
      %v3557 = vadd.f32 0.0, %v3556
      %v3558 = vpop.f32.mrb[0].mxu0
      %3559 = vmatprep.mubr.f32.mxu0 0.0
      %3560 = vmatmul.mubr.f32.gmra.mrb[0].mxu0 %v3402
      %v3561 = vpop.f32.mrb[0].mxu0
      %v3562 = vadd.f32 0.0, %v3561
      %v3563 = vpop.f32.mrb[0].mxu0
      %3564 = vmatprep.mubr.f32.mxu0 0.0
      %3565 = vmatmul.mubr.f32.gmra.mrb[0].mxu0 %v3405
      %v3566 = vpop.f32.mrb[0].mxu0
      %v3567 = vadd.f32 0.0, %v3566
      %v3568 = vpop.f32.mrb[0].mxu0
      %3569 = vmatprep.mubr.f32.mxu0 0.0
      %3570 = vmatmul.mubr.f32.gmra.mrb[0].mxu0 %v3408
      %v3571 = vpop.f32.mrb[0].mxu0
      %v3572 = vadd.f32 0.0, %v3571
      %v3573 = vpop.f32.mrb[0].mxu0
      %3574 = vmatprep.mubr.f32.mxu0 0.0
      %3575 = vmatmul.mubr.f32.gmra.mrb[0].mxu0 %v3411
      %v3576 = vpop.f32.mrb[0].mxu0
      %v3577 = vadd.f32 0.0, %v3576
      %v3578 = vpop.f32.mrb[0].mxu0
      %3579 = vmatprep.mubr.f32.mxu0 0.0
      %3580 = vmatmul.mubr.f32.gmra.mrb[0].mxu0 %v3414
      %v3581 = vpop.f32.mrb[0].mxu0
      %v3582 = vadd.f32 0.0, %v3581
      %v3583 = vpop.f32.mrb[0].mxu0
      %3584 = vmatprep.mubr.f32.mxu0 0.0
      %3585 = vmatmul.mubr.f32.gmra.mrb[0].mxu0 %v3417
      %v3586 = vpop.f32.mrb[0].mxu0
      %v3587 = vadd.f32 0.0, %v3586
      %v3588 = vpop.f32.mrb[0].mxu0
      %3589 = vmatprep.mubr.f32.mxu0 0.0
      %3590 = vmatmul.mubr.f32.gmra.mrb[0].mxu0 %v3420
      %v3591 = vpop.f32.mrb[0].mxu0
      %v3592 = vadd.f32 0.0, %v3591
      %v3593 = vpop.f32.mrb[0].mxu0
      %3594 = vmatprep.mubr.f32.mxu0 0.0
      %3595 = vmatmul.mubr.f32.gmra.mrb[0].mxu0 %v3423
      %v3596 = vpop.f32.mrb[0].mxu0
      %v3597 = vadd.f32 0.0, %v3596
      %v3598 = vpop.f32.mrb[0].mxu0
      %3599 = vmatprep.mubr.f32.mxu0 0.0
      %3600 = vmatmul.mubr.f32.gmra.mrb[0].mxu0 %v3426
      %v3601 = vpop.f32.mrb[0].mxu0
      %v3602 = vadd.f32 0.0, %v3601
      %v3603 = vpop.f32.mrb[0].mxu0
      %3604 = vmatprep.mubr.f32.mxu0 0.0
      %3605 = vmatmul.mubr.f32.gmra.mrb[0].mxu0 %v3429
      %v3606 = vpop.f32.mrb[0].mxu0
      %v3607 = vadd.f32 0.0, %v3606
      %v3608 = vpop.f32.mrb[0].mxu0
      %3609 = vmatprep.mubr.f32.mxu0 0.0
      %3610 = vmatmul.mubr.f32.gmra.mrb[0].mxu0 %v3432
      %v3611 = vpop.f32.mrb[0].mxu0
      %v3612 = vadd.f32 0.0, %v3611
      %v3613 = vpop.f32.mrb[0].mxu0
      %3614 = vmatprep.mubr.f32.mxu0 0.0
      %3615 = vmatmul.mubr.f32.gmra.mrb[0].mxu0 %v3435
      %v3616 = vpop.f32.mrb[0].mxu0
      %v3617 = vadd.f32 0.0, %v3616
      %v3618 = vpop.f32.mrb[0].mxu0
      %3619 = vmatprep.mubr.f32.mxu0 0.0
      %3620 = vmatmul.mubr.f32.gmra.mrb[0].mxu0 %v3438
      %v3621 = vpop.f32.mrb[0].mxu0
      %v3622 = vadd.f32 0.0, %v3621
      %v3623 = vpop.f32.mrb[0].mxu0
      %3624 = vdwg.mxu0
      %v3626 = vsel %vm974, %v520, 0
      %v3629 = vsel %vm974, %v521, 0
      %v3632 = vsel %vm974, %v522, 0
      %v3635 = vsel %vm974, %v523, 0
      %v3638 = vsel %vm974, %v524, 0
      %v3641 = vsel %vm974, %v525, 0
      %v3644 = vsel %vm974, %v526, 0
      %v3647 = vsel %vm974, %v527, 0
      %v3650 = vsel %vm974, %v528, 0
      %v3653 = vsel %vm974, %v529, 0
      %v3656 = vsel %vm974, %v530, 0
      %v3659 = vsel %vm974, %v531, 0
      %v3662 = vsel %vm974, %v532, 0
      %v3665 = vsel %vm974, %v533, 0
      %v3668 = vsel %vm974, %v534, 0
      %v3671 = vsel %vm974, %v535, 0
      %v3674 = vsel %vm974, %v536, 0
      %v3677 = vsel %vm974, %v537, 0
      %v3680 = vsel %vm974, %v538, 0
      %v3683 = vsel %vm974, %v539, 0
      %v3686 = vsel %vm974, %v540, 0
      %v3689 = vsel %vm974, %v541, 0
      %v3692 = vsel %vm974, %v542, 0
      %v3695 = vsel %vm974, %v543, 0
      %3697 = vmatprep.subr.mxu0 0.0
      %3698 = vmatpush1.msra.mxu0 %v3365
      %3699 = vmatprep.subr.mxu0 0.0
      %3700 = vmatpush1.msra.mxu0 %v3366
      %3701 = vmatprep.subr.mxu0 0.0
      %3702 = vmatpush1.msra.mxu0 0.0
      %3703 = vmatprep.subr.mxu0 0.0
      %3704 = vmatpush1.msra.mxu0 0.0
      %3705 = vmatprep.subr.mxu0 0.0
      %3706 = vmatpush1.msra.mxu0 0.0
      %3707 = vmatprep.subr.mxu0 0.0
      %3708 = vmatpush1.msra.mxu0 0.0
      %3709 = vmatprep.subr.mxu0 0.0
      %3710 = vmatpush1.msra.mxu0 0.0
      %3711 = vmatprep.subr.mxu0 0.0
      %3712 = vmatpush1.msra.mxu0 0.0
      %3713 = vmatprep.subr.mxu0 0.0
      %3714 = vmatpush1.msra.mxu0 0.0
      %3715 = vmatprep.subr.mxu0 0.0
      %3716 = vmatpush1.msra.mxu0 0.0
      %3717 = vmatprep.subr.mxu0 0.0
      %3718 = vmatpush1.msra.mxu0 0.0
      %3719 = vmatprep.subr.mxu0 0.0
      %3720 = vmatpush1.msra.mxu0 0.0
      %3721 = vmatprep.subr.mxu0 0.0
      %3722 = vmatpush1.msra.mxu0 0.0
      %3723 = vmatprep.subr.mxu0 0.0
      %3724 = vmatpush1.msra.mxu0 0.0
      %3725 = vmatprep.subr.mxu0 0.0
      %3726 = vmatpush1.msra.mxu0 0.0
      %3727 = vmatprep.subr.mxu0 0.0
      %3728 = vmatpush1.msra.mxu0 0.0
      %3729 = vmatprep.subr.mxu0 0.0
      %3730 = vmatpush1.msra.mxu0 0.0
      %3731 = vmatprep.subr.mxu0 0.0
      %3732 = vmatpush1.msra.mxu0 0.0
      %3733 = vmatprep.subr.mxu0 0.0
      %3734 = vmatpush1.msra.mxu0 0.0
      %3735 = vmatprep.subr.mxu0 0.0
      %3736 = vmatpush1.msra.mxu0 0.0
      %3737 = vmatprep.subr.mxu0 0.0
      %3738 = vmatpush1.msra.mxu0 0.0
      %3739 = vmatprep.subr.mxu0 0.0
      %3740 = vmatpush1.msra.mxu0 0.0
      %3741 = vmatprep.subr.mxu0 0.0
      %3742 = vmatpush1.msra.mxu0 0.0
      %3743 = vmatprep.subr.mxu0 0.0
      %3744 = vmatpush1.msra.mxu0 0.0
      %3745 = vmatprep.subr.mxu0 0.0
      %3746 = vmatpush1.msra.mxu0 0.0
      %3747 = vmatprep.subr.mxu0 0.0
      %3748 = vmatpush1.msra.mxu0 0.0
      %3749 = vmatprep.subr.mxu0 0.0
      %3750 = vmatpush1.msra.mxu0 0.0
      %3751 = vmatprep.subr.mxu0 0.0
      %3752 = vmatpush1.msra.mxu0 0.0
      %3753 = vmatprep.subr.mxu0 0.0
      %3754 = vmatpush1.msra.mxu0 0.0
      %3755 = vmatprep.subr.mxu0 0.0
      %3756 = vmatpush1.msra.mxu0 0.0
      %3757 = vmatprep.subr.mxu0 0.0
      %3758 = vmatpush1.msra.mxu0 0.0
      %3759 = vmatprep.subr.mxu0 0.0
      %3760 = vmatpush1.msra.mxu0 0.0
      %3761 = vmatprep.mubr.f32.mxu0 0.0
      %3762 = vmatmul.mubr.f32.gmra.mrb[0].mxu0 %v3626
      %v3763 = vpop.f32.mrb[0].mxu0
      %v3764 = vadd.f32 %v3507, %v3763
      %v3765 = vpop.f32.mrb[0].mxu0
      %3766 = vmatprep.mubr.f32.mxu0 0.0
      %3767 = vmatmul.mubr.f32.gmra.mrb[0].mxu0 %v3629
      %v3768 = vpop.f32.mrb[0].mxu0
      %v3769 = vadd.f32 %v3512, %v3768
      %v3770 = vpop.f32.mrb[0].mxu0
      %3771 = vmatprep.mubr.f32.mxu0 0.0
      %3772 = vmatmul.mubr.f32.gmra.mrb[0].mxu0 %v3632
      %v3773 = vpop.f32.mrb[0].mxu0
      %v3774 = vadd.f32 %v3517, %v3773
      %v3775 = vpop.f32.mrb[0].mxu0
      %3776 = vmatprep.mubr.f32.mxu0 0.0
      %3777 = vmatmul.mubr.f32.gmra.mrb[0].mxu0 %v3635
      %v3778 = vpop.f32.mrb[0].mxu0
      %v3779 = vadd.f32 %v3522, %v3778
      %v3780 = vpop.f32.mrb[0].mxu0
      %3781 = vmatprep.mubr.f32.mxu0 0.0
      %3782 = vmatmul.mubr.f32.gmra.mrb[0].mxu0 %v3638
      %v3783 = vpop.f32.mrb[0].mxu0
      %v3784 = vadd.f32 %v3527, %v3783
      %v3785 = vpop.f32.mrb[0].mxu0
      %3786 = vmatprep.mubr.f32.mxu0 0.0
      %3787 = vmatmul.mubr.f32.gmra.mrb[0].mxu0 %v3641
      %v3788 = vpop.f32.mrb[0].mxu0
      %v3789 = vadd.f32 %v3532, %v3788
      %v3790 = vpop.f32.mrb[0].mxu0
      %3791 = vmatprep.mubr.f32.mxu0 0.0
      %3792 = vmatmul.mubr.f32.gmra.mrb[0].mxu0 %v3644
      %v3793 = vpop.f32.mrb[0].mxu0
      %v3794 = vadd.f32 %v3537, %v3793
      %v3795 = vpop.f32.mrb[0].mxu0
      %3796 = vmatprep.mubr.f32.mxu0 0.0
      %3797 = vmatmul.mubr.f32.gmra.mrb[0].mxu0 %v3647
      %v3798 = vpop.f32.mrb[0].mxu0
      %v3799 = vadd.f32 %v3542, %v3798
      %v3800 = vpop.f32.mrb[0].mxu0
      %3801 = vmatprep.mubr.f32.mxu0 0.0
      %3802 = vmatmul.mubr.f32.gmra.mrb[0].mxu0 %v3650
      %v3803 = vpop.f32.mrb[0].mxu0
      %v3804 = vadd.f32 %v3547, %v3803
      %v3805 = vpop.f32.mrb[0].mxu0
      %3806 = vmatprep.mubr.f32.mxu0 0.0
      %3807 = vmatmul.mubr.f32.gmra.mrb[0].mxu0 %v3653
      %v3808 = vpop.f32.mrb[0].mxu0
      %v3809 = vadd.f32 %v3552, %v3808
      %v3810 = vpop.f32.mrb[0].mxu0
      %3811 = vmatprep.mubr.f32.mxu0 0.0
      %3812 = vmatmul.mubr.f32.gmra.mrb[0].mxu0 %v3656
      %v3813 = vpop.f32.mrb[0].mxu0
      %v3814 = vadd.f32 %v3557, %v3813
      %v3815 = vpop.f32.mrb[0].mxu0
      %3816 = vmatprep.mubr.f32.mxu0 0.0
      %3817 = vmatmul.mubr.f32.gmra.mrb[0].mxu0 %v3659
      %v3818 = vpop.f32.mrb[0].mxu0
      %v3819 = vadd.f32 %v3562, %v3818
      %v3820 = vpop.f32.mrb[0].mxu0
      %3821 = vmatprep.mubr.f32.mxu0 0.0
      %3822 = vmatmul.mubr.f32.gmra.mrb[0].mxu0 %v3662
      %v3823 = vpop.f32.mrb[0].mxu0
      %v3824 = vadd.f32 %v3567, %v3823
      %v3825 = vpop.f32.mrb[0].mxu0
      %3826 = vmatprep.mubr.f32.mxu0 0.0
      %3827 = vmatmul.mubr.f32.gmra.mrb[0].mxu0 %v3665
      %v3828 = vpop.f32.mrb[0].mxu0
      %v3829 = vadd.f32 %v3572, %v3828
      %v3830 = vpop.f32.mrb[0].mxu0
      %3831 = vmatprep.mubr.f32.mxu0 0.0
      %3832 = vmatmul.mubr.f32.gmra.mrb[0].mxu0 %v3668
      %v3833 = vpop.f32.mrb[0].mxu0
      %v3834 = vadd.f32 %v3577, %v3833
      %v3835 = vpop.f32.mrb[0].mxu0
      %3836 = vmatprep.mubr.f32.mxu0 0.0
      %3837 = vmatmul.mubr.f32.gmra.mrb[0].mxu0 %v3671
      %v3838 = vpop.f32.mrb[0].mxu0
      %v3839 = vadd.f32 %v3582, %v3838
      %v3840 = vpop.f32.mrb[0].mxu0
      %3841 = vmatprep.mubr.f32.mxu0 0.0
      %3842 = vmatmul.mubr.f32.gmra.mrb[0].mxu0 %v3674
      %v3843 = vpop.f32.mrb[0].mxu0
      %v3844 = vadd.f32 %v3587, %v3843
      %v3845 = vpop.f32.mrb[0].mxu0
      %3846 = vmatprep.mubr.f32.mxu0 0.0
      %3847 = vmatmul.mubr.f32.gmra.mrb[0].mxu0 %v3677
      %v3848 = vpop.f32.mrb[0].mxu0
      %v3849 = vadd.f32 %v3592, %v3848
      %v3850 = vpop.f32.mrb[0].mxu0
      %3851 = vmatprep.mubr.f32.mxu0 0.0
      %3852 = vmatmul.mubr.f32.gmra.mrb[0].mxu0 %v3680
      %v3853 = vpop.f32.mrb[0].mxu0
      %v3854 = vadd.f32 %v3597, %v3853
      %v3855 = vpop.f32.mrb[0].mxu0
      %3856 = vmatprep.mubr.f32.mxu0 0.0
      %3857 = vmatmul.mubr.f32.gmra.mrb[0].mxu0 %v3683
      %v3858 = vpop.f32.mrb[0].mxu0
      %v3859 = vadd.f32 %v3602, %v3858
      %v3860 = vpop.f32.mrb[0].mxu0
      %3861 = vmatprep.mubr.f32.mxu0 0.0
      %3862 = vmatmul.mubr.f32.gmra.mrb[0].mxu0 %v3686
      %v3863 = vpop.f32.mrb[0].mxu0
      %v3864 = vadd.f32 %v3607, %v3863
      %v3865 = vpop.f32.mrb[0].mxu0
      %3866 = vmatprep.mubr.f32.mxu0 0.0
      %3867 = vmatmul.mubr.f32.gmra.mrb[0].mxu0 %v3689
      %v3868 = vpop.f32.mrb[0].mxu0
      %v3869 = vadd.f32 %v3612, %v3868
      %v3870 = vpop.f32.mrb[0].mxu0
      %3871 = vmatprep.mubr.f32.mxu0 0.0
      %3872 = vmatmul.mubr.f32.gmra.mrb[0].mxu0 %v3692
      %v3873 = vpop.f32.mrb[0].mxu0
      %v3874 = vadd.f32 %v3617, %v3873
      %v3875 = vpop.f32.mrb[0].mxu0
      %3876 = vmatprep.mubr.f32.mxu0 0.0
      %3877 = vmatmul.mubr.f32.gmra.mrb[0].mxu0 %v3695
      %v3878 = vpop.f32.mrb[0].mxu0
      %v3879 = vadd.f32 %v3622, %v3878
      %v3880 = vpop.f32.mrb[0].mxu0
      %3881 = vdwg.mxu0
      %v3882 = vld [vmem:[#allocation3] sm:$0xff]
      %v3883 = vld [vmem:[#allocation3 + $0x8] sm:$0xff]
      %v3884 = vld [vmem:[#allocation3 + $0x10] sm:$0xff]
      %v3885 = vld [vmem:[#allocation3 + $0x18] sm:$0xff]
      %v3886 = vld [vmem:[#allocation3 + $0x20] sm:$0xff]
      %v3887 = vld [vmem:[#allocation3 + $0x28] sm:$0xff]
      %v3888 = vld [vmem:[#allocation3 + $0x30] sm:$0xff]
      %v3889 = vld [vmem:[#allocation3 + $0x38] sm:$0xff]
      %v3890 = vld [vmem:[#allocation3 + $0x40] sm:$0xff]
      %v3891 = vld [vmem:[#allocation3 + $0x48] sm:$0xff]
      %v3892 = vld [vmem:[#allocation3 + $0x50] sm:$0xff]
      %v3893 = vld [vmem:[#allocation3 + $0x58] sm:$0xff]
      %v3894 = vld [vmem:[#allocation3 + $0x60] sm:$0xff]
      %v3895 = vld [vmem:[#allocation3 + $0x68] sm:$0xff]
      %v3896 = vld [vmem:[#allocation3 + $0x70] sm:$0xff]
      %v3897 = vld [vmem:[#allocation3 + $0x78] sm:$0xff]
      %v3898 = vld [vmem:[#allocation3 + $0x80] sm:$0xff]
      %v3899 = vld [vmem:[#allocation3 + $0x88] sm:$0xff]
      %v3900 = vld [vmem:[#allocation3 + $0x90] sm:$0xff]
      %v3901 = vld [vmem:[#allocation3 + $0x98] sm:$0xff]
      %v3902 = vld [vmem:[#allocation3 + $0xa0] sm:$0xff]
      %v3903 = vld [vmem:[#allocation3 + $0xa8] sm:$0xff]
      %v3904 = vld [vmem:[#allocation3 + $0xb0] sm:$0xff]
      %v3905 = vld [vmem:[#allocation3 + $0xb8] sm:$0xff]
      %v3906 = vld [vmem:[%s3] sm:$0xff]
      %v3907 = vld [vmem:[%s3 + $0x8] sm:$0xff]
      %v3908 = vld [vmem:[%s3 + $0x10] sm:$0xff]
      %v3910 = vsel %vm1539, %v3882, 0
      %v3913 = vsel %vm1539, %v3883, 0
      %v3916 = vsel %vm1539, %v3884, 0
      %v3919 = vsel %vm1539, %v3885, 0
      %v3922 = vsel %vm1539, %v3886, 0
      %v3925 = vsel %vm1539, %v3887, 0
      %v3928 = vsel %vm1539, %v3888, 0
      %v3931 = vsel %vm1539, %v3889, 0
      %v3934 = vsel %vm1539, %v3890, 0
      %v3937 = vsel %vm1539, %v3891, 0
      %v3940 = vsel %vm1539, %v3892, 0
      %v3943 = vsel %vm1539, %v3893, 0
      %v3946 = vsel %vm1539, %v3894, 0
      %v3949 = vsel %vm1539, %v3895, 0
      %v3952 = vsel %vm1539, %v3896, 0
      %v3955 = vsel %vm1539, %v3897, 0
      %v3958 = vsel %vm1539, %v3898, 0
      %v3961 = vsel %vm1539, %v3899, 0
      %v3964 = vsel %vm1539, %v3900, 0
      %v3967 = vsel %vm1539, %v3901, 0
      %v3970 = vsel %vm1539, %v3902, 0
      %v3973 = vsel %vm1539, %v3903, 0
      %v3976 = vsel %vm1539, %v3904, 0
      %v3979 = vsel %vm1539, %v3905, 0
      %3981 = vmatprep.subr.mxu0 0.0
      %3982 = vmatpush1.msra.mxu0 %v3906
      %3983 = vmatprep.subr.mxu0 0.0
      %3984 = vmatpush1.msra.mxu0 %v3907
      %3985 = vmatprep.subr.mxu0 0.0
      %3986 = vmatpush1.msra.mxu0 %v3908
      %3987 = vmatprep.subr.mxu0 0.0
      %3988 = vmatpush1.msra.mxu0 0.0
      %3989 = vmatprep.subr.mxu0 0.0
      %3990 = vmatpush1.msra.mxu0 0.0
      %3991 = vmatprep.subr.mxu0 0.0
      %3992 = vmatpush1.msra.mxu0 0.0
      %3993 = vmatprep.subr.mxu0 0.0
      %3994 = vmatpush1.msra.mxu0 0.0
      %3995 = vmatprep.subr.mxu0 0.0
      %3996 = vmatpush1.msra.mxu0 0.0
      %3997 = vmatprep.subr.mxu0 0.0
      %3998 = vmatpush1.msra.mxu0 0.0
      %3999 = vmatprep.subr.mxu0 0.0
      %4000 = vmatpush1.msra.mxu0 0.0
      %4001 = vmatprep.subr.mxu0 0.0
      %4002 = vmatpush1.msra.mxu0 0.0
      %4003 = vmatprep.subr.mxu0 0.0
      %4004 = vmatpush1.msra.mxu0 0.0
      %4005 = vmatprep.subr.mxu0 0.0
      %4006 = vmatpush1.msra.mxu0 0.0
      %4007 = vmatprep.subr.mxu0 0.0
      %4008 = vmatpush1.msra.mxu0 0.0
      %4009 = vmatprep.subr.mxu0 0.0
      %4010 = vmatpush1.msra.mxu0 0.0
      %4011 = vmatprep.subr.mxu0 0.0
      %4012 = vmatpush1.msra.mxu0 0.0
      %4013 = vmatprep.subr.mxu0 0.0
      %4014 = vmatpush1.msra.mxu0 0.0
      %4015 = vmatprep.subr.mxu0 0.0
      %4016 = vmatpush1.msra.mxu0 0.0
      %4017 = vmatprep.subr.mxu0 0.0
      %4018 = vmatpush1.msra.mxu0 0.0
      %4019 = vmatprep.subr.mxu0 0.0
      %4020 = vmatpush1.msra.mxu0 0.0
      %4021 = vmatprep.subr.mxu0 0.0
      %4022 = vmatpush1.msra.mxu0 0.0
      %4023 = vmatprep.subr.mxu0 0.0
      %4024 = vmatpush1.msra.mxu0 0.0
      %4025 = vmatprep.subr.mxu0 0.0
      %4026 = vmatpush1.msra.mxu0 0.0
      %4027 = vmatprep.subr.mxu0 0.0
      %4028 = vmatpush1.msra.mxu0 0.0
      %4029 = vmatprep.subr.mxu0 0.0
      %4030 = vmatpush1.msra.mxu0 0.0
      %4031 = vmatprep.subr.mxu0 0.0
      %4032 = vmatpush1.msra.mxu0 0.0
      %4033 = vmatprep.subr.mxu0 0.0
      %4034 = vmatpush1.msra.mxu0 0.0
      %4035 = vmatprep.subr.mxu0 0.0
      %4036 = vmatpush1.msra.mxu0 0.0
      %4037 = vmatprep.subr.mxu0 0.0
      %4038 = vmatpush1.msra.mxu0 0.0
      %4039 = vmatprep.subr.mxu0 0.0
      %4040 = vmatpush1.msra.mxu0 0.0
      %4041 = vmatprep.subr.mxu0 0.0
      %4042 = vmatpush1.msra.mxu0 0.0
      %4043 = vmatprep.subr.mxu0 0.0
      %4044 = vmatpush1.msra.mxu0 0.0
      %4045 = vmatprep.mubr.f32.mxu0 0.0
      %4046 = vmatmul.mubr.f32.gmra.mrb[0].mxu0 %v3910
      %v4047 = vpop.f32.mrb[0].mxu0
      %v4048 = vadd.f32 0.0, %v4047
      %v4049 = vpop.f32.mrb[0].mxu0
      %4050 = vmatprep.mubr.f32.mxu0 0.0
      %4051 = vmatmul.mubr.f32.gmra.mrb[0].mxu0 %v3913
      %v4052 = vpop.f32.mrb[0].mxu0
      %v4053 = vadd.f32 0.0, %v4052
      %v4054 = vpop.f32.mrb[0].mxu0
      %4055 = vmatprep.mubr.f32.mxu0 0.0
      %4056 = vmatmul.mubr.f32.gmra.mrb[0].mxu0 %v3916
      %v4057 = vpop.f32.mrb[0].mxu0
      %v4058 = vadd.f32 0.0, %v4057
      %v4059 = vpop.f32.mrb[0].mxu0
      %4060 = vmatprep.mubr.f32.mxu0 0.0
      %4061 = vmatmul.mubr.f32.gmra.mrb[0].mxu0 %v3919
      %v4062 = vpop.f32.mrb[0].mxu0
      %v4063 = vadd.f32 0.0, %v4062
      %v4064 = vpop.f32.mrb[0].mxu0
      %4065 = vmatprep.mubr.f32.mxu0 0.0
      %4066 = vmatmul.mubr.f32.gmra.mrb[0].mxu0 %v3922
      %v4067 = vpop.f32.mrb[0].mxu0
      %v4068 = vadd.f32 0.0, %v4067
      %v4069 = vpop.f32.mrb[0].mxu0
      %4070 = vmatprep.mubr.f32.mxu0 0.0
      %4071 = vmatmul.mubr.f32.gmra.mrb[0].mxu0 %v3925
      %v4072 = vpop.f32.mrb[0].mxu0
      %v4073 = vadd.f32 0.0, %v4072
      %v4074 = vpop.f32.mrb[0].mxu0
      %4075 = vmatprep.mubr.f32.mxu0 0.0
      %4076 = vmatmul.mubr.f32.gmra.mrb[0].mxu0 %v3928
      %v4077 = vpop.f32.mrb[0].mxu0
      %v4078 = vadd.f32 0.0, %v4077
      %v4079 = vpop.f32.mrb[0].mxu0
      %4080 = vmatprep.mubr.f32.mxu0 0.0
      %4081 = vmatmul.mubr.f32.gmra.mrb[0].mxu0 %v3931
      %v4082 = vpop.f32.mrb[0].mxu0
      %v4083 = vadd.f32 0.0, %v4082
      %v4084 = vpop.f32.mrb[0].mxu0
      %4085 = vmatprep.mubr.f32.mxu0 0.0
      %4086 = vmatmul.mubr.f32.gmra.mrb[0].mxu0 %v3934
      %v4087 = vpop.f32.mrb[0].mxu0
      %v4088 = vadd.f32 0.0, %v4087
      %v4089 = vpop.f32.mrb[0].mxu0
      %4090 = vmatprep.mubr.f32.mxu0 0.0
      %4091 = vmatmul.mubr.f32.gmra.mrb[0].mxu0 %v3937
      %v4092 = vpop.f32.mrb[0].mxu0
      %v4093 = vadd.f32 0.0, %v4092
      %v4094 = vpop.f32.mrb[0].mxu0
      %4095 = vmatprep.mubr.f32.mxu0 0.0
      %4096 = vmatmul.mubr.f32.gmra.mrb[0].mxu0 %v3940
      %v4097 = vpop.f32.mrb[0].mxu0
      %v4098 = vadd.f32 0.0, %v4097
      %v4099 = vpop.f32.mrb[0].mxu0
      %4100 = vmatprep.mubr.f32.mxu0 0.0
      %4101 = vmatmul.mubr.f32.gmra.mrb[0].mxu0 %v3943
      %v4102 = vpop.f32.mrb[0].mxu0
      %v4103 = vadd.f32 0.0, %v4102
      %v4104 = vpop.f32.mrb[0].mxu0
      %4105 = vmatprep.mubr.f32.mxu0 0.0
      %4106 = vmatmul.mubr.f32.gmra.mrb[0].mxu0 %v3946
      %v4107 = vpop.f32.mrb[0].mxu0
      %v4108 = vadd.f32 0.0, %v4107
      %v4109 = vpop.f32.mrb[0].mxu0
      %4110 = vmatprep.mubr.f32.mxu0 0.0
      %4111 = vmatmul.mubr.f32.gmra.mrb[0].mxu0 %v3949
      %v4112 = vpop.f32.mrb[0].mxu0
      %v4113 = vadd.f32 0.0, %v4112
      %v4114 = vpop.f32.mrb[0].mxu0
      %4115 = vmatprep.mubr.f32.mxu0 0.0
      %4116 = vmatmul.mubr.f32.gmra.mrb[0].mxu0 %v3952
      %v4117 = vpop.f32.mrb[0].mxu0
      %v4118 = vadd.f32 0.0, %v4117
      %v4119 = vpop.f32.mrb[0].mxu0
      %4120 = vmatprep.mubr.f32.mxu0 0.0
      %4121 = vmatmul.mubr.f32.gmra.mrb[0].mxu0 %v3955
      %v4122 = vpop.f32.mrb[0].mxu0
      %v4123 = vadd.f32 0.0, %v4122
      %v4124 = vpop.f32.mrb[0].mxu0
      %4125 = vmatprep.mubr.f32.mxu0 0.0
      %4126 = vmatmul.mubr.f32.gmra.mrb[0].mxu0 %v3958
      %v4127 = vpop.f32.mrb[0].mxu0
      %v4128 = vadd.f32 0.0, %v4127
      %v4129 = vpop.f32.mrb[0].mxu0
      %4130 = vmatprep.mubr.f32.mxu0 0.0
      %4131 = vmatmul.mubr.f32.gmra.mrb[0].mxu0 %v3961
      %v4132 = vpop.f32.mrb[0].mxu0
      %v4133 = vadd.f32 0.0, %v4132
      %v4134 = vpop.f32.mrb[0].mxu0
      %4135 = vmatprep.mubr.f32.mxu0 0.0
      %4136 = vmatmul.mubr.f32.gmra.mrb[0].mxu0 %v3964
      %v4137 = vpop.f32.mrb[0].mxu0
      %v4138 = vadd.f32 0.0, %v4137
      %v4139 = vpop.f32.mrb[0].mxu0
      %4140 = vmatprep.mubr.f32.mxu0 0.0
      %4141 = vmatmul.mubr.f32.gmra.mrb[0].mxu0 %v3967
      %v4142 = vpop.f32.mrb[0].mxu0
      %v4143 = vadd.f32 0.0, %v4142
      %v4144 = vpop.f32.mrb[0].mxu0
      %4145 = vmatprep.mubr.f32.mxu0 0.0
      %4146 = vmatmul.mubr.f32.gmra.mrb[0].mxu0 %v3970
      %v4147 = vpop.f32.mrb[0].mxu0
      %v4148 = vadd.f32 0.0, %v4147
      %v4149 = vpop.f32.mrb[0].mxu0
      %4150 = vmatprep.mubr.f32.mxu0 0.0
      %4151 = vmatmul.mubr.f32.gmra.mrb[0].mxu0 %v3973
      %v4152 = vpop.f32.mrb[0].mxu0
      %v4153 = vadd.f32 0.0, %v4152
      %v4154 = vpop.f32.mrb[0].mxu0
      %4155 = vmatprep.mubr.f32.mxu0 0.0
      %4156 = vmatmul.mubr.f32.gmra.mrb[0].mxu0 %v3976
      %v4157 = vpop.f32.mrb[0].mxu0
      %v4158 = vadd.f32 0.0, %v4157
      %v4159 = vpop.f32.mrb[0].mxu0
      %4160 = vmatprep.mubr.f32.mxu0 0.0
      %4161 = vmatmul.mubr.f32.gmra.mrb[0].mxu0 %v3979
      %v4162 = vpop.f32.mrb[0].mxu0
      %v4163 = vadd.f32 0.0, %v4162
      %v4164 = vpop.f32.mrb[0].mxu0
      %4165 = vdwg.mxu0
      %v4166 = vadd.f32 %v3764, %v4048
      %v4167 = vadd.f32 %v3769, %v4053
      %v4168 = vadd.f32 %v3774, %v4058
      %v4169 = vadd.f32 %v3779, %v4063
      %v4170 = vadd.f32 %v3784, %v4068
      %v4171 = vadd.f32 %v3789, %v4073
      %v4172 = vadd.f32 %v3794, %v4078
      %v4173 = vadd.f32 %v3799, %v4083
      %v4174 = vadd.f32 %v3804, %v4088
      %v4175 = vadd.f32 %v3809, %v4093
      %v4176 = vadd.f32 %v3814, %v4098
      %v4177 = vadd.f32 %v3819, %v4103
      %v4178 = vadd.f32 %v3824, %v4108
      %v4179 = vadd.f32 %v3829, %v4113
      %v4180 = vadd.f32 %v3834, %v4118
      %v4181 = vadd.f32 %v3839, %v4123
      %v4182 = vadd.f32 %v3844, %v4128
      %v4183 = vadd.f32 %v3849, %v4133
      %v4184 = vadd.f32 %v3854, %v4138
      %v4185 = vadd.f32 %v3859, %v4143
      %v4186 = vadd.f32 %v3864, %v4148
      %v4187 = vadd.f32 %v3869, %v4153
      %v4188 = vadd.f32 %v3874, %v4158
      %v4189 = vadd.f32 %v3879, %v4163
      %s4190 = scalar_lea.vmem [#allocation3], 24
      %v4191 = vld [vmem:[%s4190] sm:$0xff]
      %v4192 = vld [vmem:[%s4190 + $0x8] sm:$0xff]
      %v4193 = vld [vmem:[%s4190 + $0x10] sm:$0xff]
      %v4194 = vld [vmem:[%s4190 + $0x18] sm:$0xff]
      %v4195 = vld [vmem:[%s4190 + $0x20] sm:$0xff]
      %v4196 = vld [vmem:[%s4190 + $0x28] sm:$0xff]
      %v4197 = vld [vmem:[%s4190 + $0x30] sm:$0xff]
      %v4198 = vld [vmem:[%s4190 + $0x38] sm:$0xff]
      %v4199 = vld [vmem:[%s4190 + $0x40] sm:$0xff]
      %v4200 = vld [vmem:[%s4190 + $0x48] sm:$0xff]
      %v4201 = vld [vmem:[%s4190 + $0x50] sm:$0xff]
      %v4202 = vld [vmem:[%s4190 + $0x58] sm:$0xff]
      %v4203 = vld [vmem:[%s4190 + $0x60] sm:$0xff]
      %v4204 = vld [vmem:[%s4190 + $0x68] sm:$0xff]
      %v4205 = vld [vmem:[%s4190 + $0x70] sm:$0xff]
      %v4206 = vld [vmem:[%s4190 + $0x78] sm:$0xff]
      %v4207 = vld [vmem:[%s4190 + $0x80] sm:$0xff]
      %v4208 = vld [vmem:[%s4190 + $0x88] sm:$0xff]
      %v4209 = vld [vmem:[%s4190 + $0x90] sm:$0xff]
      %v4210 = vld [vmem:[%s4190 + $0x98] sm:$0xff]
      %v4211 = vld [vmem:[%s4190 + $0xa0] sm:$0xff]
      %v4212 = vld [vmem:[%s4190 + $0xa8] sm:$0xff]
      %v4213 = vld [vmem:[%s4190 + $0xb0] sm:$0xff]
      %v4214 = vld [vmem:[%s4190 + $0xb8] sm:$0xff]
      %s4215 = scalar_lea.vmem %s3, 24
      %v4216 = vld [vmem:[%s4215] sm:$0xff]
      %v4217 = vld [vmem:[%s4215 + $0x8] sm:$0xff]
      %v4218 = vld [vmem:[%s4215 + $0x10] sm:$0xff]
      %v4220 = vsel %vm1539, %v4191, 0
      %v4223 = vsel %vm1539, %v4192, 0
      %v4226 = vsel %vm1539, %v4193, 0
      %v4229 = vsel %vm1539, %v4194, 0
      %v4232 = vsel %vm1539, %v4195, 0
      %v4235 = vsel %vm1539, %v4196, 0
      %v4238 = vsel %vm1539, %v4197, 0
      %v4241 = vsel %vm1539, %v4198, 0
      %v4244 = vsel %vm1539, %v4199, 0
      %v4247 = vsel %vm1539, %v4200, 0
      %v4250 = vsel %vm1539, %v4201, 0
      %v4253 = vsel %vm1539, %v4202, 0
      %v4256 = vsel %vm1539, %v4203, 0
      %v4259 = vsel %vm1539, %v4204, 0
      %v4262 = vsel %vm1539, %v4205, 0
      %v4265 = vsel %vm1539, %v4206, 0
      %v4268 = vsel %vm1539, %v4207, 0
      %v4271 = vsel %vm1539, %v4208, 0
      %v4274 = vsel %vm1539, %v4209, 0
      %v4277 = vsel %vm1539, %v4210, 0
      %v4280 = vsel %vm1539, %v4211, 0
      %v4283 = vsel %vm1539, %v4212, 0
      %v4286 = vsel %vm1539, %v4213, 0
      %v4289 = vsel %vm1539, %v4214, 0
      %4291 = vmatprep.subr.mxu0 0.0
      %4292 = vmatpush1.msra.mxu0 %v4216
      %4293 = vmatprep.subr.mxu0 0.0
      %4294 = vmatpush1.msra.mxu0 %v4217
      %4295 = vmatprep.subr.mxu0 0.0
      %4296 = vmatpush1.msra.mxu0 %v4218
      %4297 = vmatprep.subr.mxu0 0.0
      %4298 = vmatpush1.msra.mxu0 0.0
      %4299 = vmatprep.subr.mxu0 0.0
      %4300 = vmatpush1.msra.mxu0 0.0
      %4301 = vmatprep.subr.mxu0 0.0
      %4302 = vmatpush1.msra.mxu0 0.0
      %4303 = vmatprep.subr.mxu0 0.0
      %4304 = vmatpush1.msra.mxu0 0.0
      %4305 = vmatprep.subr.mxu0 0.0
      %4306 = vmatpush1.msra.mxu0 0.0
      %4307 = vmatprep.subr.mxu0 0.0
      %4308 = vmatpush1.msra.mxu0 0.0
      %4309 = vmatprep.subr.mxu0 0.0
      %4310 = vmatpush1.msra.mxu0 0.0
      %4311 = vmatprep.subr.mxu0 0.0
      %4312 = vmatpush1.msra.mxu0 0.0
      %4313 = vmatprep.subr.mxu0 0.0
      %4314 = vmatpush1.msra.mxu0 0.0
      %4315 = vmatprep.subr.mxu0 0.0
      %4316 = vmatpush1.msra.mxu0 0.0
      %4317 = vmatprep.subr.mxu0 0.0
      %4318 = vmatpush1.msra.mxu0 0.0
      %4319 = vmatprep.subr.mxu0 0.0
      %4320 = vmatpush1.msra.mxu0 0.0
      %4321 = vmatprep.subr.mxu0 0.0
      %4322 = vmatpush1.msra.mxu0 0.0
      %4323 = vmatprep.subr.mxu0 0.0
      %4324 = vmatpush1.msra.mxu0 0.0
      %4325 = vmatprep.subr.mxu0 0.0
      %4326 = vmatpush1.msra.mxu0 0.0
      %4327 = vmatprep.subr.mxu0 0.0
      %4328 = vmatpush1.msra.mxu0 0.0
      %4329 = vmatprep.subr.mxu0 0.0
      %4330 = vmatpush1.msra.mxu0 0.0
      %4331 = vmatprep.subr.mxu0 0.0
      %4332 = vmatpush1.msra.mxu0 0.0
      %4333 = vmatprep.subr.mxu0 0.0
      %4334 = vmatpush1.msra.mxu0 0.0
      %4335 = vmatprep.subr.mxu0 0.0
      %4336 = vmatpush1.msra.mxu0 0.0
      %4337 = vmatprep.subr.mxu0 0.0
      %4338 = vmatpush1.msra.mxu0 0.0
      %4339 = vmatprep.subr.mxu0 0.0
      %4340 = vmatpush1.msra.mxu0 0.0
      %4341 = vmatprep.subr.mxu0 0.0
      %4342 = vmatpush1.msra.mxu0 0.0
      %4343 = vmatprep.subr.mxu0 0.0
      %4344 = vmatpush1.msra.mxu0 0.0
      %4345 = vmatprep.subr.mxu0 0.0
      %4346 = vmatpush1.msra.mxu0 0.0
      %4347 = vmatprep.subr.mxu0 0.0
      %4348 = vmatpush1.msra.mxu0 0.0
      %4349 = vmatprep.subr.mxu0 0.0
      %4350 = vmatpush1.msra.mxu0 0.0
      %4351 = vmatprep.subr.mxu0 0.0
      %4352 = vmatpush1.msra.mxu0 0.0
      %4353 = vmatprep.subr.mxu0 0.0
      %4354 = vmatpush1.msra.mxu0 0.0
      %4355 = vmatprep.mubr.f32.mxu0 0.0
      %4356 = vmatmul.mubr.f32.gmra.mrb[0].mxu0 %v4220
      %v4357 = vpop.f32.mrb[0].mxu0
      %v4358 = vadd.f32 0.0, %v4357
      %v4359 = vpop.f32.mrb[0].mxu0
      %4360 = vmatprep.mubr.f32.mxu0 0.0
      %4361 = vmatmul.mubr.f32.gmra.mrb[0].mxu0 %v4223
      %v4362 = vpop.f32.mrb[0].mxu0
      %v4363 = vadd.f32 0.0, %v4362
      %v4364 = vpop.f32.mrb[0].mxu0
      %4365 = vmatprep.mubr.f32.mxu0 0.0
      %4366 = vmatmul.mubr.f32.gmra.mrb[0].mxu0 %v4226
      %v4367 = vpop.f32.mrb[0].mxu0
      %v4368 = vadd.f32 0.0, %v4367
      %v4369 = vpop.f32.mrb[0].mxu0
      %4370 = vmatprep.mubr.f32.mxu0 0.0
      %4371 = vmatmul.mubr.f32.gmra.mrb[0].mxu0 %v4229
      %v4372 = vpop.f32.mrb[0].mxu0
      %v4373 = vadd.f32 0.0, %v4372
      %v4374 = vpop.f32.mrb[0].mxu0
      %4375 = vmatprep.mubr.f32.mxu0 0.0
      %4376 = vmatmul.mubr.f32.gmra.mrb[0].mxu0 %v4232
      %v4377 = vpop.f32.mrb[0].mxu0
      %v4378 = vadd.f32 0.0, %v4377
      %v4379 = vpop.f32.mrb[0].mxu0
      %4380 = vmatprep.mubr.f32.mxu0 0.0
      %4381 = vmatmul.mubr.f32.gmra.mrb[0].mxu0 %v4235
      %v4382 = vpop.f32.mrb[0].mxu0
      %v4383 = vadd.f32 0.0, %v4382
      %v4384 = vpop.f32.mrb[0].mxu0
      %4385 = vmatprep.mubr.f32.mxu0 0.0
      %4386 = vmatmul.mubr.f32.gmra.mrb[0].mxu0 %v4238
      %v4387 = vpop.f32.mrb[0].mxu0
      %v4388 = vadd.f32 0.0, %v4387
      %v4389 = vpop.f32.mrb[0].mxu0
      %4390 = vmatprep.mubr.f32.mxu0 0.0
      %4391 = vmatmul.mubr.f32.gmra.mrb[0].mxu0 %v4241
      %v4392 = vpop.f32.mrb[0].mxu0
      %v4393 = vadd.f32 0.0, %v4392
      %v4394 = vpop.f32.mrb[0].mxu0
      %4395 = vmatprep.mubr.f32.mxu0 0.0
      %4396 = vmatmul.mubr.f32.gmra.mrb[0].mxu0 %v4244
      %v4397 = vpop.f32.mrb[0].mxu0
      %v4398 = vadd.f32 0.0, %v4397
      %v4399 = vpop.f32.mrb[0].mxu0
      %4400 = vmatprep.mubr.f32.mxu0 0.0
      %4401 = vmatmul.mubr.f32.gmra.mrb[0].mxu0 %v4247
      %v4402 = vpop.f32.mrb[0].mxu0
      %v4403 = vadd.f32 0.0, %v4402
      %v4404 = vpop.f32.mrb[0].mxu0
      %4405 = vmatprep.mubr.f32.mxu0 0.0
      %4406 = vmatmul.mubr.f32.gmra.mrb[0].mxu0 %v4250
      %v4407 = vpop.f32.mrb[0].mxu0
      %v4408 = vadd.f32 0.0, %v4407
      %v4409 = vpop.f32.mrb[0].mxu0
      %4410 = vmatprep.mubr.f32.mxu0 0.0
      %4411 = vmatmul.mubr.f32.gmra.mrb[0].mxu0 %v4253
      %v4412 = vpop.f32.mrb[0].mxu0
      %v4413 = vadd.f32 0.0, %v4412
      %v4414 = vpop.f32.mrb[0].mxu0
      %4415 = vmatprep.mubr.f32.mxu0 0.0
      %4416 = vmatmul.mubr.f32.gmra.mrb[0].mxu0 %v4256
      %v4417 = vpop.f32.mrb[0].mxu0
      %v4418 = vadd.f32 0.0, %v4417
      %v4419 = vpop.f32.mrb[0].mxu0
      %4420 = vmatprep.mubr.f32.mxu0 0.0
      %4421 = vmatmul.mubr.f32.gmra.mrb[0].mxu0 %v4259
      %v4422 = vpop.f32.mrb[0].mxu0
      %v4423 = vadd.f32 0.0, %v4422
      %v4424 = vpop.f32.mrb[0].mxu0
      %4425 = vmatprep.mubr.f32.mxu0 0.0
      %4426 = vmatmul.mubr.f32.gmra.mrb[0].mxu0 %v4262
      %v4427 = vpop.f32.mrb[0].mxu0
      %v4428 = vadd.f32 0.0, %v4427
      %v4429 = vpop.f32.mrb[0].mxu0
      %4430 = vmatprep.mubr.f32.mxu0 0.0
      %4431 = vmatmul.mubr.f32.gmra.mrb[0].mxu0 %v4265
      %v4432 = vpop.f32.mrb[0].mxu0
      %v4433 = vadd.f32 0.0, %v4432
      %v4434 = vpop.f32.mrb[0].mxu0
      %4435 = vmatprep.mubr.f32.mxu0 0.0
      %4436 = vmatmul.mubr.f32.gmra.mrb[0].mxu0 %v4268
      %v4437 = vpop.f32.mrb[0].mxu0
      %v4438 = vadd.f32 0.0, %v4437
      %v4439 = vpop.f32.mrb[0].mxu0
      %4440 = vmatprep.mubr.f32.mxu0 0.0
      %4441 = vmatmul.mubr.f32.gmra.mrb[0].mxu0 %v4271
      %v4442 = vpop.f32.mrb[0].mxu0
      %v4443 = vadd.f32 0.0, %v4442
      %v4444 = vpop.f32.mrb[0].mxu0
      %4445 = vmatprep.mubr.f32.mxu0 0.0
      %4446 = vmatmul.mubr.f32.gmra.mrb[0].mxu0 %v4274
      %v4447 = vpop.f32.mrb[0].mxu0
      %v4448 = vadd.f32 0.0, %v4447
      %v4449 = vpop.f32.mrb[0].mxu0
      %4450 = vmatprep.mubr.f32.mxu0 0.0
      %4451 = vmatmul.mubr.f32.gmra.mrb[0].mxu0 %v4277
      %v4452 = vpop.f32.mrb[0].mxu0
      %v4453 = vadd.f32 0.0, %v4452
      %v4454 = vpop.f32.mrb[0].mxu0
      %4455 = vmatprep.mubr.f32.mxu0 0.0
      %4456 = vmatmul.mubr.f32.gmra.mrb[0].mxu0 %v4280
      %v4457 = vpop.f32.mrb[0].mxu0
      %v4458 = vadd.f32 0.0, %v4457
      %v4459 = vpop.f32.mrb[0].mxu0
      %4460 = vmatprep.mubr.f32.mxu0 0.0
      %4461 = vmatmul.mubr.f32.gmra.mrb[0].mxu0 %v4283
      %v4462 = vpop.f32.mrb[0].mxu0
      %v4463 = vadd.f32 0.0, %v4462
      %v4464 = vpop.f32.mrb[0].mxu0
      %4465 = vmatprep.mubr.f32.mxu0 0.0
      %4466 = vmatmul.mubr.f32.gmra.mrb[0].mxu0 %v4286
      %v4467 = vpop.f32.mrb[0].mxu0
      %v4468 = vadd.f32 0.0, %v4467
      %v4469 = vpop.f32.mrb[0].mxu0
      %4470 = vmatprep.mubr.f32.mxu0 0.0
      %4471 = vmatmul.mubr.f32.gmra.mrb[0].mxu0 %v4289
      %v4472 = vpop.f32.mrb[0].mxu0
      %v4473 = vadd.f32 0.0, %v4472
      %v4474 = vpop.f32.mrb[0].mxu0
      %4475 = vdwg.mxu0
      %v4476 = vadd.f32 %v4166, %v4358
      %v4477 = vadd.f32 %v4167, %v4363
      %v4478 = vadd.f32 %v4168, %v4368
      %v4479 = vadd.f32 %v4169, %v4373
      %v4480 = vadd.f32 %v4170, %v4378
      %v4481 = vadd.f32 %v4171, %v4383
      %v4482 = vadd.f32 %v4172, %v4388
      %v4483 = vadd.f32 %v4173, %v4393
      %v4484 = vadd.f32 %v4174, %v4398
      %v4485 = vadd.f32 %v4175, %v4403
      %v4486 = vadd.f32 %v4176, %v4408
      %v4487 = vadd.f32 %v4177, %v4413
      %v4488 = vadd.f32 %v4178, %v4418
      %v4489 = vadd.f32 %v4179, %v4423
      %v4490 = vadd.f32 %v4180, %v4428
      %v4491 = vadd.f32 %v4181, %v4433
      %v4492 = vadd.f32 %v4182, %v4438
      %v4493 = vadd.f32 %v4183, %v4443
      %v4494 = vadd.f32 %v4184, %v4448
      %v4495 = vadd.f32 %v4185, %v4453
      %v4496 = vadd.f32 %v4186, %v4458
      %v4497 = vadd.f32 %v4187, %v4463
      %v4498 = vadd.f32 %v4188, %v4468
      %v4499 = vadd.f32 %v4189, %v4473
      %s4500 = scalar_lea.vmem [#allocation3], 48
      %v4501 = vld [vmem:[%s4500] sm:$0xff]
      %v4502 = vld [vmem:[%s4500 + $0x8] sm:$0xff]
      %v4503 = vld [vmem:[%s4500 + $0x10] sm:$0xff]
      %v4504 = vld [vmem:[%s4500 + $0x18] sm:$0xff]
      %v4505 = vld [vmem:[%s4500 + $0x20] sm:$0xff]
      %v4506 = vld [vmem:[%s4500 + $0x28] sm:$0xff]
      %v4507 = vld [vmem:[%s4500 + $0x30] sm:$0xff]
      %v4508 = vld [vmem:[%s4500 + $0x38] sm:$0xff]
      %v4509 = vld [vmem:[%s4500 + $0x40] sm:$0xff]
      %v4510 = vld [vmem:[%s4500 + $0x48] sm:$0xff]
      %v4511 = vld [vmem:[%s4500 + $0x50] sm:$0xff]
      %v4512 = vld [vmem:[%s4500 + $0x58] sm:$0xff]
      %v4513 = vld [vmem:[%s4500 + $0x60] sm:$0xff]
      %v4514 = vld [vmem:[%s4500 + $0x68] sm:$0xff]
      %v4515 = vld [vmem:[%s4500 + $0x70] sm:$0xff]
      %v4516 = vld [vmem:[%s4500 + $0x78] sm:$0xff]
      %v4517 = vld [vmem:[%s4500 + $0x80] sm:$0xff]
      %v4518 = vld [vmem:[%s4500 + $0x88] sm:$0xff]
      %v4519 = vld [vmem:[%s4500 + $0x90] sm:$0xff]
      %v4520 = vld [vmem:[%s4500 + $0x98] sm:$0xff]
      %v4521 = vld [vmem:[%s4500 + $0xa0] sm:$0xff]
      %v4522 = vld [vmem:[%s4500 + $0xa8] sm:$0xff]
      %v4523 = vld [vmem:[%s4500 + $0xb0] sm:$0xff]
      %v4524 = vld [vmem:[%s4500 + $0xb8] sm:$0xff]
      %s4525 = scalar_lea.vmem %s3, 48
      %v4526 = vld [vmem:[%s4525] sm:$0xff]
      %v4527 = vld [vmem:[%s4525 + $0x8] sm:$0xff]
      %v4528 = vld [vmem:[%s4525 + $0x10] sm:$0xff]
      %v4530 = vsel %vm1539, %v4501, 0
      %v4533 = vsel %vm1539, %v4502, 0
      %v4536 = vsel %vm1539, %v4503, 0
      %v4539 = vsel %vm1539, %v4504, 0
      %v4542 = vsel %vm1539, %v4505, 0
      %v4545 = vsel %vm1539, %v4506, 0
      %v4548 = vsel %vm1539, %v4507, 0
      %v4551 = vsel %vm1539, %v4508, 0
      %v4554 = vsel %vm1539, %v4509, 0
      %v4557 = vsel %vm1539, %v4510, 0
      %v4560 = vsel %vm1539, %v4511, 0
      %v4563 = vsel %vm1539, %v4512, 0
      %v4566 = vsel %vm1539, %v4513, 0
      %v4569 = vsel %vm1539, %v4514, 0
      %v4572 = vsel %vm1539, %v4515, 0
      %v4575 = vsel %vm1539, %v4516, 0
      %v4578 = vsel %vm1539, %v4517, 0
      %v4581 = vsel %vm1539, %v4518, 0
      %v4584 = vsel %vm1539, %v4519, 0
      %v4587 = vsel %vm1539, %v4520, 0
      %v4590 = vsel %vm1539, %v4521, 0
      %v4593 = vsel %vm1539, %v4522, 0
      %v4596 = vsel %vm1539, %v4523, 0
      %v4599 = vsel %vm1539, %v4524, 0
      %4601 = vmatprep.subr.mxu0 0.0
      %4602 = vmatpush1.msra.mxu0 %v4526
      %4603 = vmatprep.subr.mxu0 0.0
      %4604 = vmatpush1.msra.mxu0 %v4527
      %4605 = vmatprep.subr.mxu0 0.0
      %4606 = vmatpush1.msra.mxu0 %v4528
      %4607 = vmatprep.subr.mxu0 0.0
      %4608 = vmatpush1.msra.mxu0 0.0
      %4609 = vmatprep.subr.mxu0 0.0
      %4610 = vmatpush1.msra.mxu0 0.0
      %4611 = vmatprep.subr.mxu0 0.0
      %4612 = vmatpush1.msra.mxu0 0.0
      %4613 = vmatprep.subr.mxu0 0.0
      %4614 = vmatpush1.msra.mxu0 0.0
      %4615 = vmatprep.subr.mxu0 0.0
      %4616 = vmatpush1.msra.mxu0 0.0
      %4617 = vmatprep.subr.mxu0 0.0
      %4618 = vmatpush1.msra.mxu0 0.0
      %4619 = vmatprep.subr.mxu0 0.0
      %4620 = vmatpush1.msra.mxu0 0.0
      %4621 = vmatprep.subr.mxu0 0.0
      %4622 = vmatpush1.msra.mxu0 0.0
      %4623 = vmatprep.subr.mxu0 0.0
      %4624 = vmatpush1.msra.mxu0 0.0
      %4625 = vmatprep.subr.mxu0 0.0
      %4626 = vmatpush1.msra.mxu0 0.0
      %4627 = vmatprep.subr.mxu0 0.0
      %4628 = vmatpush1.msra.mxu0 0.0
      %4629 = vmatprep.subr.mxu0 0.0
      %4630 = vmatpush1.msra.mxu0 0.0
      %4631 = vmatprep.subr.mxu0 0.0
      %4632 = vmatpush1.msra.mxu0 0.0
      %4633 = vmatprep.subr.mxu0 0.0
      %4634 = vmatpush1.msra.mxu0 0.0
      %4635 = vmatprep.subr.mxu0 0.0
      %4636 = vmatpush1.msra.mxu0 0.0
      %4637 = vmatprep.subr.mxu0 0.0
      %4638 = vmatpush1.msra.mxu0 0.0
      %4639 = vmatprep.subr.mxu0 0.0
      %4640 = vmatpush1.msra.mxu0 0.0
      %4641 = vmatprep.subr.mxu0 0.0
      %4642 = vmatpush1.msra.mxu0 0.0
      %4643 = vmatprep.subr.mxu0 0.0
      %4644 = vmatpush1.msra.mxu0 0.0
      %4645 = vmatprep.subr.mxu0 0.0
      %4646 = vmatpush1.msra.mxu0 0.0
      %4647 = vmatprep.subr.mxu0 0.0
      %4648 = vmatpush1.msra.mxu0 0.0
      %4649 = vmatprep.subr.mxu0 0.0
      %4650 = vmatpush1.msra.mxu0 0.0
      %4651 = vmatprep.subr.mxu0 0.0
      %4652 = vmatpush1.msra.mxu0 0.0
      %4653 = vmatprep.subr.mxu0 0.0
      %4654 = vmatpush1.msra.mxu0 0.0
      %4655 = vmatprep.subr.mxu0 0.0
      %4656 = vmatpush1.msra.mxu0 0.0
      %4657 = vmatprep.subr.mxu0 0.0
      %4658 = vmatpush1.msra.mxu0 0.0
      %4659 = vmatprep.subr.mxu0 0.0
      %4660 = vmatpush1.msra.mxu0 0.0
      %4661 = vmatprep.subr.mxu0 0.0
      %4662 = vmatpush1.msra.mxu0 0.0
      %4663 = vmatprep.subr.mxu0 0.0
      %4664 = vmatpush1.msra.mxu0 0.0
      %4665 = vmatprep.mubr.f32.mxu0 0.0
      %4666 = vmatmul.mubr.f32.gmra.mrb[0].mxu0 %v4530
      %v4667 = vpop.f32.mrb[0].mxu0
      %v4668 = vadd.f32 0.0, %v4667
      %v4669 = vpop.f32.mrb[0].mxu0
      %4670 = vmatprep.mubr.f32.mxu0 0.0
      %4671 = vmatmul.mubr.f32.gmra.mrb[0].mxu0 %v4533
      %v4672 = vpop.f32.mrb[0].mxu0
      %v4673 = vadd.f32 0.0, %v4672
      %v4674 = vpop.f32.mrb[0].mxu0
      %4675 = vmatprep.mubr.f32.mxu0 0.0
      %4676 = vmatmul.mubr.f32.gmra.mrb[0].mxu0 %v4536
      %v4677 = vpop.f32.mrb[0].mxu0
      %v4678 = vadd.f32 0.0, %v4677
      %v4679 = vpop.f32.mrb[0].mxu0
      %4680 = vmatprep.mubr.f32.mxu0 0.0
      %4681 = vmatmul.mubr.f32.gmra.mrb[0].mxu0 %v4539
      %v4682 = vpop.f32.mrb[0].mxu0
      %v4683 = vadd.f32 0.0, %v4682
      %v4684 = vpop.f32.mrb[0].mxu0
      %4685 = vmatprep.mubr.f32.mxu0 0.0
      %4686 = vmatmul.mubr.f32.gmra.mrb[0].mxu0 %v4542
      %v4687 = vpop.f32.mrb[0].mxu0
      %v4688 = vadd.f32 0.0, %v4687
      %v4689 = vpop.f32.mrb[0].mxu0
      %4690 = vmatprep.mubr.f32.mxu0 0.0
      %4691 = vmatmul.mubr.f32.gmra.mrb[0].mxu0 %v4545
      %v4692 = vpop.f32.mrb[0].mxu0
      %v4693 = vadd.f32 0.0, %v4692
      %v4694 = vpop.f32.mrb[0].mxu0
      %4695 = vmatprep.mubr.f32.mxu0 0.0
      %4696 = vmatmul.mubr.f32.gmra.mrb[0].mxu0 %v4548
      %v4697 = vpop.f32.mrb[0].mxu0
      %v4698 = vadd.f32 0.0, %v4697
      %v4699 = vpop.f32.mrb[0].mxu0
      %4700 = vmatprep.mubr.f32.mxu0 0.0
      %4701 = vmatmul.mubr.f32.gmra.mrb[0].mxu0 %v4551
      %v4702 = vpop.f32.mrb[0].mxu0
      %v4703 = vadd.f32 0.0, %v4702
      %v4704 = vpop.f32.mrb[0].mxu0
      %4705 = vmatprep.mubr.f32.mxu0 0.0
      %4706 = vmatmul.mubr.f32.gmra.mrb[0].mxu0 %v4554
      %v4707 = vpop.f32.mrb[0].mxu0
      %v4708 = vadd.f32 0.0, %v4707
      %v4709 = vpop.f32.mrb[0].mxu0
      %4710 = vmatprep.mubr.f32.mxu0 0.0
      %4711 = vmatmul.mubr.f32.gmra.mrb[0].mxu0 %v4557
      %v4712 = vpop.f32.mrb[0].mxu0
      %v4713 = vadd.f32 0.0, %v4712
      %v4714 = vpop.f32.mrb[0].mxu0
      %4715 = vmatprep.mubr.f32.mxu0 0.0
      %4716 = vmatmul.mubr.f32.gmra.mrb[0].mxu0 %v4560
      %v4717 = vpop.f32.mrb[0].mxu0
      %v4718 = vadd.f32 0.0, %v4717
      %v4719 = vpop.f32.mrb[0].mxu0
      %4720 = vmatprep.mubr.f32.mxu0 0.0
      %4721 = vmatmul.mubr.f32.gmra.mrb[0].mxu0 %v4563
      %v4722 = vpop.f32.mrb[0].mxu0
      %v4723 = vadd.f32 0.0, %v4722
      %v4724 = vpop.f32.mrb[0].mxu0
      %4725 = vmatprep.mubr.f32.mxu0 0.0
      %4726 = vmatmul.mubr.f32.gmra.mrb[0].mxu0 %v4566
      %v4727 = vpop.f32.mrb[0].mxu0
      %v4728 = vadd.f32 0.0, %v4727
      %v4729 = vpop.f32.mrb[0].mxu0
      %4730 = vmatprep.mubr.f32.mxu0 0.0
      %4731 = vmatmul.mubr.f32.gmra.mrb[0].mxu0 %v4569
      %v4732 = vpop.f32.mrb[0].mxu0
      %v4733 = vadd.f32 0.0, %v4732
      %v4734 = vpop.f32.mrb[0].mxu0
      %4735 = vmatprep.mubr.f32.mxu0 0.0
      %4736 = vmatmul.mubr.f32.gmra.mrb[0].mxu0 %v4572
      %v4737 = vpop.f32.mrb[0].mxu0
      %v4738 = vadd.f32 0.0, %v4737
      %v4739 = vpop.f32.mrb[0].mxu0
      %4740 = vmatprep.mubr.f32.mxu0 0.0
      %4741 = vmatmul.mubr.f32.gmra.mrb[0].mxu0 %v4575
      %v4742 = vpop.f32.mrb[0].mxu0
      %v4743 = vadd.f32 0.0, %v4742
      %v4744 = vpop.f32.mrb[0].mxu0
      %4745 = vmatprep.mubr.f32.mxu0 0.0
      %4746 = vmatmul.mubr.f32.gmra.mrb[0].mxu0 %v4578
      %v4747 = vpop.f32.mrb[0].mxu0
      %v4748 = vadd.f32 0.0, %v4747
      %v4749 = vpop.f32.mrb[0].mxu0
      %4750 = vmatprep.mubr.f32.mxu0 0.0
      %4751 = vmatmul.mubr.f32.gmra.mrb[0].mxu0 %v4581
      %v4752 = vpop.f32.mrb[0].mxu0
      %v4753 = vadd.f32 0.0, %v4752
      %v4754 = vpop.f32.mrb[0].mxu0
      %4755 = vmatprep.mubr.f32.mxu0 0.0
      %4756 = vmatmul.mubr.f32.gmra.mrb[0].mxu0 %v4584
      %v4757 = vpop.f32.mrb[0].mxu0
      %v4758 = vadd.f32 0.0, %v4757
      %v4759 = vpop.f32.mrb[0].mxu0
      %4760 = vmatprep.mubr.f32.mxu0 0.0
      %4761 = vmatmul.mubr.f32.gmra.mrb[0].mxu0 %v4587
      %v4762 = vpop.f32.mrb[0].mxu0
      %v4763 = vadd.f32 0.0, %v4762
      %v4764 = vpop.f32.mrb[0].mxu0
      %4765 = vmatprep.mubr.f32.mxu0 0.0
      %4766 = vmatmul.mubr.f32.gmra.mrb[0].mxu0 %v4590
      %v4767 = vpop.f32.mrb[0].mxu0
      %v4768 = vadd.f32 0.0, %v4767
      %v4769 = vpop.f32.mrb[0].mxu0
      %4770 = vmatprep.mubr.f32.mxu0 0.0
      %4771 = vmatmul.mubr.f32.gmra.mrb[0].mxu0 %v4593
      %v4772 = vpop.f32.mrb[0].mxu0
      %v4773 = vadd.f32 0.0, %v4772
      %v4774 = vpop.f32.mrb[0].mxu0
      %4775 = vmatprep.mubr.f32.mxu0 0.0
      %4776 = vmatmul.mubr.f32.gmra.mrb[0].mxu0 %v4596
      %v4777 = vpop.f32.mrb[0].mxu0
      %v4778 = vadd.f32 0.0, %v4777
      %v4779 = vpop.f32.mrb[0].mxu0
      %4780 = vmatprep.mubr.f32.mxu0 0.0
      %4781 = vmatmul.mubr.f32.gmra.mrb[0].mxu0 %v4599
      %v4782 = vpop.f32.mrb[0].mxu0
      %v4783 = vadd.f32 0.0, %v4782
      %v4784 = vpop.f32.mrb[0].mxu0
      %4785 = vdwg.mxu0
      %v4786 = vadd.f32 %v4476, %v4668
      %v4787 = vadd.f32 %v4477, %v4673
      %v4788 = vadd.f32 %v4478, %v4678
      %v4789 = vadd.f32 %v4479, %v4683
      %v4790 = vadd.f32 %v4480, %v4688
      %v4791 = vadd.f32 %v4481, %v4693
      %v4792 = vadd.f32 %v4482, %v4698
      %v4793 = vadd.f32 %v4483, %v4703
      %v4794 = vadd.f32 %v4484, %v4708
      %v4795 = vadd.f32 %v4485, %v4713
      %v4796 = vadd.f32 %v4486, %v4718
      %v4797 = vadd.f32 %v4487, %v4723
      %v4798 = vadd.f32 %v4488, %v4728
      %v4799 = vadd.f32 %v4489, %v4733
      %v4800 = vadd.f32 %v4490, %v4738
      %v4801 = vadd.f32 %v4491, %v4743
      %v4802 = vadd.f32 %v4492, %v4748
      %v4803 = vadd.f32 %v4493, %v4753
      %v4804 = vadd.f32 %v4494, %v4758
      %v4805 = vadd.f32 %v4495, %v4763
      %v4806 = vadd.f32 %v4496, %v4768
      %v4807 = vadd.f32 %v4497, %v4773
      %v4808 = vadd.f32 %v4498, %v4778
      %v4809 = vadd.f32 %v4499, %v4783
      %v4810 = vld [vmem:[%s6] sm:$0x1]
      %v4812 = vlaneseq
      %v4813 = vshrl.u32 %v4812, 7
      %v4814 = vsub.s32 0, %v4813
      %v4815 = vrot.slane %v4810, %v4814
      %v4817 = vadd.f32 %v4786, %v4815
      %v4818 = vadd.f32 %v4787, %v4815
      %v4819 = vadd.f32 %v4788, %v4815
      %v4820 = vadd.f32 %v4789, %v4815
      %v4821 = vadd.f32 %v4790, %v4815
      %v4822 = vadd.f32 %v4791, %v4815
      %v4823 = vadd.f32 %v4792, %v4815
      %v4824 = vadd.f32 %v4793, %v4815
      %v4825 = vadd.f32 %v4794, %v4815
      %v4826 = vadd.f32 %v4795, %v4815
      %v4827 = vadd.f32 %v4796, %v4815
      %v4828 = vadd.f32 %v4797, %v4815
      %v4829 = vadd.f32 %v4798, %v4815
      %v4830 = vadd.f32 %v4799, %v4815
      %v4831 = vadd.f32 %v4800, %v4815
      %v4832 = vadd.f32 %v4801, %v4815
      %v4833 = vadd.f32 %v4802, %v4815
      %v4834 = vadd.f32 %v4803, %v4815
      %v4835 = vadd.f32 %v4804, %v4815
      %v4836 = vadd.f32 %v4805, %v4815
      %v4837 = vadd.f32 %v4806, %v4815
      %v4838 = vadd.f32 %v4807, %v4815
      %v4839 = vadd.f32 %v4808, %v4815
      %v4840 = vadd.f32 %v4809, %v4815
      %4841 = vst.msk [vmem:[%s512] sm:$0xff] %vm3261, %v4817
      %4842 = vst.msk [vmem:[%s512 + $0x8] sm:$0xff] %vm3261, %v4818
      %4843 = vst.msk [vmem:[%s512 + $0x10] sm:$0xff] %vm3261, %v4819
      %4844 = vst.msk [vmem:[%s512 + $0x18] sm:$0xff] %vm3261, %v4820
      %4845 = vst.msk [vmem:[%s512 + $0x20] sm:$0xff] %vm3261, %v4821
      %4846 = vst.msk [vmem:[%s512 + $0x28] sm:$0xff] %vm3261, %v4822
      %4847 = vst.msk [vmem:[%s512 + $0x30] sm:$0xff] %vm3261, %v4823
      %4848 = vst.msk [vmem:[%s512 + $0x38] sm:$0xff] %vm3261, %v4824
      %4849 = vst.msk [vmem:[%s512 + $0x40] sm:$0xff] %vm3261, %v4825
      %4850 = vst.msk [vmem:[%s512 + $0x48] sm:$0xff] %vm3261, %v4826
      %4851 = vst.msk [vmem:[%s512 + $0x50] sm:$0xff] %vm3261, %v4827
      %4852 = vst.msk [vmem:[%s512 + $0x58] sm:$0xff] %vm3261, %v4828
      %4853 = vst.msk [vmem:[%s512 + $0x60] sm:$0xff] %vm3261, %v4829
      %4854 = vst.msk [vmem:[%s512 + $0x68] sm:$0xff] %vm3261, %v4830
      %4855 = vst.msk [vmem:[%s512 + $0x70] sm:$0xff] %vm3261, %v4831
      %4856 = vst.msk [vmem:[%s512 + $0x78] sm:$0xff] %vm3261, %v4832
      %4857 = vst.msk [vmem:[%s512 + $0x80] sm:$0xff] %vm3261, %v4833
      %4858 = vst.msk [vmem:[%s512 + $0x88] sm:$0xff] %vm3261, %v4834
      %4859 = vst.msk [vmem:[%s512 + $0x90] sm:$0xff] %vm3261, %v4835
      %4860 = vst.msk [vmem:[%s512 + $0x98] sm:$0xff] %vm3261, %v4836
      %4861 = vst.msk [vmem:[%s512 + $0xa0] sm:$0xff] %vm3261, %v4837
      %4862 = vst.msk [vmem:[%s512 + $0xa8] sm:$0xff] %vm3261, %v4838
      %4863 = vst.msk [vmem:[%s512 + $0xb0] sm:$0xff] %vm3261, %v4839
      %4864 = vst.msk [vmem:[%s512 + $0xb8] sm:$0xff] %vm3261, %v4840
      %s4865 = smul.u32 8, %s29
      %p4866 = scmp.lt.s32.totalorder %s28, 1
      %s4867 = scalar_select %p4866, %s28, 1
      %p4868 = scmp.lt.s32.totalorder %s4865, 23
      %s4869 = scalar_select %p4868, %s4865, 23
      %s4870 = smul.addr %s4869, 3
      %s4871 = smul.addr %s4867, 72
      %s4872 = sadd.s32 %s4870, %s4871
      %s4873 = smul.addr %s4872, 8
      %s4874 = scalar_lea.vmem %s13, %s4873
      // Predicated region
      $region89: #{tpu_custom_call.1} parent=71 // pred_check
        %p4875 = pneg %p343
      $region90: #{tpu_custom_call.1} parent=71 // pred_check_branch
        %4877 = sbr.rel (%p4875) target = $region92
      $region91: #{tpu_custom_call.1} parent=71 // pred_region
        %s4878 = smul.u32 8, %s29
      $region92: #{tpu_custom_call.1} parent=71 // pred_fallthru
        _
    $region72: #{tpu_custom_call.1} parent=5 // pred_fallthru
      _
    %p4879 = scmp.le.s32.totalorder 2, %s19
    // Predicated region
    $region93: #{tpu_custom_call.1} parent=5 // pred_check
      %p4880 = pneg %p4879
    $region94: #{tpu_custom_call.1} parent=5 // pred_check_branch
      %4882 = sbr.rel (%p4880) target = $region96
    $region95: #{tpu_custom_call.1} parent=5 // pred_region
      %s4883 = ssub.s32 %s19, 2
      // Predicated region
      $region97: #{tpu_custom_call.1} parent=95 // pred_check
        %p4884 = pneg %p349
      $region98: #{tpu_custom_call.1} parent=95 // pred_check_branch
        %4886 = sbr.rel (%p4884) target = $region100
      $region99: #{tpu_custom_call.1} parent=95 // pred_region
        %s4887 = smul.u32 8, %s31
        %p4888 = scmp.lt.s32.totalorder %s30, 1
        %s4889 = scalar_select %p4888, %s30, 1
        %p4890 = scmp.lt.s32.totalorder %s4887, 23
        %s4891 = scalar_select %p4890, %s4887, 23
        %s4892 = smul.addr %s4891, 3
        %s4893 = smul.addr %s4889, 72
        %s4894 = sadd.s32 %s4892, %s4893
        %s4895 = smul.addr %s4894, 8
        %s4896 = scalar_lea.vmem %s13, %s4895
      $region100: #{tpu_custom_call.1} parent=95 // pred_fallthru
        _
    $region96: #{tpu_custom_call.1} parent=5 // pred_fallthru
      _
  $region6: #{tpu_custom_call.1} parent=0 // loop_footer
    %s23 = sadd.s32 1, %s19
  $region7: #{tpu_custom_call.1} parent=0 // loop_footer_branch
    %18 = sbr.rel target = $region3
  $region8: #{tpu_custom_call.1} parent=0 // loop_exit
    _

</llo_original>
